<compile_context>
chip_gen: v7x
topology: tpu7x:2x2x1
jax: 0.10.0
libtpu: 0.0.40
codegen_flags: <defaults>
</compile_context>

<pallas_src>
import functools

import jax
import jax.numpy as jnp
from jax.experimental import pallas as pl
from jax.experimental.pallas import tpu as pltpu


def _round_up(x, m):
    return (x + m - 1) // m * m


# ------------------------------- fused kernel --------------------------------

def _gnntc_kernel(pid_ref, types_ref, states_ref, aw1_ref, sw1_ref, wh_ref,
                  bh_ref, *rest, A, L, H, conv_cfgs, out_index):
    """One batch element per grid step; everything VMEM-resident."""
    n_conv = len(conv_cfgs)
    conv_refs = rest[:2 * n_conv]
    out_ref = rest[2 * n_conv]
    buf_ref = rest[2 * n_conv + 1]

    f32 = jnp.float32
    b = pl.program_id(0)
    pid = pid_ref[b]                         # receiver agent id (SMEM scalar)

    def dot(x, w):
        return jnp.dot(x, w, preferred_element_type=f32)

    def mlp2(x, w1, b1, w2, b2):             # Linear-ReLU-Linear-ReLU
        h = jnp.maximum(dot(x, w1) + b1, 0.0)
        return jnp.maximum(dot(h, w2) + b2, 0.0)

    # ---- agent encoder on types: [A, H]
    agent_enc = mlp2(types_ref[0, :, :], aw1_ref[...], bh_ref[0:1, :],
                     wh_ref[0, :, :], bh_ref[1:2, :])

    # enc[playerid] via one-hot row mask (no dynamic gather)
    rows = jax.lax.broadcasted_iota(jnp.int32, (A, H), 0)
    enc_pid = jnp.sum((rows == pid).astype(f32) * agent_enc,
                      axis=0, keepdims=True)                       # [1, H]

    # ---- relation encoder, receiver fixed to playerid.
    # Input is cat([enc[j], enc[i]]); first weight is split so no concat exists.
    h1 = jnp.maximum(dot(agent_enc, wh_ref[2, :, :])
                     + dot(enc_pid, wh_ref[3, :, :]) + bh_ref[4:5, :], 0.0)
    rel_enc = jnp.maximum(dot(h1, wh_ref[4, :, :]) + bh_ref[5:6, :], 0.0)  # [A,H]
    trel = dot(rel_enc, wh_ref[7, :, :])                           # [A, H]

    # ---- state encoder per sender agent j: [L, H] each
    se = [mlp2(states_ref[0, j, :, :], sw1_ref[...], bh_ref[2:3, :],
               wh_ref[1, :, :], bh_ref[3:4, :]) for j in range(A)]

    se_pid = jnp.zeros((L, H), f32)
    for j in range(A):
        se_pid = se_pid + (pid == j).astype(f32) * se[j]

    # ---- propagator (Linear+ReLU) + sum over senders, weight split 3x [H,H]
    ts = dot(se_pid, wh_ref[5, :, :])                              # [L, H]
    bp = bh_ref[6:7, :]
    agg = jnp.zeros((L, H), f32)
    for j in range(A):
        pre = ts + dot(se[j], wh_ref[6, :, :]) + trel[j:j + 1, :] + bp
        agg = agg + jnp.maximum(pre, 0.0)

    # ---- temporal conv stack on [L, C]: zero-padded scratch + strided taps
    x = agg
    for li, (K, stride, pad, relu, l_in, l_out) in enumerate(conv_cfgs):
        cw_ref = conv_refs[2 * li]           # [K, Cmax, Cout] (Cin zero-padded)
        cb_ref = conv_refs[2 * li + 1]       # [1, Cout]
        cout = cb_ref.shape[1]
        buf_ref[...] = jnp.zeros_like(buf_ref)
        buf_ref[8:8 + l_in, :x.shape[1]] = x          # data at aligned row 8
        acc = jnp.zeros((l_out, cout), f32)
        for k in range(K):
            start = 8 - pad + k
            sl = pl.ds(start, l_out, stride) if stride > 1 else pl.ds(start, l_out)
            acc = acc + dot(buf_ref[sl], cw_ref[k, :, :])
        y = acc + cb_ref[...]
        if relu:
            y = jnp.maximum(y, 0.0)
        x = y

    out_ref[0, :, :] = x[out_index:out_index + 1, :]


# --------------------------------- wrapper -----------------------------------

def gnntc_forward(params, states, types, playerid, h_dim):
    """Fused GNNTC forward. states [B,L,A,S], types [B,A,T], playerid [B]."""
    B, L, A, S = states.shape
    T = types.shape[2]
    H = h_dim
    f32 = jnp.float32

    (aw1, ab1), (aw2, ab2) = params["agent_enc"]
    (sw1, sb1), (sw2, sb2) = params["state_enc"]
    (rw1, rb1), (rw2, rb2) = params["rel_enc"]
    wp, bp = params["prop"]

    # --- trace-time repacking (tiny tensors, pure XLA glue) ---
    Tp, Sp = _round_up(T, 8), _round_up(S, 8)
    types_p = jnp.pad(types.astype(f32), ((0, 0), (0, 0), (0, Tp - T)))
    states_p = jnp.pad(states.astype(f32), ((0, 0), (0, 0), (0, 0), (0, Sp - S)))
    states_p = jnp.transpose(states_p, (0, 2, 1, 3))        # [B, A, L, Sp]

    aw1_p = jnp.pad(aw1, ((0, Tp - T), (0, 0))).astype(f32)
    sw1_p = jnp.pad(sw1, ((0, Sp - S), (0, 0))).astype(f32)

    # all [H,H] matrices stacked; relation-encoder W1 and propagator W split.
    wh = jnp.stack([aw2, sw2, rw1[:H], rw1[H:2 * H], rw2,
                    wp[:H], wp[H:2 * H], wp[2 * H:3 * H]], axis=0).astype(f32)
    bh = jnp.stack([ab1, ab2, sb1, sb2, rb1, rb2, bp], axis=0).astype(f32)

    cmax = max([H] + [int(w.shape[1]) for (w, *_r) in params["convs"]])
    conv_cfgs, conv_args = [], []
    l_in = L
    for (w, b, K, stride, pad, relu) in params["convs"]:
        cout, cin, _ = w.shape
        l_out = (l_in + 2 * pad - K) // stride + 1
        conv_cfgs.append((K, stride, pad, relu, l_in, l_out))
        wk = jnp.pad(jnp.transpose(w, (2, 1, 0)),
                     ((0, 0), (0, cmax - cin), (0, 0))).astype(f32)
        conv_args += [wk, b.reshape(1, cout).astype(f32)]
        l_in = l_out
    conv_cfgs = tuple(conv_cfgs)
    n_features = int(params["convs"][-1][0].shape[0])
    out_index = l_in // 2
    buf_rows = _round_up(8 + max(c[4] + c[2] for c in conv_cfgs), 8)

    kernel = functools.partial(_gnntc_kernel, A=A, L=L, H=H,
                               conv_cfgs=conv_cfgs, out_index=out_index)

    in_specs = [
        pl.BlockSpec((1, A, Tp), lambda b, p: (b, 0, 0)),
        pl.BlockSpec((1, A, L, Sp), lambda b, p: (b, 0, 0, 0)),
        pl.BlockSpec((Tp, H), lambda b, p: (0, 0)),
        pl.BlockSpec((Sp, H), lambda b, p: (0, 0)),
        pl.BlockSpec((8, H, H), lambda b, p: (0, 0, 0)),
        pl.BlockSpec((7, H), lambda b, p: (0, 0)),
    ]
    for a in conv_args:
        if a.ndim == 3:
            in_specs.append(pl.BlockSpec(a.shape, lambda b, p: (0, 0, 0)))
        else:
            in_specs.append(pl.BlockSpec(a.shape, lambda b, p: (0, 0)))

    out = pl.pallas_call(
        kernel,
        out_shape=jax.ShapeDtypeStruct((B, 1, n_features), f32),
        grid_spec=pltpu.PrefetchScalarGridSpec(
            num_scalar_prefetch=1,
            grid=(B,),
            in_specs=in_specs,
            out_specs=pl.BlockSpec((1, 1, n_features), lambda b, p: (b, 0, 0)),
            scratch_shapes=[pltpu.VMEM((buf_rows, cmax), f32)],
        ),
        compiler_params=pltpu.CompilerParams(
            dimension_semantics=("parallel",)),
    )(playerid.astype(jnp.int32), types_p, states_p, aw1_p, sw1_p, wh, bh,
      *conv_args)
    return out.reshape(B, n_features)


# ----------------------------- parameters -----------------------------------

def init_params(key, state_dim, type_dim, h_dim, n_features, layers):
    keys = list(jax.random.split(key, 64))
    it = iter(keys)

    def lin(din, dout):
        k1, k2 = next(it), next(it)
        bound = 1.0 / (din ** 0.5)
        w = jax.random.uniform(k1, (din, dout), jnp.float32, -bound, bound)
        b = jax.random.uniform(k2, (dout,), jnp.float32, -bound, bound)
        return w, b

    p = {
        "agent_enc": (lin(type_dim, h_dim), lin(h_dim, h_dim)),
        "state_enc": (lin(state_dim, h_dim), lin(h_dim, h_dim)),
        "rel_enc": (lin(2 * h_dim, h_dim), lin(h_dim, h_dim)),
        "prop": lin(3 * h_dim, h_dim),
    }
    convs = []
    last = h_dim
    for (c, k, s) in layers:
        k1, k2 = next(it), next(it)
        bound = 1.0 / ((last * k) ** 0.5)
        w = jax.random.uniform(k1, (c, last, k), jnp.float32, -bound, bound)
        b = jax.random.uniform(k2, (c,), jnp.float32, -bound, bound)
        convs.append((w, b, k, s, k // 2, True))   # conv -> ReLU -> Dropout(id)
        last = c
    k1, k2 = next(it), next(it)
    bound = 1.0 / (last ** 0.5)
    w = jax.random.uniform(k1, (n_features, last, 1), jnp.float32, -bound, bound)
    b = jax.random.uniform(k2, (n_features,), jnp.float32, -bound, bound)
    convs.append((w, b, 1, 1, 0, False))           # final 1x1 conv, no ReLU
    p["convs"] = convs
    return p


# --------------------------- pure-JAX reference ------------------------------

def reference_forward(params, states, types, playerid, h_dim):
    B, L, A, _ = states.shape
    H = h_dim

    def mlp2_ref(x, p):
        (w1, b1), (w2, b2) = p
        h = jnp.maximum(x @ w1 + b1, 0.0)
        return jnp.maximum(h @ w2 + b2, 0.0)

    agent_encode = mlp2_ref(types, params["agent_enc"])                   # [B,A,H]
    agent_encode_r = jnp.tile(agent_encode, (1, A, 1))
    agent_encode_s = jnp.tile(agent_encode, (1, 1, A)).reshape(B, A * A, H)
    relation_encode = mlp2_ref(
        jnp.concatenate([agent_encode_r, agent_encode_s], -1), params["rel_enc"])
    state_encode = mlp2_ref(states, params["state_enc"])                  # [B,L,A,H]
    state_encode_r = jnp.tile(state_encode, (1, 1, A, 1))
    state_encode_s = jnp.tile(state_encode, (1, 1, 1, A)).reshape(B, L, A * A, H)
    wp, bp = params["prop"]
    prop_in = jnp.concatenate(
        [state_encode_s, state_encode_r,
         jnp.broadcast_to(relation_encode[:, None], (B, L, A * A, H))], -1)
    relation_effect = jnp.maximum(prop_in @ wp + bp, 0.0)
    agg = relation_effect.reshape(B, L, A, A, H).sum(axis=3)
    x = agg[jnp.arange(B), :, playerid, :]
    for (w, b, _, stride, pad, relu) in params["convs"]:
        y = jax.lax.conv_general_dilated(
            x, jnp.transpose(w, (2, 1, 0)),
            window_strides=(stride,), padding=[(pad, pad)],
            dimension_numbers=("NWC", "WIO", "NWC"))
        y = y + b
        if relu:
            y = jnp.maximum(y, 0.0)
        x = y
    return x[:, x.shape[1] // 2, :]


# --------------------------------- main --------------------------------------

if __name__ == "__main__":
    B, L, A = 2, 16, 4
    state_dim, type_dim, h_dim, n_features = 3, 3, 32, 32
    layers = [(32, 9, 3), (32, 7, 2), (32, 5, 2)]

    key = jax.random.PRNGKey(0)
    k1, k2, k3, kp = jax.random.split(key, 4)
    states = jax.random.normal(k1, (B, L, A, state_dim), jnp.float32)
    types = jax.random.normal(k2, (B, A, type_dim), jnp.float32)
    playerid = jax.random.randint(k3, (B,), 0, A)

    params = init_params(kp, state_dim, type_dim, h_dim, n_features, layers)

    out = gnntc_forward(params, states, types, playerid, h_dim)
    out = jax.block_until_ready(out)
    assert out.shape == (B, n_features), out.shape

    # gold reference in full f32 precision; kernel uses the default MXU path,
    # so allow bf16-pass-level tolerance.
    with jax.default_matmul_precision("highest"):
        ref = jax.block_until_ready(
            reference_forward(params, states, types, playerid, h_dim))
    assert jnp.allclose(out, ref, rtol=2e-2, atol=2e-2), (
        float(jnp.max(jnp.abs(out - ref))))

    print("KERNEL_OK")
</pallas_src>

<mosaic_0001>
module attributes {stable_mosaic.version = 11 : i64} {
  func.func @_gnntc_kernel(%arg0: i32, %arg1: memref<2xi32, #tpu.memory_space<smem>>, %arg2: memref<1x4x8xf32, #tpu.memory_space<vmem>>, %arg3: memref<1x4x16x8xf32, #tpu.memory_space<vmem>>, %arg4: memref<8x32xf32, #tpu.memory_space<vmem>>, %arg5: memref<8x32xf32, #tpu.memory_space<vmem>>, %arg6: memref<8x32x32xf32, #tpu.memory_space<vmem>>, %arg7: memref<7x32xf32, #tpu.memory_space<vmem>>, %arg8: memref<9x32x32xf32, #tpu.memory_space<vmem>>, %arg9: memref<1x32xf32, #tpu.memory_space<vmem>>, %arg10: memref<7x32x32xf32, #tpu.memory_space<vmem>>, %arg11: memref<1x32xf32, #tpu.memory_space<vmem>>, %arg12: memref<5x32x32xf32, #tpu.memory_space<vmem>>, %arg13: memref<1x32xf32, #tpu.memory_space<vmem>>, %arg14: memref<1x32x32xf32, #tpu.memory_space<vmem>>, %arg15: memref<1x32xf32, #tpu.memory_space<vmem>>, %arg16: memref<1x1x32xf32, #tpu.memory_space<vmem>>, %arg17: memref<32x32xf32, #tpu.memory_space<vmem>>) attributes {dimension_semantics = [#tpu.dimension_semantics<parallel>], iteration_bounds = array<i64: 2>, scalar_prefetch = 1 : i64, scratch_operands = 1 : i64, tpu.core_type = #tpu.core_type<tc>, window_params = [{transform_indices = @transform_0, window_bounds = array<i64: 1, 4, 8>}, {transform_indices = @transform_1, window_bounds = array<i64: 1, 4, 16, 8>}, {pipeline_mode = #tpu.pipeline_mode<synchronous>, transform_indices = @transform_2, window_bounds = array<i64: 8, 32>}, {pipeline_mode = #tpu.pipeline_mode<synchronous>, transform_indices = @transform_3, window_bounds = array<i64: 8, 32>}, {pipeline_mode = #tpu.pipeline_mode<synchronous>, transform_indices = @transform_4, window_bounds = array<i64: 8, 32, 32>}, {pipeline_mode = #tpu.pipeline_mode<synchronous>, transform_indices = @transform_5, window_bounds = array<i64: 7, 32>}, {pipeline_mode = #tpu.pipeline_mode<synchronous>, transform_indices = @transform_6, window_bounds = array<i64: 9, 32, 32>}, {pipeline_mode = #tpu.pipeline_mode<synchronous>, transform_indices = @transform_7, window_bounds = array<i64: 1, 32>}, {pipeline_mode = #tpu.pipeline_mode<synchronous>, transform_indices = @transform_8, window_bounds = array<i64: 7, 32, 32>}, {pipeline_mode = #tpu.pipeline_mode<synchronous>, transform_indices = @transform_9, window_bounds = array<i64: 1, 32>}, {pipeline_mode = #tpu.pipeline_mode<synchronous>, transform_indices = @transform_10, window_bounds = array<i64: 5, 32, 32>}, {pipeline_mode = #tpu.pipeline_mode<synchronous>, transform_indices = @transform_11, window_bounds = array<i64: 1, 32>}, {pipeline_mode = #tpu.pipeline_mode<synchronous>, transform_indices = @transform_12, window_bounds = array<i64: 1, 32, 32>}, {pipeline_mode = #tpu.pipeline_mode<synchronous>, transform_indices = @transform_13, window_bounds = array<i64: 1, 32>}, {transform_indices = @transform_14, window_bounds = array<i64: 1, 1, 32>}]} {
    %0 = arith.index_cast %arg0 : i32 to index
    %1 = memref.load %arg1[%0] : memref<2xi32, #tpu.memory_space<smem>>
    %c0 = arith.constant 0 : index
    %c0_0 = arith.constant 0 : index
    %c0_1 = arith.constant 0 : index
    %2 = vector.load %arg2[%c0, %c0_0, %c0_1] : memref<1x4x8xf32, #tpu.memory_space<vmem>>, vector<1x4x8xf32>
    %3 = vector.shape_cast %2 : vector<1x4x8xf32> to vector<4x8xf32>
    %c0_2 = arith.constant 0 : index
    %c0_3 = arith.constant 0 : index
    %4 = vector.load %arg4[%c0_2, %c0_3] : memref<8x32xf32, #tpu.memory_space<vmem>>, vector<8x32xf32>
    %c0_4 = arith.constant 0 : index
    %c0_5 = arith.constant 0 : index
    %5 = vector.load %arg7[%c0_4, %c0_5] : memref<7x32xf32, #tpu.memory_space<vmem>>, vector<1x32xf32>
    %c0_6 = arith.constant 0 : index
    %c0_7 = arith.constant 0 : index
    %c0_8 = arith.constant 0 : index
    %6 = vector.load %arg6[%c0_6, %c0_7, %c0_8] : memref<8x32x32xf32, #tpu.memory_space<vmem>>, vector<1x32x32xf32>
    %7 = vector.shape_cast %6 : vector<1x32x32xf32> to vector<32x32xf32>
    %c1 = arith.constant 1 : index
    %c0_9 = arith.constant 0 : index
    %8 = vector.load %arg7[%c1, %c0_9] : memref<7x32xf32, #tpu.memory_space<vmem>>, vector<1x32xf32>
    %cst = arith.constant dense<0.000000e+00> : vector<4x32xf32>
    %9 = tpu.matmul %3, %4, %cst {dimension_numbers = #tpu.dot_dimension_numbers<[1], [0], [0], [1], [0, 0, 1, 1], [], []>} : vector<4x8xf32>, vector<8x32xf32>, vector<4x32xf32> -> vector<4x32xf32>
    %10 = vector.broadcast %5 : vector<1x32xf32> to vector<4x32xf32>
    %11 = arith.addf %9, %10 : vector<4x32xf32>
    %cst_10 = arith.constant 0.000000e+00 : f32
    %12 = vector.broadcast %cst_10 : f32 to vector<4x32xf32>
    %13 = arith.maximumf %11, %12 : vector<4x32xf32>
    %cst_11 = arith.constant dense<0.000000e+00> : vector<4x32xf32>
    %14 = tpu.matmul %13, %7, %cst_11 {dimension_numbers = #tpu.dot_dimension_numbers<[1], [0], [0], [1], [0, 0, 1, 1], [], []>} : vector<4x32xf32>, vector<32x32xf32>, vector<4x32xf32> -> vector<4x32xf32>
    %15 = vector.broadcast %8 : vector<1x32xf32> to vector<4x32xf32>
    %16 = arith.addf %14, %15 : vector<4x32xf32>
    %cst_12 = arith.constant 0.000000e+00 : f32
    %17 = vector.broadcast %cst_12 : f32 to vector<4x32xf32>
    %18 = arith.maximumf %16, %17 : vector<4x32xf32>
    %19 = tpu.iota {dimensions = array<i32: 0>} : vector<4x32xi32>
    %20 = vector.broadcast %1 : i32 to vector<4x32xi32>
    %21 = arith.cmpi eq, %19, %20 : vector<4x32xi32>
    %22 = arith.extui %21 : vector<4x32xi1> to vector<4x32xi32>
    %23 = arith.sitofp %22 : vector<4x32xi32> to vector<4x32xf32>
    %24 = arith.mulf %23, %18 : vector<4x32xf32>
    %cst_13 = arith.constant dense<0.000000e+00> : vector<32xf32>
    %25 = vector.multi_reduction <add>, %24, %cst_13 [0] : vector<4x32xf32> to vector<32xf32>
    %26 = vector.shape_cast %25 : vector<32xf32> to vector<1x32xf32>
    %c2 = arith.constant 2 : index
    %c0_14 = arith.constant 0 : index
    %c0_15 = arith.constant 0 : index
    %27 = vector.load %arg6[%c2, %c0_14, %c0_15] : memref<8x32x32xf32, #tpu.memory_space<vmem>>, vector<1x32x32xf32>
    %28 = vector.shape_cast %27 : vector<1x32x32xf32> to vector<32x32xf32>
    %cst_16 = arith.constant dense<0.000000e+00> : vector<4x32xf32>
    %29 = tpu.matmul %18, %28, %cst_16 {dimension_numbers = #tpu.dot_dimension_numbers<[1], [0], [0], [1], [0, 0, 1, 1], [], []>} : vector<4x32xf32>, vector<32x32xf32>, vector<4x32xf32> -> vector<4x32xf32>
    %c3 = arith.constant 3 : index
    %c0_17 = arith.constant 0 : index
    %c0_18 = arith.constant 0 : index
    %30 = vector.load %arg6[%c3, %c0_17, %c0_18] : memref<8x32x32xf32, #tpu.memory_space<vmem>>, vector<1x32x32xf32>
    %31 = vector.shape_cast %30 : vector<1x32x32xf32> to vector<32x32xf32>
    %cst_19 = arith.constant dense<0.000000e+00> : vector<1x32xf32>
    %32 = tpu.matmul %26, %31, %cst_19 {dimension_numbers = #tpu.dot_dimension_numbers<[1], [0], [0], [1], [0, 0, 1, 1], [], []>} : vector<1x32xf32>, vector<32x32xf32>, vector<1x32xf32> -> vector<1x32xf32>
    %33 = vector.broadcast %32 : vector<1x32xf32> to vector<4x32xf32>
    %34 = arith.addf %29, %33 : vector<4x32xf32>
    %c4 = arith.constant 4 : index
    %c0_20 = arith.constant 0 : index
    %35 = vector.load %arg7[%c4, %c0_20] : memref<7x32xf32, #tpu.memory_space<vmem>>, vector<1x32xf32>
    %36 = vector.broadcast %35 : vector<1x32xf32> to vector<4x32xf32>
    %37 = arith.addf %34, %36 : vector<4x32xf32>
    %cst_21 = arith.constant 0.000000e+00 : f32
    %38 = vector.broadcast %cst_21 : f32 to vector<4x32xf32>
    %39 = arith.maximumf %37, %38 : vector<4x32xf32>
    %c4_22 = arith.constant 4 : index
    %c0_23 = arith.constant 0 : index
    %c0_24 = arith.constant 0 : index
    %40 = vector.load %arg6[%c4_22, %c0_23, %c0_24] : memref<8x32x32xf32, #tpu.memory_space<vmem>>, vector<1x32x32xf32>
    %41 = vector.shape_cast %40 : vector<1x32x32xf32> to vector<32x32xf32>
    %cst_25 = arith.constant dense<0.000000e+00> : vector<4x32xf32>
    %42 = tpu.matmul %39, %41, %cst_25 {dimension_numbers = #tpu.dot_dimension_numbers<[1], [0], [0], [1], [0, 0, 1, 1], [], []>} : vector<4x32xf32>, vector<32x32xf32>, vector<4x32xf32> -> vector<4x32xf32>
    %c5 = arith.constant 5 : index
    %c0_26 = arith.constant 0 : index
    %43 = vector.load %arg7[%c5, %c0_26] : memref<7x32xf32, #tpu.memory_space<vmem>>, vector<1x32xf32>
    %44 = vector.broadcast %43 : vector<1x32xf32> to vector<4x32xf32>
    %45 = arith.addf %42, %44 : vector<4x32xf32>
    %cst_27 = arith.constant 0.000000e+00 : f32
    %46 = vector.broadcast %cst_27 : f32 to vector<4x32xf32>
    %47 = arith.maximumf %45, %46 : vector<4x32xf32>
    %c7 = arith.constant 7 : index
    %c0_28 = arith.constant 0 : index
    %c0_29 = arith.constant 0 : index
    %48 = vector.load %arg6[%c7, %c0_28, %c0_29] : memref<8x32x32xf32, #tpu.memory_space<vmem>>, vector<1x32x32xf32>
    %49 = vector.shape_cast %48 : vector<1x32x32xf32> to vector<32x32xf32>
    %cst_30 = arith.constant dense<0.000000e+00> : vector<4x32xf32>
    %50 = tpu.matmul %47, %49, %cst_30 {dimension_numbers = #tpu.dot_dimension_numbers<[1], [0], [0], [1], [0, 0, 1, 1], [], []>} : vector<4x32xf32>, vector<32x32xf32>, vector<4x32xf32> -> vector<4x32xf32>
    %c0_31 = arith.constant 0 : index
    %c0_32 = arith.constant 0 : index
    %c0_33 = arith.constant 0 : index
    %c0_34 = arith.constant 0 : index
    %51 = vector.load %arg3[%c0_31, %c0_32, %c0_33, %c0_34] : memref<1x4x16x8xf32, #tpu.memory_space<vmem>>, vector<1x1x16x8xf32>
    %52 = vector.shape_cast %51 : vector<1x1x16x8xf32> to vector<16x8xf32>
    %c0_35 = arith.constant 0 : index
    %c0_36 = arith.constant 0 : index
    %53 = vector.load %arg5[%c0_35, %c0_36] : memref<8x32xf32, #tpu.memory_space<vmem>>, vector<8x32xf32>
    %c2_37 = arith.constant 2 : index
    %c0_38 = arith.constant 0 : index
    %54 = vector.load %arg7[%c2_37, %c0_38] : memref<7x32xf32, #tpu.memory_space<vmem>>, vector<1x32xf32>
    %c1_39 = arith.constant 1 : index
    %c0_40 = arith.constant 0 : index
    %c0_41 = arith.constant 0 : index
    %55 = vector.load %arg6[%c1_39, %c0_40, %c0_41] : memref<8x32x32xf32, #tpu.memory_space<vmem>>, vector<1x32x32xf32>
    %56 = vector.shape_cast %55 : vector<1x32x32xf32> to vector<32x32xf32>
    %c3_42 = arith.constant 3 : index
    %c0_43 = arith.constant 0 : index
    %57 = vector.load %arg7[%c3_42, %c0_43] : memref<7x32xf32, #tpu.memory_space<vmem>>, vector<1x32xf32>
    %cst_44 = arith.constant dense<0.000000e+00> : vector<16x32xf32>
    %58 = tpu.matmul %52, %53, %cst_44 {dimension_numbers = #tpu.dot_dimension_numbers<[1], [0], [0], [1], [0, 0, 1, 1], [], []>} : vector<16x8xf32>, vector<8x32xf32>, vector<16x32xf32> -> vector<16x32xf32>
    %59 = vector.broadcast %54 : vector<1x32xf32> to vector<16x32xf32>
    %60 = arith.addf %58, %59 : vector<16x32xf32>
    %cst_45 = arith.constant 0.000000e+00 : f32
    %61 = vector.broadcast %cst_45 : f32 to vector<16x32xf32>
    %62 = arith.maximumf %60, %61 : vector<16x32xf32>
    %cst_46 = arith.constant dense<0.000000e+00> : vector<16x32xf32>
    %63 = tpu.matmul %62, %56, %cst_46 {dimension_numbers = #tpu.dot_dimension_numbers<[1], [0], [0], [1], [0, 0, 1, 1], [], []>} : vector<16x32xf32>, vector<32x32xf32>, vector<16x32xf32> -> vector<16x32xf32>
    %64 = vector.broadcast %57 : vector<1x32xf32> to vector<16x32xf32>
    %65 = arith.addf %63, %64 : vector<16x32xf32>
    %cst_47 = arith.constant 0.000000e+00 : f32
    %66 = vector.broadcast %cst_47 : f32 to vector<16x32xf32>
    %67 = arith.maximumf %65, %66 : vector<16x32xf32>
    %c0_48 = arith.constant 0 : index
    %c1_49 = arith.constant 1 : index
    %c0_50 = arith.constant 0 : index
    %c0_51 = arith.constant 0 : index
    %68 = vector.load %arg3[%c0_48, %c1_49, %c0_50, %c0_51] : memref<1x4x16x8xf32, #tpu.memory_space<vmem>>, vector<1x1x16x8xf32>
    %69 = vector.shape_cast %68 : vector<1x1x16x8xf32> to vector<16x8xf32>
    %c0_52 = arith.constant 0 : index
    %c0_53 = arith.constant 0 : index
    %70 = vector.load %arg5[%c0_52, %c0_53] : memref<8x32xf32, #tpu.memory_space<vmem>>, vector<8x32xf32>
    %c2_54 = arith.constant 2 : index
    %c0_55 = arith.constant 0 : index
    %71 = vector.load %arg7[%c2_54, %c0_55] : memref<7x32xf32, #tpu.memory_space<vmem>>, vector<1x32xf32>
    %c1_56 = arith.constant 1 : index
    %c0_57 = arith.constant 0 : index
    %c0_58 = arith.constant 0 : index
    %72 = vector.load %arg6[%c1_56, %c0_57, %c0_58] : memref<8x32x32xf32, #tpu.memory_space<vmem>>, vector<1x32x32xf32>
    %73 = vector.shape_cast %72 : vector<1x32x32xf32> to vector<32x32xf32>
    %c3_59 = arith.constant 3 : index
    %c0_60 = arith.constant 0 : index
    %74 = vector.load %arg7[%c3_59, %c0_60] : memref<7x32xf32, #tpu.memory_space<vmem>>, vector<1x32xf32>
    %cst_61 = arith.constant dense<0.000000e+00> : vector<16x32xf32>
    %75 = tpu.matmul %69, %70, %cst_61 {dimension_numbers = #tpu.dot_dimension_numbers<[1], [0], [0], [1], [0, 0, 1, 1], [], []>} : vector<16x8xf32>, vector<8x32xf32>, vector<16x32xf32> -> vector<16x32xf32>
    %76 = vector.broadcast %71 : vector<1x32xf32> to vector<16x32xf32>
    %77 = arith.addf %75, %76 : vector<16x32xf32>
    %cst_62 = arith.constant 0.000000e+00 : f32
    %78 = vector.broadcast %cst_62 : f32 to vector<16x32xf32>
    %79 = arith.maximumf %77, %78 : vector<16x32xf32>
    %cst_63 = arith.constant dense<0.000000e+00> : vector<16x32xf32>
    %80 = tpu.matmul %79, %73, %cst_63 {dimension_numbers = #tpu.dot_dimension_numbers<[1], [0], [0], [1], [0, 0, 1, 1], [], []>} : vector<16x32xf32>, vector<32x32xf32>, vector<16x32xf32> -> vector<16x32xf32>
    %81 = vector.broadcast %74 : vector<1x32xf32> to vector<16x32xf32>
    %82 = arith.addf %80, %81 : vector<16x32xf32>
    %cst_64 = arith.constant 0.000000e+00 : f32
    %83 = vector.broadcast %cst_64 : f32 to vector<16x32xf32>
    %84 = arith.maximumf %82, %83 : vector<16x32xf32>
    %c0_65 = arith.constant 0 : index
    %c2_66 = arith.constant 2 : index
    %c0_67 = arith.constant 0 : index
    %c0_68 = arith.constant 0 : index
    %85 = vector.load %arg3[%c0_65, %c2_66, %c0_67, %c0_68] : memref<1x4x16x8xf32, #tpu.memory_space<vmem>>, vector<1x1x16x8xf32>
    %86 = vector.shape_cast %85 : vector<1x1x16x8xf32> to vector<16x8xf32>
    %c0_69 = arith.constant 0 : index
    %c0_70 = arith.constant 0 : index
    %87 = vector.load %arg5[%c0_69, %c0_70] : memref<8x32xf32, #tpu.memory_space<vmem>>, vector<8x32xf32>
    %c2_71 = arith.constant 2 : index
    %c0_72 = arith.constant 0 : index
    %88 = vector.load %arg7[%c2_71, %c0_72] : memref<7x32xf32, #tpu.memory_space<vmem>>, vector<1x32xf32>
    %c1_73 = arith.constant 1 : index
    %c0_74 = arith.constant 0 : index
    %c0_75 = arith.constant 0 : index
    %89 = vector.load %arg6[%c1_73, %c0_74, %c0_75] : memref<8x32x32xf32, #tpu.memory_space<vmem>>, vector<1x32x32xf32>
    %90 = vector.shape_cast %89 : vector<1x32x32xf32> to vector<32x32xf32>
    %c3_76 = arith.constant 3 : index
    %c0_77 = arith.constant 0 : index
    %91 = vector.load %arg7[%c3_76, %c0_77] : memref<7x32xf32, #tpu.memory_space<vmem>>, vector<1x32xf32>
    %cst_78 = arith.constant dense<0.000000e+00> : vector<16x32xf32>
    %92 = tpu.matmul %86, %87, %cst_78 {dimension_numbers = #tpu.dot_dimension_numbers<[1], [0], [0], [1], [0, 0, 1, 1], [], []>} : vector<16x8xf32>, vector<8x32xf32>, vector<16x32xf32> -> vector<16x32xf32>
    %93 = vector.broadcast %88 : vector<1x32xf32> to vector<16x32xf32>
    %94 = arith.addf %92, %93 : vector<16x32xf32>
    %cst_79 = arith.constant 0.000000e+00 : f32
    %95 = vector.broadcast %cst_79 : f32 to vector<16x32xf32>
    %96 = arith.maximumf %94, %95 : vector<16x32xf32>
    %cst_80 = arith.constant dense<0.000000e+00> : vector<16x32xf32>
    %97 = tpu.matmul %96, %90, %cst_80 {dimension_numbers = #tpu.dot_dimension_numbers<[1], [0], [0], [1], [0, 0, 1, 1], [], []>} : vector<16x32xf32>, vector<32x32xf32>, vector<16x32xf32> -> vector<16x32xf32>
    %98 = vector.broadcast %91 : vector<1x32xf32> to vector<16x32xf32>
    %99 = arith.addf %97, %98 : vector<16x32xf32>
    %cst_81 = arith.constant 0.000000e+00 : f32
    %100 = vector.broadcast %cst_81 : f32 to vector<16x32xf32>
    %101 = arith.maximumf %99, %100 : vector<16x32xf32>
    %c0_82 = arith.constant 0 : index
    %c3_83 = arith.constant 3 : index
    %c0_84 = arith.constant 0 : index
    %c0_85 = arith.constant 0 : index
    %102 = vector.load %arg3[%c0_82, %c3_83, %c0_84, %c0_85] : memref<1x4x16x8xf32, #tpu.memory_space<vmem>>, vector<1x1x16x8xf32>
    %103 = vector.shape_cast %102 : vector<1x1x16x8xf32> to vector<16x8xf32>
    %c0_86 = arith.constant 0 : index
    %c0_87 = arith.constant 0 : index
    %104 = vector.load %arg5[%c0_86, %c0_87] : memref<8x32xf32, #tpu.memory_space<vmem>>, vector<8x32xf32>
    %c2_88 = arith.constant 2 : index
    %c0_89 = arith.constant 0 : index
    %105 = vector.load %arg7[%c2_88, %c0_89] : memref<7x32xf32, #tpu.memory_space<vmem>>, vector<1x32xf32>
    %c1_90 = arith.constant 1 : index
    %c0_91 = arith.constant 0 : index
    %c0_92 = arith.constant 0 : index
    %106 = vector.load %arg6[%c1_90, %c0_91, %c0_92] : memref<8x32x32xf32, #tpu.memory_space<vmem>>, vector<1x32x32xf32>
    %107 = vector.shape_cast %106 : vector<1x32x32xf32> to vector<32x32xf32>
    %c3_93 = arith.constant 3 : index
    %c0_94 = arith.constant 0 : index
    %108 = vector.load %arg7[%c3_93, %c0_94] : memref<7x32xf32, #tpu.memory_space<vmem>>, vector<1x32xf32>
    %cst_95 = arith.constant dense<0.000000e+00> : vector<16x32xf32>
    %109 = tpu.matmul %103, %104, %cst_95 {dimension_numbers = #tpu.dot_dimension_numbers<[1], [0], [0], [1], [0, 0, 1, 1], [], []>} : vector<16x8xf32>, vector<8x32xf32>, vector<16x32xf32> -> vector<16x32xf32>
    %110 = vector.broadcast %105 : vector<1x32xf32> to vector<16x32xf32>
    %111 = arith.addf %109, %110 : vector<16x32xf32>
    %cst_96 = arith.constant 0.000000e+00 : f32
    %112 = vector.broadcast %cst_96 : f32 to vector<16x32xf32>
    %113 = arith.maximumf %111, %112 : vector<16x32xf32>
    %cst_97 = arith.constant dense<0.000000e+00> : vector<16x32xf32>
    %114 = tpu.matmul %113, %107, %cst_97 {dimension_numbers = #tpu.dot_dimension_numbers<[1], [0], [0], [1], [0, 0, 1, 1], [], []>} : vector<16x32xf32>, vector<32x32xf32>, vector<16x32xf32> -> vector<16x32xf32>
    %115 = vector.broadcast %108 : vector<1x32xf32> to vector<16x32xf32>
    %116 = arith.addf %114, %115 : vector<16x32xf32>
    %cst_98 = arith.constant 0.000000e+00 : f32
    %117 = vector.broadcast %cst_98 : f32 to vector<16x32xf32>
    %118 = arith.maximumf %116, %117 : vector<16x32xf32>
    %cst_99 = arith.constant 0.000000e+00 : f32
    %119 = vector.broadcast %cst_99 : f32 to vector<16x32xf32>
    %c0_i32 = arith.constant 0 : i32
    %120 = arith.cmpi eq, %1, %c0_i32 : i32
    %121 = arith.extui %120 : i1 to i32
    %122 = arith.sitofp %121 : i32 to f32
    %123 = vector.broadcast %122 : f32 to vector<16x32xf32>
    %124 = arith.mulf %123, %67 : vector<16x32xf32>
    %125 = arith.addf %119, %124 : vector<16x32xf32>
    %c1_i32 = arith.constant 1 : i32
    %126 = arith.cmpi eq, %1, %c1_i32 : i32
    %127 = arith.extui %126 : i1 to i32
    %128 = arith.sitofp %127 : i32 to f32
    %129 = vector.broadcast %128 : f32 to vector<16x32xf32>
    %130 = arith.mulf %129, %84 : vector<16x32xf32>
    %131 = arith.addf %125, %130 : vector<16x32xf32>
    %c2_i32 = arith.constant 2 : i32
    %132 = arith.cmpi eq, %1, %c2_i32 : i32
    %133 = arith.extui %132 : i1 to i32
    %134 = arith.sitofp %133 : i32 to f32
    %135 = vector.broadcast %134 : f32 to vector<16x32xf32>
    %136 = arith.mulf %135, %101 : vector<16x32xf32>
    %137 = arith.addf %131, %136 : vector<16x32xf32>
    %c3_i32 = arith.constant 3 : i32
    %138 = arith.cmpi eq, %1, %c3_i32 : i32
    %139 = arith.extui %138 : i1 to i32
    %140 = arith.sitofp %139 : i32 to f32
    %141 = vector.broadcast %140 : f32 to vector<16x32xf32>
    %142 = arith.mulf %141, %118 : vector<16x32xf32>
    %143 = arith.addf %137, %142 : vector<16x32xf32>
    %c5_100 = arith.constant 5 : index
    %c0_101 = arith.constant 0 : index
    %c0_102 = arith.constant 0 : index
    %144 = vector.load %arg6[%c5_100, %c0_101, %c0_102] : memref<8x32x32xf32, #tpu.memory_space<vmem>>, vector<1x32x32xf32>
    %145 = vector.shape_cast %144 : vector<1x32x32xf32> to vector<32x32xf32>
    %cst_103 = arith.constant dense<0.000000e+00> : vector<16x32xf32>
    %146 = tpu.matmul %143, %145, %cst_103 {dimension_numbers = #tpu.dot_dimension_numbers<[1], [0], [0], [1], [0, 0, 1, 1], [], []>} : vector<16x32xf32>, vector<32x32xf32>, vector<16x32xf32> -> vector<16x32xf32>
    %c6 = arith.constant 6 : index
    %c0_104 = arith.constant 0 : index
    %147 = vector.load %arg7[%c6, %c0_104] : memref<7x32xf32, #tpu.memory_space<vmem>>, vector<1x32xf32>
    %cst_105 = arith.constant 0.000000e+00 : f32
    %148 = vector.broadcast %cst_105 : f32 to vector<16x32xf32>
    %c6_106 = arith.constant 6 : index
    %c0_107 = arith.constant 0 : index
    %c0_108 = arith.constant 0 : index
    %149 = vector.load %arg6[%c6_106, %c0_107, %c0_108] : memref<8x32x32xf32, #tpu.memory_space<vmem>>, vector<1x32x32xf32>
    %150 = vector.shape_cast %149 : vector<1x32x32xf32> to vector<32x32xf32>
    %cst_109 = arith.constant dense<0.000000e+00> : vector<16x32xf32>
    %151 = tpu.matmul %67, %150, %cst_109 {dimension_numbers = #tpu.dot_dimension_numbers<[1], [0], [0], [1], [0, 0, 1, 1], [], []>} : vector<16x32xf32>, vector<32x32xf32>, vector<16x32xf32> -> vector<16x32xf32>
    %152 = arith.addf %146, %151 : vector<16x32xf32>
    %153 = vector.extract_strided_slice %50 {offsets = [0, 0], sizes = [1, 32], strides = [1, 1]} : vector<4x32xf32> to vector<1x32xf32>
    %154 = vector.broadcast %153 : vector<1x32xf32> to vector<16x32xf32>
    %155 = arith.addf %152, %154 : vector<16x32xf32>
    %156 = vector.broadcast %147 : vector<1x32xf32> to vector<16x32xf32>
    %157 = arith.addf %155, %156 : vector<16x32xf32>
    %cst_110 = arith.constant 0.000000e+00 : f32
    %158 = vector.broadcast %cst_110 : f32 to vector<16x32xf32>
    %159 = arith.maximumf %157, %158 : vector<16x32xf32>
    %160 = arith.addf %148, %159 : vector<16x32xf32>
    %c6_111 = arith.constant 6 : index
    %c0_112 = arith.constant 0 : index
    %c0_113 = arith.constant 0 : index
    %161 = vector.load %arg6[%c6_111, %c0_112, %c0_113] : memref<8x32x32xf32, #tpu.memory_space<vmem>>, vector<1x32x32xf32>
    %162 = vector.shape_cast %161 : vector<1x32x32xf32> to vector<32x32xf32>
    %cst_114 = arith.constant dense<0.000000e+00> : vector<16x32xf32>
    %163 = tpu.matmul %84, %162, %cst_114 {dimension_numbers = #tpu.dot_dimension_numbers<[1], [0], [0], [1], [0, 0, 1, 1], [], []>} : vector<16x32xf32>, vector<32x32xf32>, vector<16x32xf32> -> vector<16x32xf32>
    %164 = arith.addf %146, %163 : vector<16x32xf32>
    %165 = vector.extract_strided_slice %50 {offsets = [1, 0], sizes = [1, 32], strides = [1, 1]} : vector<4x32xf32> to vector<1x32xf32>
    %166 = vector.broadcast %165 : vector<1x32xf32> to vector<16x32xf32>
    %167 = arith.addf %164, %166 : vector<16x32xf32>
    %168 = vector.broadcast %147 : vector<1x32xf32> to vector<16x32xf32>
    %169 = arith.addf %167, %168 : vector<16x32xf32>
    %cst_115 = arith.constant 0.000000e+00 : f32
    %170 = vector.broadcast %cst_115 : f32 to vector<16x32xf32>
    %171 = arith.maximumf %169, %170 : vector<16x32xf32>
    %172 = arith.addf %160, %171 : vector<16x32xf32>
    %c6_116 = arith.constant 6 : index
    %c0_117 = arith.constant 0 : index
    %c0_118 = arith.constant 0 : index
    %173 = vector.load %arg6[%c6_116, %c0_117, %c0_118] : memref<8x32x32xf32, #tpu.memory_space<vmem>>, vector<1x32x32xf32>
    %174 = vector.shape_cast %173 : vector<1x32x32xf32> to vector<32x32xf32>
    %cst_119 = arith.constant dense<0.000000e+00> : vector<16x32xf32>
    %175 = tpu.matmul %101, %174, %cst_119 {dimension_numbers = #tpu.dot_dimension_numbers<[1], [0], [0], [1], [0, 0, 1, 1], [], []>} : vector<16x32xf32>, vector<32x32xf32>, vector<16x32xf32> -> vector<16x32xf32>
    %176 = arith.addf %146, %175 : vector<16x32xf32>
    %177 = vector.extract_strided_slice %50 {offsets = [2, 0], sizes = [1, 32], strides = [1, 1]} : vector<4x32xf32> to vector<1x32xf32>
    %178 = vector.broadcast %177 : vector<1x32xf32> to vector<16x32xf32>
    %179 = arith.addf %176, %178 : vector<16x32xf32>
    %180 = vector.broadcast %147 : vector<1x32xf32> to vector<16x32xf32>
    %181 = arith.addf %179, %180 : vector<16x32xf32>
    %cst_120 = arith.constant 0.000000e+00 : f32
    %182 = vector.broadcast %cst_120 : f32 to vector<16x32xf32>
    %183 = arith.maximumf %181, %182 : vector<16x32xf32>
    %184 = arith.addf %172, %183 : vector<16x32xf32>
    %c6_121 = arith.constant 6 : index
    %c0_122 = arith.constant 0 : index
    %c0_123 = arith.constant 0 : index
    %185 = vector.load %arg6[%c6_121, %c0_122, %c0_123] : memref<8x32x32xf32, #tpu.memory_space<vmem>>, vector<1x32x32xf32>
    %186 = vector.shape_cast %185 : vector<1x32x32xf32> to vector<32x32xf32>
    %cst_124 = arith.constant dense<0.000000e+00> : vector<16x32xf32>
    %187 = tpu.matmul %118, %186, %cst_124 {dimension_numbers = #tpu.dot_dimension_numbers<[1], [0], [0], [1], [0, 0, 1, 1], [], []>} : vector<16x32xf32>, vector<32x32xf32>, vector<16x32xf32> -> vector<16x32xf32>
    %188 = arith.addf %146, %187 : vector<16x32xf32>
    %189 = vector.extract_strided_slice %50 {offsets = [3, 0], sizes = [1, 32], strides = [1, 1]} : vector<4x32xf32> to vector<1x32xf32>
    %190 = vector.broadcast %189 : vector<1x32xf32> to vector<16x32xf32>
    %191 = arith.addf %188, %190 : vector<16x32xf32>
    %192 = vector.broadcast %147 : vector<1x32xf32> to vector<16x32xf32>
    %193 = arith.addf %191, %192 : vector<16x32xf32>
    %cst_125 = arith.constant 0.000000e+00 : f32
    %194 = vector.broadcast %cst_125 : f32 to vector<16x32xf32>
    %195 = arith.maximumf %193, %194 : vector<16x32xf32>
    %196 = arith.addf %184, %195 : vector<16x32xf32>
    %cst_126 = arith.constant 0.000000e+00 : f32
    %197 = vector.broadcast %cst_126 : f32 to vector<32x32xf32>
    %c0_127 = arith.constant 0 : index
    %c0_128 = arith.constant 0 : index
    %198 = vector.load %arg17[%c0_127, %c0_128] : memref<32x32xf32, #tpu.memory_space<vmem>>, vector<32x32xf32>
    tpu.vector_store %arg17[%c0_127, %c0_128], %197 {strides = array<i32>} : memref<32x32xf32, #tpu.memory_space<vmem>>, vector<32x32xf32>,
    %c8 = arith.constant 8 : index
    %c0_129 = arith.constant 0 : index
    %199 = vector.load %arg17[%c8, %c0_129] : memref<32x32xf32, #tpu.memory_space<vmem>>, vector<16x32xf32>
    tpu.vector_store %arg17[%c8, %c0_129], %196 {strides = array<i32>} : memref<32x32xf32, #tpu.memory_space<vmem>>, vector<16x32xf32>,
    %cst_130 = arith.constant 0.000000e+00 : f32
    %200 = vector.broadcast %cst_130 : f32 to vector<6x32xf32>
    %c4_131 = arith.constant 4 : index
    %c0_132 = arith.constant 0 : index
    %201 = tpu.strided_load %arg17[%c4_131, %c0_132] {strides = array<i32: 3, 1>} : memref<32x32xf32, #tpu.memory_space<vmem>>, vector<6x32xf32>
    %c0_133 = arith.constant 0 : index
    %c0_134 = arith.constant 0 : index
    %c0_135 = arith.constant 0 : index
    %202 = vector.load %arg8[%c0_133, %c0_134, %c0_135] : memref<9x32x32xf32, #tpu.memory_space<vmem>>, vector<1x32x32xf32>
    %203 = vector.shape_cast %202 : vector<1x32x32xf32> to vector<32x32xf32>
    %cst_136 = arith.constant dense<0.000000e+00> : vector<6x32xf32>
    %204 = tpu.matmul %201, %203, %cst_136 {dimension_numbers = #tpu.dot_dimension_numbers<[1], [0], [0], [1], [0, 0, 1, 1], [], []>} : vector<6x32xf32>, vector<32x32xf32>, vector<6x32xf32> -> vector<6x32xf32>
    %205 = arith.addf %200, %204 : vector<6x32xf32>
    %c5_137 = arith.constant 5 : index
    %c0_138 = arith.constant 0 : index
    %206 = tpu.strided_load %arg17[%c5_137, %c0_138] {strides = array<i32: 3, 1>} : memref<32x32xf32, #tpu.memory_space<vmem>>, vector<6x32xf32>
    %c1_139 = arith.constant 1 : index
    %c0_140 = arith.constant 0 : index
    %c0_141 = arith.constant 0 : index
    %207 = vector.load %arg8[%c1_139, %c0_140, %c0_141] : memref<9x32x32xf32, #tpu.memory_space<vmem>>, vector<1x32x32xf32>
    %208 = vector.shape_cast %207 : vector<1x32x32xf32> to vector<32x32xf32>
    %cst_142 = arith.constant dense<0.000000e+00> : vector<6x32xf32>
    %209 = tpu.matmul %206, %208, %cst_142 {dimension_numbers = #tpu.dot_dimension_numbers<[1], [0], [0], [1], [0, 0, 1, 1], [], []>} : vector<6x32xf32>, vector<32x32xf32>, vector<6x32xf32> -> vector<6x32xf32>
    %210 = arith.addf %205, %209 : vector<6x32xf32>
    %c6_143 = arith.constant 6 : index
    %c0_144 = arith.constant 0 : index
    %211 = tpu.strided_load %arg17[%c6_143, %c0_144] {strides = array<i32: 3, 1>} : memref<32x32xf32, #tpu.memory_space<vmem>>, vector<6x32xf32>
    %c2_145 = arith.constant 2 : index
    %c0_146 = arith.constant 0 : index
    %c0_147 = arith.constant 0 : index
    %212 = vector.load %arg8[%c2_145, %c0_146, %c0_147] : memref<9x32x32xf32, #tpu.memory_space<vmem>>, vector<1x32x32xf32>
    %213 = vector.shape_cast %212 : vector<1x32x32xf32> to vector<32x32xf32>
    %cst_148 = arith.constant dense<0.000000e+00> : vector<6x32xf32>
    %214 = tpu.matmul %211, %213, %cst_148 {dimension_numbers = #tpu.dot_dimension_numbers<[1], [0], [0], [1], [0, 0, 1, 1], [], []>} : vector<6x32xf32>, vector<32x32xf32>, vector<6x32xf32> -> vector<6x32xf32>
    %215 = arith.addf %210, %214 : vector<6x32xf32>
    %c7_149 = arith.constant 7 : index
    %c0_150 = arith.constant 0 : index
    %216 = tpu.strided_load %arg17[%c7_149, %c0_150] {strides = array<i32: 3, 1>} : memref<32x32xf32, #tpu.memory_space<vmem>>, vector<6x32xf32>
    %c3_151 = arith.constant 3 : index
    %c0_152 = arith.constant 0 : index
    %c0_153 = arith.constant 0 : index
    %217 = vector.load %arg8[%c3_151, %c0_152, %c0_153] : memref<9x32x32xf32, #tpu.memory_space<vmem>>, vector<1x32x32xf32>
    %218 = vector.shape_cast %217 : vector<1x32x32xf32> to vector<32x32xf32>
    %cst_154 = arith.constant dense<0.000000e+00> : vector<6x32xf32>
    %219 = tpu.matmul %216, %218, %cst_154 {dimension_numbers = #tpu.dot_dimension_numbers<[1], [0], [0], [1], [0, 0, 1, 1], [], []>} : vector<6x32xf32>, vector<32x32xf32>, vector<6x32xf32> -> vector<6x32xf32>
    %220 = arith.addf %215, %219 : vector<6x32xf32>
    %c8_155 = arith.constant 8 : index
    %c0_156 = arith.constant 0 : index
    %221 = tpu.strided_load %arg17[%c8_155, %c0_156] {strides = array<i32: 3, 1>} : memref<32x32xf32, #tpu.memory_space<vmem>>, vector<6x32xf32>
    %c4_157 = arith.constant 4 : index
    %c0_158 = arith.constant 0 : index
    %c0_159 = arith.constant 0 : index
    %222 = vector.load %arg8[%c4_157, %c0_158, %c0_159] : memref<9x32x32xf32, #tpu.memory_space<vmem>>, vector<1x32x32xf32>
    %223 = vector.shape_cast %222 : vector<1x32x32xf32> to vector<32x32xf32>
    %cst_160 = arith.constant dense<0.000000e+00> : vector<6x32xf32>
    %224 = tpu.matmul %221, %223, %cst_160 {dimension_numbers = #tpu.dot_dimension_numbers<[1], [0], [0], [1], [0, 0, 1, 1], [], []>} : vector<6x32xf32>, vector<32x32xf32>, vector<6x32xf32> -> vector<6x32xf32>
    %225 = arith.addf %220, %224 : vector<6x32xf32>
    %c9 = arith.constant 9 : index
    %c0_161 = arith.constant 0 : index
    %226 = tpu.strided_load %arg17[%c9, %c0_161] {strides = array<i32: 3, 1>} : memref<32x32xf32, #tpu.memory_space<vmem>>, vector<6x32xf32>
    %c5_162 = arith.constant 5 : index
    %c0_163 = arith.constant 0 : index
    %c0_164 = arith.constant 0 : index
    %227 = vector.load %arg8[%c5_162, %c0_163, %c0_164] : memref<9x32x32xf32, #tpu.memory_space<vmem>>, vector<1x32x32xf32>
    %228 = vector.shape_cast %227 : vector<1x32x32xf32> to vector<32x32xf32>
    %cst_165 = arith.constant dense<0.000000e+00> : vector<6x32xf32>
    %229 = tpu.matmul %226, %228, %cst_165 {dimension_numbers = #tpu.dot_dimension_numbers<[1], [0], [0], [1], [0, 0, 1, 1], [], []>} : vector<6x32xf32>, vector<32x32xf32>, vector<6x32xf32> -> vector<6x32xf32>
    %230 = arith.addf %225, %229 : vector<6x32xf32>
    %c10 = arith.constant 10 : index
    %c0_166 = arith.constant 0 : index
    %231 = tpu.strided_load %arg17[%c10, %c0_166] {strides = array<i32: 3, 1>} : memref<32x32xf32, #tpu.memory_space<vmem>>, vector<6x32xf32>
    %c6_167 = arith.constant 6 : index
    %c0_168 = arith.constant 0 : index
    %c0_169 = arith.constant 0 : index
    %232 = vector.load %arg8[%c6_167, %c0_168, %c0_169] : memref<9x32x32xf32, #tpu.memory_space<vmem>>, vector<1x32x32xf32>
    %233 = vector.shape_cast %232 : vector<1x32x32xf32> to vector<32x32xf32>
    %cst_170 = arith.constant dense<0.000000e+00> : vector<6x32xf32>
    %234 = tpu.matmul %231, %233, %cst_170 {dimension_numbers = #tpu.dot_dimension_numbers<[1], [0], [0], [1], [0, 0, 1, 1], [], []>} : vector<6x32xf32>, vector<32x32xf32>, vector<6x32xf32> -> vector<6x32xf32>
    %235 = arith.addf %230, %234 : vector<6x32xf32>
    %c11 = arith.constant 11 : index
    %c0_171 = arith.constant 0 : index
    %236 = tpu.strided_load %arg17[%c11, %c0_171] {strides = array<i32: 3, 1>} : memref<32x32xf32, #tpu.memory_space<vmem>>, vector<6x32xf32>
    %c7_172 = arith.constant 7 : index
    %c0_173 = arith.constant 0 : index
    %c0_174 = arith.constant 0 : index
    %237 = vector.load %arg8[%c7_172, %c0_173, %c0_174] : memref<9x32x32xf32, #tpu.memory_space<vmem>>, vector<1x32x32xf32>
    %238 = vector.shape_cast %237 : vector<1x32x32xf32> to vector<32x32xf32>
    %cst_175 = arith.constant dense<0.000000e+00> : vector<6x32xf32>
    %239 = tpu.matmul %236, %238, %cst_175 {dimension_numbers = #tpu.dot_dimension_numbers<[1], [0], [0], [1], [0, 0, 1, 1], [], []>} : vector<6x32xf32>, vector<32x32xf32>, vector<6x32xf32> -> vector<6x32xf32>
    %240 = arith.addf %235, %239 : vector<6x32xf32>
    %c12 = arith.constant 12 : index
    %c0_176 = arith.constant 0 : index
    %241 = tpu.strided_load %arg17[%c12, %c0_176] {strides = array<i32: 3, 1>} : memref<32x32xf32, #tpu.memory_space<vmem>>, vector<6x32xf32>
    %c8_177 = arith.constant 8 : index
    %c0_178 = arith.constant 0 : index
    %c0_179 = arith.constant 0 : index
    %242 = vector.load %arg8[%c8_177, %c0_178, %c0_179] : memref<9x32x32xf32, #tpu.memory_space<vmem>>, vector<1x32x32xf32>
    %243 = vector.shape_cast %242 : vector<1x32x32xf32> to vector<32x32xf32>
    %cst_180 = arith.constant dense<0.000000e+00> : vector<6x32xf32>
    %244 = tpu.matmul %241, %243, %cst_180 {dimension_numbers = #tpu.dot_dimension_numbers<[1], [0], [0], [1], [0, 0, 1, 1], [], []>} : vector<6x32xf32>, vector<32x32xf32>, vector<6x32xf32> -> vector<6x32xf32>
    %245 = arith.addf %240, %244 : vector<6x32xf32>
    %c0_181 = arith.constant 0 : index
    %c0_182 = arith.constant 0 : index
    %246 = vector.load %arg9[%c0_181, %c0_182] : memref<1x32xf32, #tpu.memory_space<vmem>>, vector<1x32xf32>
    %247 = vector.broadcast %246 : vector<1x32xf32> to vector<6x32xf32>
    %248 = arith.addf %245, %247 : vector<6x32xf32>
    %cst_183 = arith.constant 0.000000e+00 : f32
    %249 = vector.broadcast %cst_183 : f32 to vector<6x32xf32>
    %250 = arith.maximumf %248, %249 : vector<6x32xf32>
    %cst_184 = arith.constant 0.000000e+00 : f32
    %251 = vector.broadcast %cst_184 : f32 to vector<32x32xf32>
    %c0_185 = arith.constant 0 : index
    %c0_186 = arith.constant 0 : index
    %252 = vector.load %arg17[%c0_185, %c0_186] : memref<32x32xf32, #tpu.memory_space<vmem>>, vector<32x32xf32>
    tpu.vector_store %arg17[%c0_185, %c0_186], %251 {strides = array<i32>} : memref<32x32xf32, #tpu.memory_space<vmem>>, vector<32x32xf32>,
    %c8_187 = arith.constant 8 : index
    %c0_188 = arith.constant 0 : index
    %253 = vector.load %arg17[%c8_187, %c0_188] : memref<32x32xf32, #tpu.memory_space<vmem>>, vector<6x32xf32>
    tpu.vector_store %arg17[%c8_187, %c0_188], %250 {strides = array<i32>} : memref<32x32xf32, #tpu.memory_space<vmem>>, vector<6x32xf32>,
    %cst_189 = arith.constant 0.000000e+00 : f32
    %254 = vector.broadcast %cst_189 : f32 to vector<3x32xf32>
    %c5_190 = arith.constant 5 : index
    %c0_191 = arith.constant 0 : index
    %255 = tpu.strided_load %arg17[%c5_190, %c0_191] {strides = array<i32: 2, 1>} : memref<32x32xf32, #tpu.memory_space<vmem>>, vector<3x32xf32>
    %c0_192 = arith.constant 0 : index
    %c0_193 = arith.constant 0 : index
    %c0_194 = arith.constant 0 : index
    %256 = vector.load %arg10[%c0_192, %c0_193, %c0_194] : memref<7x32x32xf32, #tpu.memory_space<vmem>>, vector<1x32x32xf32>
    %257 = vector.shape_cast %256 : vector<1x32x32xf32> to vector<32x32xf32>
    %cst_195 = arith.constant dense<0.000000e+00> : vector<3x32xf32>
    %258 = tpu.matmul %255, %257, %cst_195 {dimension_numbers = #tpu.dot_dimension_numbers<[1], [0], [0], [1], [0, 0, 1, 1], [], []>} : vector<3x32xf32>, vector<32x32xf32>, vector<3x32xf32> -> vector<3x32xf32>
    %259 = arith.addf %254, %258 : vector<3x32xf32>
    %c6_196 = arith.constant 6 : index
    %c0_197 = arith.constant 0 : index
    %260 = tpu.strided_load %arg17[%c6_196, %c0_197] {strides = array<i32: 2, 1>} : memref<32x32xf32, #tpu.memory_space<vmem>>, vector<3x32xf32>
    %c1_198 = arith.constant 1 : index
    %c0_199 = arith.constant 0 : index
    %c0_200 = arith.constant 0 : index
    %261 = vector.load %arg10[%c1_198, %c0_199, %c0_200] : memref<7x32x32xf32, #tpu.memory_space<vmem>>, vector<1x32x32xf32>
    %262 = vector.shape_cast %261 : vector<1x32x32xf32> to vector<32x32xf32>
    %cst_201 = arith.constant dense<0.000000e+00> : vector<3x32xf32>
    %263 = tpu.matmul %260, %262, %cst_201 {dimension_numbers = #tpu.dot_dimension_numbers<[1], [0], [0], [1], [0, 0, 1, 1], [], []>} : vector<3x32xf32>, vector<32x32xf32>, vector<3x32xf32> -> vector<3x32xf32>
    %264 = arith.addf %259, %263 : vector<3x32xf32>
    %c7_202 = arith.constant 7 : index
    %c0_203 = arith.constant 0 : index
    %265 = tpu.strided_load %arg17[%c7_202, %c0_203] {strides = array<i32: 2, 1>} : memref<32x32xf32, #tpu.memory_space<vmem>>, vector<3x32xf32>
    %c2_204 = arith.constant 2 : index
    %c0_205 = arith.constant 0 : index
    %c0_206 = arith.constant 0 : index
    %266 = vector.load %arg10[%c2_204, %c0_205, %c0_206] : memref<7x32x32xf32, #tpu.memory_space<vmem>>, vector<1x32x32xf32>
    %267 = vector.shape_cast %266 : vector<1x32x32xf32> to vector<32x32xf32>
    %cst_207 = arith.constant dense<0.000000e+00> : vector<3x32xf32>
    %268 = tpu.matmul %265, %267, %cst_207 {dimension_numbers = #tpu.dot_dimension_numbers<[1], [0], [0], [1], [0, 0, 1, 1], [], []>} : vector<3x32xf32>, vector<32x32xf32>, vector<3x32xf32> -> vector<3x32xf32>
    %269 = arith.addf %264, %268 : vector<3x32xf32>
    %c8_208 = arith.constant 8 : index
    %c0_209 = arith.constant 0 : index
    %270 = tpu.strided_load %arg17[%c8_208, %c0_209] {strides = array<i32: 2, 1>} : memref<32x32xf32, #tpu.memory_space<vmem>>, vector<3x32xf32>
    %c3_210 = arith.constant 3 : index
    %c0_211 = arith.constant 0 : index
    %c0_212 = arith.constant 0 : index
    %271 = vector.load %arg10[%c3_210, %c0_211, %c0_212] : memref<7x32x32xf32, #tpu.memory_space<vmem>>, vector<1x32x32xf32>
    %272 = vector.shape_cast %271 : vector<1x32x32xf32> to vector<32x32xf32>
    %cst_213 = arith.constant dense<0.000000e+00> : vector<3x32xf32>
    %273 = tpu.matmul %270, %272, %cst_213 {dimension_numbers = #tpu.dot_dimension_numbers<[1], [0], [0], [1], [0, 0, 1, 1], [], []>} : vector<3x32xf32>, vector<32x32xf32>, vector<3x32xf32> -> vector<3x32xf32>
    %274 = arith.addf %269, %273 : vector<3x32xf32>
    %c9_214 = arith.constant 9 : index
    %c0_215 = arith.constant 0 : index
    %275 = tpu.strided_load %arg17[%c9_214, %c0_215] {strides = array<i32: 2, 1>} : memref<32x32xf32, #tpu.memory_space<vmem>>, vector<3x32xf32>
    %c4_216 = arith.constant 4 : index
    %c0_217 = arith.constant 0 : index
    %c0_218 = arith.constant 0 : index
    %276 = vector.load %arg10[%c4_216, %c0_217, %c0_218] : memref<7x32x32xf32, #tpu.memory_space<vmem>>, vector<1x32x32xf32>
    %277 = vector.shape_cast %276 : vector<1x32x32xf32> to vector<32x32xf32>
    %cst_219 = arith.constant dense<0.000000e+00> : vector<3x32xf32>
    %278 = tpu.matmul %275, %277, %cst_219 {dimension_numbers = #tpu.dot_dimension_numbers<[1], [0], [0], [1], [0, 0, 1, 1], [], []>} : vector<3x32xf32>, vector<32x32xf32>, vector<3x32xf32> -> vector<3x32xf32>
    %279 = arith.addf %274, %278 : vector<3x32xf32>
    %c10_220 = arith.constant 10 : index
    %c0_221 = arith.constant 0 : index
    %280 = tpu.strided_load %arg17[%c10_220, %c0_221] {strides = array<i32: 2, 1>} : memref<32x32xf32, #tpu.memory_space<vmem>>, vector<3x32xf32>
    %c5_222 = arith.constant 5 : index
    %c0_223 = arith.constant 0 : index
    %c0_224 = arith.constant 0 : index
    %281 = vector.load %arg10[%c5_222, %c0_223, %c0_224] : memref<7x32x32xf32, #tpu.memory_space<vmem>>, vector<1x32x32xf32>
    %282 = vector.shape_cast %281 : vector<1x32x32xf32> to vector<32x32xf32>
    %cst_225 = arith.constant dense<0.000000e+00> : vector<3x32xf32>
    %283 = tpu.matmul %280, %282, %cst_225 {dimension_numbers = #tpu.dot_dimension_numbers<[1], [0], [0], [1], [0, 0, 1, 1], [], []>} : vector<3x32xf32>, vector<32x32xf32>, vector<3x32xf32> -> vector<3x32xf32>
    %284 = arith.addf %279, %283 : vector<3x32xf32>
    %c11_226 = arith.constant 11 : index
    %c0_227 = arith.constant 0 : index
    %285 = tpu.strided_load %arg17[%c11_226, %c0_227] {strides = array<i32: 2, 1>} : memref<32x32xf32, #tpu.memory_space<vmem>>, vector<3x32xf32>
    %c6_228 = arith.constant 6 : index
    %c0_229 = arith.constant 0 : index
    %c0_230 = arith.constant 0 : index
    %286 = vector.load %arg10[%c6_228, %c0_229, %c0_230] : memref<7x32x32xf32, #tpu.memory_space<vmem>>, vector<1x32x32xf32>
    %287 = vector.shape_cast %286 : vector<1x32x32xf32> to vector<32x32xf32>
    %cst_231 = arith.constant dense<0.000000e+00> : vector<3x32xf32>
    %288 = tpu.matmul %285, %287, %cst_231 {dimension_numbers = #tpu.dot_dimension_numbers<[1], [0], [0], [1], [0, 0, 1, 1], [], []>} : vector<3x32xf32>, vector<32x32xf32>, vector<3x32xf32> -> vector<3x32xf32>
    %289 = arith.addf %284, %288 : vector<3x32xf32>
    %c0_232 = arith.constant 0 : index
    %c0_233 = arith.constant 0 : index
    %290 = vector.load %arg11[%c0_232, %c0_233] : memref<1x32xf32, #tpu.memory_space<vmem>>, vector<1x32xf32>
    %291 = vector.broadcast %290 : vector<1x32xf32> to vector<3x32xf32>
    %292 = arith.addf %289, %291 : vector<3x32xf32>
    %cst_234 = arith.constant 0.000000e+00 : f32
    %293 = vector.broadcast %cst_234 : f32 to vector<3x32xf32>
    %294 = arith.maximumf %292, %293 : vector<3x32xf32>
    %cst_235 = arith.constant 0.000000e+00 : f32
    %295 = vector.broadcast %cst_235 : f32 to vector<32x32xf32>
    %c0_236 = arith.constant 0 : index
    %c0_237 = arith.constant 0 : index
    %296 = vector.load %arg17[%c0_236, %c0_237] : memref<32x32xf32, #tpu.memory_space<vmem>>, vector<32x32xf32>
    tpu.vector_store %arg17[%c0_236, %c0_237], %295 {strides = array<i32>} : memref<32x32xf32, #tpu.memory_space<vmem>>, vector<32x32xf32>,
    %c8_238 = arith.constant 8 : index
    %c0_239 = arith.constant 0 : index
    %297 = vector.load %arg17[%c8_238, %c0_239] : memref<32x32xf32, #tpu.memory_space<vmem>>, vector<3x32xf32>
    tpu.vector_store %arg17[%c8_238, %c0_239], %294 {strides = array<i32>} : memref<32x32xf32, #tpu.memory_space<vmem>>, vector<3x32xf32>,
    %cst_240 = arith.constant 0.000000e+00 : f32
    %298 = vector.broadcast %cst_240 : f32 to vector<2x32xf32>
    %c6_241 = arith.constant 6 : index
    %c0_242 = arith.constant 0 : index
    %299 = tpu.strided_load %arg17[%c6_241, %c0_242] {strides = array<i32: 2, 1>} : memref<32x32xf32, #tpu.memory_space<vmem>>, vector<2x32xf32>
    %c0_243 = arith.constant 0 : index
    %c0_244 = arith.constant 0 : index
    %c0_245 = arith.constant 0 : index
    %300 = vector.load %arg12[%c0_243, %c0_244, %c0_245] : memref<5x32x32xf32, #tpu.memory_space<vmem>>, vector<1x32x32xf32>
    %301 = vector.shape_cast %300 : vector<1x32x32xf32> to vector<32x32xf32>
    %cst_246 = arith.constant dense<0.000000e+00> : vector<2x32xf32>
    %302 = tpu.matmul %299, %301, %cst_246 {dimension_numbers = #tpu.dot_dimension_numbers<[1], [0], [0], [1], [0, 0, 1, 1], [], []>} : vector<2x32xf32>, vector<32x32xf32>, vector<2x32xf32> -> vector<2x32xf32>
    %303 = arith.addf %298, %302 : vector<2x32xf32>
    %c7_247 = arith.constant 7 : index
    %c0_248 = arith.constant 0 : index
    %304 = tpu.strided_load %arg17[%c7_247, %c0_248] {strides = array<i32: 2, 1>} : memref<32x32xf32, #tpu.memory_space<vmem>>, vector<2x32xf32>
    %c1_249 = arith.constant 1 : index
    %c0_250 = arith.constant 0 : index
    %c0_251 = arith.constant 0 : index
    %305 = vector.load %arg12[%c1_249, %c0_250, %c0_251] : memref<5x32x32xf32, #tpu.memory_space<vmem>>, vector<1x32x32xf32>
    %306 = vector.shape_cast %305 : vector<1x32x32xf32> to vector<32x32xf32>
    %cst_252 = arith.constant dense<0.000000e+00> : vector<2x32xf32>
    %307 = tpu.matmul %304, %306, %cst_252 {dimension_numbers = #tpu.dot_dimension_numbers<[1], [0], [0], [1], [0, 0, 1, 1], [], []>} : vector<2x32xf32>, vector<32x32xf32>, vector<2x32xf32> -> vector<2x32xf32>
    %308 = arith.addf %303, %307 : vector<2x32xf32>
    %c8_253 = arith.constant 8 : index
    %c0_254 = arith.constant 0 : index
    %309 = tpu.strided_load %arg17[%c8_253, %c0_254] {strides = array<i32: 2, 1>} : memref<32x32xf32, #tpu.memory_space<vmem>>, vector<2x32xf32>
    %c2_255 = arith.constant 2 : index
    %c0_256 = arith.constant 0 : index
    %c0_257 = arith.constant 0 : index
    %310 = vector.load %arg12[%c2_255, %c0_256, %c0_257] : memref<5x32x32xf32, #tpu.memory_space<vmem>>, vector<1x32x32xf32>
    %311 = vector.shape_cast %310 : vector<1x32x32xf32> to vector<32x32xf32>
    %cst_258 = arith.constant dense<0.000000e+00> : vector<2x32xf32>
    %312 = tpu.matmul %309, %311, %cst_258 {dimension_numbers = #tpu.dot_dimension_numbers<[1], [0], [0], [1], [0, 0, 1, 1], [], []>} : vector<2x32xf32>, vector<32x32xf32>, vector<2x32xf32> -> vector<2x32xf32>
    %313 = arith.addf %308, %312 : vector<2x32xf32>
    %c9_259 = arith.constant 9 : index
    %c0_260 = arith.constant 0 : index
    %314 = tpu.strided_load %arg17[%c9_259, %c0_260] {strides = array<i32: 2, 1>} : memref<32x32xf32, #tpu.memory_space<vmem>>, vector<2x32xf32>
    %c3_261 = arith.constant 3 : index
    %c0_262 = arith.constant 0 : index
    %c0_263 = arith.constant 0 : index
    %315 = vector.load %arg12[%c3_261, %c0_262, %c0_263] : memref<5x32x32xf32, #tpu.memory_space<vmem>>, vector<1x32x32xf32>
    %316 = vector.shape_cast %315 : vector<1x32x32xf32> to vector<32x32xf32>
    %cst_264 = arith.constant dense<0.000000e+00> : vector<2x32xf32>
    %317 = tpu.matmul %314, %316, %cst_264 {dimension_numbers = #tpu.dot_dimension_numbers<[1], [0], [0], [1], [0, 0, 1, 1], [], []>} : vector<2x32xf32>, vector<32x32xf32>, vector<2x32xf32> -> vector<2x32xf32>
    %318 = arith.addf %313, %317 : vector<2x32xf32>
    %c10_265 = arith.constant 10 : index
    %c0_266 = arith.constant 0 : index
    %319 = tpu.strided_load %arg17[%c10_265, %c0_266] {strides = array<i32: 2, 1>} : memref<32x32xf32, #tpu.memory_space<vmem>>, vector<2x32xf32>
    %c4_267 = arith.constant 4 : index
    %c0_268 = arith.constant 0 : index
    %c0_269 = arith.constant 0 : index
    %320 = vector.load %arg12[%c4_267, %c0_268, %c0_269] : memref<5x32x32xf32, #tpu.memory_space<vmem>>, vector<1x32x32xf32>
    %321 = vector.shape_cast %320 : vector<1x32x32xf32> to vector<32x32xf32>
    %cst_270 = arith.constant dense<0.000000e+00> : vector<2x32xf32>
    %322 = tpu.matmul %319, %321, %cst_270 {dimension_numbers = #tpu.dot_dimension_numbers<[1], [0], [0], [1], [0, 0, 1, 1], [], []>} : vector<2x32xf32>, vector<32x32xf32>, vector<2x32xf32> -> vector<2x32xf32>
    %323 = arith.addf %318, %322 : vector<2x32xf32>
    %c0_271 = arith.constant 0 : index
    %c0_272 = arith.constant 0 : index
    %324 = vector.load %arg13[%c0_271, %c0_272] : memref<1x32xf32, #tpu.memory_space<vmem>>, vector<1x32xf32>
    %325 = vector.broadcast %324 : vector<1x32xf32> to vector<2x32xf32>
    %326 = arith.addf %323, %325 : vector<2x32xf32>
    %cst_273 = arith.constant 0.000000e+00 : f32
    %327 = vector.broadcast %cst_273 : f32 to vector<2x32xf32>
    %328 = arith.maximumf %326, %327 : vector<2x32xf32>
    %cst_274 = arith.constant 0.000000e+00 : f32
    %329 = vector.broadcast %cst_274 : f32 to vector<32x32xf32>
    %c0_275 = arith.constant 0 : index
    %c0_276 = arith.constant 0 : index
    %330 = vector.load %arg17[%c0_275, %c0_276] : memref<32x32xf32, #tpu.memory_space<vmem>>, vector<32x32xf32>
    tpu.vector_store %arg17[%c0_275, %c0_276], %329 {strides = array<i32>} : memref<32x32xf32, #tpu.memory_space<vmem>>, vector<32x32xf32>,
    %c8_277 = arith.constant 8 : index
    %c0_278 = arith.constant 0 : index
    %331 = vector.load %arg17[%c8_277, %c0_278] : memref<32x32xf32, #tpu.memory_space<vmem>>, vector<2x32xf32>
    tpu.vector_store %arg17[%c8_277, %c0_278], %328 {strides = array<i32>} : memref<32x32xf32, #tpu.memory_space<vmem>>, vector<2x32xf32>,
    %cst_279 = arith.constant 0.000000e+00 : f32
    %332 = vector.broadcast %cst_279 : f32 to vector<2x32xf32>
    %c8_280 = arith.constant 8 : index
    %c0_281 = arith.constant 0 : index
    %333 = vector.load %arg17[%c8_280, %c0_281] : memref<32x32xf32, #tpu.memory_space<vmem>>, vector<2x32xf32>
    %c0_282 = arith.constant 0 : index
    %c0_283 = arith.constant 0 : index
    %c0_284 = arith.constant 0 : index
    %334 = vector.load %arg14[%c0_282, %c0_283, %c0_284] : memref<1x32x32xf32, #tpu.memory_space<vmem>>, vector<1x32x32xf32>
    %335 = vector.shape_cast %334 : vector<1x32x32xf32> to vector<32x32xf32>
    %cst_285 = arith.constant dense<0.000000e+00> : vector<2x32xf32>
    %336 = tpu.matmul %333, %335, %cst_285 {dimension_numbers = #tpu.dot_dimension_numbers<[1], [0], [0], [1], [0, 0, 1, 1], [], []>} : vector<2x32xf32>, vector<32x32xf32>, vector<2x32xf32> -> vector<2x32xf32>
    %337 = arith.addf %332, %336 : vector<2x32xf32>
    %c0_286 = arith.constant 0 : index
    %c0_287 = arith.constant 0 : index
    %338 = vector.load %arg15[%c0_286, %c0_287] : memref<1x32xf32, #tpu.memory_space<vmem>>, vector<1x32xf32>
    %339 = vector.broadcast %338 : vector<1x32xf32> to vector<2x32xf32>
    %340 = arith.addf %337, %339 : vector<2x32xf32>
    %341 = vector.extract_strided_slice %340 {offsets = [1, 0], sizes = [1, 32], strides = [1, 1]} : vector<2x32xf32> to vector<1x32xf32>
    %c0_288 = arith.constant 0 : index
    %c0_289 = arith.constant 0 : index
    %c0_290 = arith.constant 0 : index
    %342 = vector.load %arg16[%c0_288, %c0_289, %c0_290] : memref<1x1x32xf32, #tpu.memory_space<vmem>>, vector<1x1x32xf32>
    %343 = vector.shape_cast %342 : vector<1x1x32xf32> to vector<1x32xf32>
    %344 = vector.shape_cast %341 : vector<1x32xf32> to vector<1x1x32xf32>
    tpu.vector_store %arg16[%c0_288, %c0_289, %c0_290], %344 {strides = array<i32>} : memref<1x1x32xf32, #tpu.memory_space<vmem>>, vector<1x1x32xf32>,
    return
  }
  func.func @transform_0(%arg0: i32, %arg1: memref<2xi32, #tpu.memory_space<smem>>) -> (i32, i32, i32) {
    %c0_i32 = arith.constant 0 : i32
    %c0_i32_0 = arith.constant 0 : i32
    %c0_i32_1 = arith.constant 0 : i32
    return %arg0, %c0_i32, %c0_i32_0 : i32, i32, i32
  }
  func.func @transform_1(%arg0: i32, %arg1: memref<2xi32, #tpu.memory_space<smem>>) -> (i32, i32, i32, i32) {
    %c0_i32 = arith.constant 0 : i32
    %c0_i32_0 = arith.constant 0 : i32
    %c0_i32_1 = arith.constant 0 : i32
    %c0_i32_2 = arith.constant 0 : i32
    return %arg0, %c0_i32, %c0_i32_0, %c0_i32_1 : i32, i32, i32, i32
  }
  func.func @transform_2(%arg0: i32, %arg1: memref<2xi32, #tpu.memory_space<smem>>) -> (i32, i32) {
    %c0_i32 = arith.constant 0 : i32
    %c0_i32_0 = arith.constant 0 : i32
    %c0_i32_1 = arith.constant 0 : i32
    return %c0_i32, %c0_i32_0 : i32, i32
  }
  func.func @transform_3(%arg0: i32, %arg1: memref<2xi32, #tpu.memory_space<smem>>) -> (i32, i32) {
    %c0_i32 = arith.constant 0 : i32
    %c0_i32_0 = arith.constant 0 : i32
    %c0_i32_1 = arith.constant 0 : i32
    return %c0_i32, %c0_i32_0 : i32, i32
  }
  func.func @transform_4(%arg0: i32, %arg1: memref<2xi32, #tpu.memory_space<smem>>) -> (i32, i32, i32) {
    %c0_i32 = arith.constant 0 : i32
    %c0_i32_0 = arith.constant 0 : i32
    %c0_i32_1 = arith.constant 0 : i32
    %c0_i32_2 = arith.constant 0 : i32
    return %c0_i32, %c0_i32_0, %c0_i32_1 : i32, i32, i32
  }
  func.func @transform_5(%arg0: i32, %arg1: memref<2xi32, #tpu.memory_space<smem>>) -> (i32, i32) {
    %c0_i32 = arith.constant 0 : i32
    %c0_i32_0 = arith.constant 0 : i32
    %c0_i32_1 = arith.constant 0 : i32
    return %c0_i32, %c0_i32_0 : i32, i32
  }
  func.func @transform_6(%arg0: i32, %arg1: memref<2xi32, #tpu.memory_space<smem>>) -> (i32, i32, i32) {
    %c0_i32 = arith.constant 0 : i32
    %c0_i32_0 = arith.constant 0 : i32
    %c0_i32_1 = arith.constant 0 : i32
    %c0_i32_2 = arith.constant 0 : i32
    return %c0_i32, %c0_i32_0, %c0_i32_1 : i32, i32, i32
  }
  func.func @transform_7(%arg0: i32, %arg1: memref<2xi32, #tpu.memory_space<smem>>) -> (i32, i32) {
    %c0_i32 = arith.constant 0 : i32
    %c0_i32_0 = arith.constant 0 : i32
    %c0_i32_1 = arith.constant 0 : i32
    return %c0_i32, %c0_i32_0 : i32, i32
  }
  func.func @transform_8(%arg0: i32, %arg1: memref<2xi32, #tpu.memory_space<smem>>) -> (i32, i32, i32) {
    %c0_i32 = arith.constant 0 : i32
    %c0_i32_0 = arith.constant 0 : i32
    %c0_i32_1 = arith.constant 0 : i32
    %c0_i32_2 = arith.constant 0 : i32
    return %c0_i32, %c0_i32_0, %c0_i32_1 : i32, i32, i32
  }
  func.func @transform_9(%arg0: i32, %arg1: memref<2xi32, #tpu.memory_space<smem>>) -> (i32, i32) {
    %c0_i32 = arith.constant 0 : i32
    %c0_i32_0 = arith.constant 0 : i32
    %c0_i32_1 = arith.constant 0 : i32
    return %c0_i32, %c0_i32_0 : i32, i32
  }
  func.func @transform_10(%arg0: i32, %arg1: memref<2xi32, #tpu.memory_space<smem>>) -> (i32, i32, i32) {
    %c0_i32 = arith.constant 0 : i32
    %c0_i32_0 = arith.constant 0 : i32
    %c0_i32_1 = arith.constant 0 : i32
    %c0_i32_2 = arith.constant 0 : i32
    return %c0_i32, %c0_i32_0, %c0_i32_1 : i32, i32, i32
  }
  func.func @transform_11(%arg0: i32, %arg1: memref<2xi32, #tpu.memory_space<smem>>) -> (i32, i32) {
    %c0_i32 = arith.constant 0 : i32
    %c0_i32_0 = arith.constant 0 : i32
    %c0_i32_1 = arith.constant 0 : i32
    return %c0_i32, %c0_i32_0 : i32, i32
  }
  func.func @transform_12(%arg0: i32, %arg1: memref<2xi32, #tpu.memory_space<smem>>) -> (i32, i32, i32) {
    %c0_i32 = arith.constant 0 : i32
    %c0_i32_0 = arith.constant 0 : i32
    %c0_i32_1 = arith.constant 0 : i32
    %c0_i32_2 = arith.constant 0 : i32
    return %c0_i32, %c0_i32_0, %c0_i32_1 : i32, i32, i32
  }
  func.func @transform_13(%arg0: i32, %arg1: memref<2xi32, #tpu.memory_space<smem>>) -> (i32, i32) {
    %c0_i32 = arith.constant 0 : i32
    %c0_i32_0 = arith.constant 0 : i32
    %c0_i32_1 = arith.constant 0 : i32
    return %c0_i32, %c0_i32_0 : i32, i32
  }
  func.func @transform_14(%arg0: i32, %arg1: memref<2xi32, #tpu.memory_space<smem>>) -> (i32, i32, i32) {
    %c0_i32 = arith.constant 0 : i32
    %c0_i32_0 = arith.constant 0 : i32
    %c0_i32_1 = arith.constant 0 : i32
    return %arg0, %c0_i32, %c0_i32_0 : i32, i32, i32
  }
}

</mosaic_0001>

<llo_original>
// kernel: tpu_custom_call.1
$region0: #{tpu_custom_call.1}
  #allocation0 [shape = 'u32[]', space=smem, size = 0x4, offset = 0x4, fixed_abs, tag = 'smem constant byte address 0x4 - core index']
  #allocation1 [shape = 'u32[144,128]{1,0:T(1,128)}', space=vmem, size = 0x12000, scoped, tag = 'internal scratch']
  #allocation2 [shape = 'f32[32,32]{1,0:T(8,128)}', space=vmem, size = 0x4000, scoped, tag = 'scratch operand']
  #allocation3 [shape = 's32[1]{0}', space=sflag, size = 0x4, scoped, tag = 'scoped memory for tpu_custom_call.1']
  #allocation4 [shape = 'u8[512]{0}', space=smem, size = 0x200, scoped, tag = 'prefetched SMEM operand 0']
  %s0 = inlined_call_operand.vmem [shape: s32[2], index: 0, kind: input, shape index: {}]
  %s1 = inlined_call_operand.hbm [shape: f32[2,4,8], index: 1, kind: input, shape index: {}]
  %s2 = inlined_call_operand.vmem [shape: f32[2,4,16,8], index: 2, kind: input, shape index: {}]
  %s3 = inlined_call_operand.hbm [shape: f32[8,32], index: 3, kind: input, shape index: {}]
  %s4 = inlined_call_operand.hbm [shape: f32[8,32], index: 4, kind: input, shape index: {}]
  %s5 = inlined_call_operand.hbm [shape: f32[8,32,32], index: 5, kind: input, shape index: {}]
  %s6 = inlined_call_operand.hbm [shape: f32[7,32], index: 6, kind: input, shape index: {}]
  %s7 = inlined_call_operand.hbm [shape: f32[9,32,32], index: 7, kind: input, shape index: {}]
  %s8 = inlined_call_operand.vmem [shape: f32[1,32], index: 8, kind: input, shape index: {}]
  %s9 = inlined_call_operand.vmem [shape: f32[7,32,32], index: 9, kind: input, shape index: {}]
  %s10 = inlined_call_operand.vmem [shape: f32[1,32], index: 10, kind: input, shape index: {}]
  %s11 = inlined_call_operand.hbm [shape: f32[5,32,32], index: 11, kind: input, shape index: {}]
  %s12 = inlined_call_operand.vmem [shape: f32[1,32], index: 12, kind: input, shape index: {}]
  %s13 = inlined_call_operand.hbm [shape: f32[1,32,32], index: 13, kind: input, shape index: {}]
  %s14 = inlined_call_operand.vmem [shape: f32[1,32], index: 14, kind: input, shape index: {}]
  %s15 = inlined_call_operand.hbm [shape: f32[2,1,32], index: 15, kind: output, shape index: {}]
  %s16 = sld [smem:[#allocation0]]
  $region121: #{tpu_custom_call.1} parent=0
    _
  %s18 = ssub.s32 1, %s16
  %s19 = scalar_select 0, %s18, %s16
  %s20 = sshll.u32 %s0, 4
  %s21 = int_to_ptr.vmem [resolvable:$true] %s20
  %23 = dma.vmem_to_smem %s21, 16, [#allocation4], [#allocation3]
  %24 = dma.done [#allocation3], 16
  %25 = sfence
  $region1: #{tpu_custom_call.1} parent=0
    #allocation5 [shape = 'u8[4096]{0}', space=vmem, size = 0x1000, scoped, tag = 'input window, operand 1']
    #allocation6 [shape = 's32[2]{0}', space=sflag, size = 0x8, scoped, tag = 'scoped memory for tpu_custom_call.1']
    #allocation7 [shape = 's32[2]{0}', space=sflag, size = 0x8, scoped, tag = 'scoped memory for tpu_custom_call.1']
    #allocation8 [shape = 'u8[4096]{0}', space=vmem, size = 0x1000, scoped, tag = 'input window, operand 3, single buffered']
    #allocation9 [shape = 's32[1]{0}', space=sflag, size = 0x4, scoped, tag = 'scoped memory for tpu_custom_call.1']
    #allocation10 [shape = 'u8[4096]{0}', space=vmem, size = 0x1000, scoped, tag = 'input window, operand 4, single buffered']
    #allocation11 [shape = 'u8[131072]{0}', space=vmem, size = 0x20000, scoped, tag = 'input window, operand 5, single buffered']
    #allocation12 [shape = 's32[1]{0}', space=sflag, size = 0x4, scoped, tag = 'scoped memory for tpu_custom_call.1']
    #allocation13 [shape = 'u8[4096]{0}', space=vmem, size = 0x1000, scoped, tag = 'input window, operand 6, single buffered']
    #allocation14 [shape = 'u8[147456]{0}', space=vmem, size = 0x24000, scoped, tag = 'input window, operand 7, single buffered']
    #allocation15 [shape = 's32[1]{0}', space=sflag, size = 0x4, scoped, tag = 'scoped memory for tpu_custom_call.1']
    #allocation16 [shape = 'u8[81920]{0}', space=vmem, size = 0x14000, scoped, tag = 'input window, operand 11, single buffered']
    #allocation17 [shape = 'u8[16384]{0}', space=vmem, size = 0x4000, scoped, tag = 'input window, operand 13, single buffered']
    #allocation18 [shape = 's32[1]{0}', space=sflag, size = 0x4, scoped, tag = 'scoped memory for tpu_custom_call.1']
    #allocation19 [shape = 'u8[1024]{0}', space=vmem, size = 0x400, scoped, tag = 'output window, operand 0']
    %26 = vsyncpa [#allocation6], 0
    %s27 = scalar_lea.sflag [#allocation6], 1
    %28 = vsyncpa %s27, 0
    %29 = vsyncpa [#allocation9], 0
    %30 = vsyncpa [#allocation12], 0
    %31 = vsyncpa [#allocation15], 0
    %32 = vsyncpa [#allocation18], 0
    %33 = vsyncpa [#allocation7], 0
    %s34 = scalar_lea.sflag [#allocation7], 1
    %35 = vsyncpa %s34, 0
    loop: start=0, step=1, limit=4
    $region2: #{tpu_custom_call.1} parent=1 // loop_pre_header
      _
    $region3: #{tpu_custom_call.1} parent=1 // loop_header
      %s37 = sphi 0, %s41
      %p38 = scmp.ge.s32.totalorder %s37, 4
      %s47 = sphi 0, %s49
      %s50 = sphi 0, %s47
      %s51 = sphi 0, %s50
      %s67 = sphi 0, %s51
      %s73 = sphi 0, %s75
      %s76 = sphi 0, %s73
      %s77 = sphi 0, %s76
      %s93 = sphi 0, %s77
      %s97 = sphi 0, %s97
      %s99 = sphi 0, %s97
      %s100 = sphi 0, %s99
      %s114 = sphi 0, %s100
      %s118 = sphi 0, %s118
      %s120 = sphi 0, %s118
      %s121 = sphi 0, %s120
      %s135 = sphi 0, %s121
      %s139 = sphi 0, %s139
      %s141 = sphi 0, %s139
      %s142 = sphi 0, %s141
      %s156 = sphi 0, %s142
      %s160 = sphi 0, %s160
      %s162 = sphi 0, %s160
      %s163 = sphi 0, %s162
      %s177 = sphi 0, %s163
      %s181 = sphi 0, %s181
      %s183 = sphi 0, %s181
      %s184 = sphi 0, %s183
      %s198 = sphi 0, %s184
      %s202 = sphi 0, %s202
      %s204 = sphi 0, %s202
      %s205 = sphi 0, %s204
      %s219 = sphi 0, %s205
      %s223 = sphi 0, %s223
      %s225 = sphi 0, %s223
      %s226 = sphi 0, %s225
      %s240 = sphi 0, %s226
      %s244 = sphi 0, %s244
      %s246 = sphi 0, %s244
      %s247 = sphi 0, %s246
      %s261 = sphi 0, %s247
      %s265 = sphi 0, %s265
      %s267 = sphi 0, %s265
      %s268 = sphi 0, %s267
      %s282 = sphi 0, %s268
      %s286 = sphi 0, %s286
      %s288 = sphi 0, %s286
      %s289 = sphi 0, %s288
      %s303 = sphi 0, %s289
      %s307 = sphi 0, %s307
      %s309 = sphi 0, %s307
      %s310 = sphi 0, %s309
      %s324 = sphi 0, %s310
      %s328 = sphi 0, %s328
      %s330 = sphi 0, %s328
      %s331 = sphi 0, %s330
      %s345 = sphi 0, %s331
      %s351 = sphi 0, %s353
      %s354 = sphi 0, %s351
      %s355 = sphi 0, %s354
      %s371 = sphi 0, %s355
    $region4: #{tpu_custom_call.1} parent=1 // loop_header_branch
      %40 = sbr.rel (%p38) target = $region8
    $region5: #{tpu_custom_call.1} parent=1 // loop_body
      %s42 = ssub.s32 %s37, 1
      %s43 = ssub.s32 %s37, 2
      %s44 = sadd.s32 %s37, 1
      %s45 = ssub.s32 %s37, %s44
      %p46 = scmp.eq.s32.totalorder %s45, 0
      %s48 = sadd.s32 %s47, 1
      %s49 = scalar_select %p46, %s47, %s48
      %p52 = pneg %p46
      %p53 = scmp.eq.s32.totalorder %s37, 1
      %p54 = por %p52, %p53
      %p55 = scmp.ne.s32.totalorder %s47, %s50
      %p56 = scmp.eq.s32.totalorder %s37, 0
      %p57 = por %p55, %p56
      %p58 = scmp.ne.s32.totalorder %s47, %s50
      %p59 = scmp.eq.s32.totalorder %s42, 1
      %p60 = por %p58, %p59
      %p61 = scmp.ne.s32.totalorder %s50, %s51
      %p62 = scmp.eq.s32.totalorder %s42, 0
      %p63 = por %p61, %p62
      %p64 = scmp.ne.s32.totalorder %s50, %s51
      %p65 = scmp.eq.s32.totalorder %s43, 1
      %p66 = por %p64, %p65
      %p68 = scmp.ne.s32.totalorder %s51, %s67
      %p69 = scmp.eq.s32.totalorder %s43, 0
      %p70 = por %p68, %p69
      %s71 = ssub.s32 %s37, %s44
      %p72 = scmp.eq.s32.totalorder %s71, 0
      %s74 = sadd.s32 %s73, 1
      %s75 = scalar_select %p72, %s73, %s74
      %p78 = pneg %p72
      %p79 = scmp.eq.s32.totalorder %s37, 1
      %p80 = por %p78, %p79
      %p81 = scmp.ne.s32.totalorder %s73, %s76
      %p82 = scmp.eq.s32.totalorder %s37, 0
      %p83 = por %p81, %p82
      %p84 = scmp.ne.s32.totalorder %s73, %s76
      %p85 = scmp.eq.s32.totalorder %s42, 1
      %p86 = por %p84, %p85
      %p87 = scmp.ne.s32.totalorder %s76, %s77
      %p88 = scmp.eq.s32.totalorder %s42, 0
      %p89 = por %p87, %p88
      %p90 = scmp.ne.s32.totalorder %s76, %s77
      %p91 = scmp.eq.s32.totalorder %s43, 1
      %p92 = por %p90, %p91
      %p94 = scmp.ne.s32.totalorder %s77, %s93
      %p95 = scmp.eq.s32.totalorder %s43, 0
      %p96 = por %p94, %p95
      %s98 = sadd.s32 %s97, 1
      %p101 = scmp.eq.s32.totalorder %s37, 1
      %p102 = scmp.ne.s32.totalorder %s97, %s99
      %p103 = scmp.eq.s32.totalorder %s37, 0
      %p104 = por %p102, %p103
      %p105 = scmp.ne.s32.totalorder %s97, %s99
      %p106 = scmp.eq.s32.totalorder %s42, 1
      %p107 = por %p105, %p106
      %p108 = scmp.ne.s32.totalorder %s99, %s100
      %p109 = scmp.eq.s32.totalorder %s42, 0
      %p110 = por %p108, %p109
      %p111 = scmp.ne.s32.totalorder %s99, %s100
      %p112 = scmp.eq.s32.totalorder %s43, 1
      %p113 = por %p111, %p112
      %p115 = scmp.ne.s32.totalorder %s100, %s114
      %p116 = scmp.eq.s32.totalorder %s43, 0
      %p117 = por %p115, %p116
      %s119 = sadd.s32 %s118, 1
      %p122 = scmp.eq.s32.totalorder %s37, 1
      %p123 = scmp.ne.s32.totalorder %s118, %s120
      %p124 = scmp.eq.s32.totalorder %s37, 0
      %p125 = por %p123, %p124
      %p126 = scmp.ne.s32.totalorder %s118, %s120
      %p127 = scmp.eq.s32.totalorder %s42, 1
      %p128 = por %p126, %p127
      %p129 = scmp.ne.s32.totalorder %s120, %s121
      %p130 = scmp.eq.s32.totalorder %s42, 0
      %p131 = por %p129, %p130
      %p132 = scmp.ne.s32.totalorder %s120, %s121
      %p133 = scmp.eq.s32.totalorder %s43, 1
      %p134 = por %p132, %p133
      %p136 = scmp.ne.s32.totalorder %s121, %s135
      %p137 = scmp.eq.s32.totalorder %s43, 0
      %p138 = por %p136, %p137
      %s140 = sadd.s32 %s139, 1
      %p143 = scmp.eq.s32.totalorder %s37, 1
      %p144 = scmp.ne.s32.totalorder %s139, %s141
      %p145 = scmp.eq.s32.totalorder %s37, 0
      %p146 = por %p144, %p145
      %p147 = scmp.ne.s32.totalorder %s139, %s141
      %p148 = scmp.eq.s32.totalorder %s42, 1
      %p149 = por %p147, %p148
      %p150 = scmp.ne.s32.totalorder %s141, %s142
      %p151 = scmp.eq.s32.totalorder %s42, 0
      %p152 = por %p150, %p151
      %p153 = scmp.ne.s32.totalorder %s141, %s142
      %p154 = scmp.eq.s32.totalorder %s43, 1
      %p155 = por %p153, %p154
      %p157 = scmp.ne.s32.totalorder %s142, %s156
      %p158 = scmp.eq.s32.totalorder %s43, 0
      %p159 = por %p157, %p158
      %s161 = sadd.s32 %s160, 1
      %p164 = scmp.eq.s32.totalorder %s37, 1
      %p165 = scmp.ne.s32.totalorder %s160, %s162
      %p166 = scmp.eq.s32.totalorder %s37, 0
      %p167 = por %p165, %p166
      %p168 = scmp.ne.s32.totalorder %s160, %s162
      %p169 = scmp.eq.s32.totalorder %s42, 1
      %p170 = por %p168, %p169
      %p171 = scmp.ne.s32.totalorder %s162, %s163
      %p172 = scmp.eq.s32.totalorder %s42, 0
      %p173 = por %p171, %p172
      %p174 = scmp.ne.s32.totalorder %s162, %s163
      %p175 = scmp.eq.s32.totalorder %s43, 1
      %p176 = por %p174, %p175
      %p178 = scmp.ne.s32.totalorder %s163, %s177
      %p179 = scmp.eq.s32.totalorder %s43, 0
      %p180 = por %p178, %p179
      %s182 = sadd.s32 %s181, 1
      %p185 = scmp.eq.s32.totalorder %s37, 1
      %p186 = scmp.ne.s32.totalorder %s181, %s183
      %p187 = scmp.eq.s32.totalorder %s37, 0
      %p188 = por %p186, %p187
      %p189 = scmp.ne.s32.totalorder %s181, %s183
      %p190 = scmp.eq.s32.totalorder %s42, 1
      %p191 = por %p189, %p190
      %p192 = scmp.ne.s32.totalorder %s183, %s184
      %p193 = scmp.eq.s32.totalorder %s42, 0
      %p194 = por %p192, %p193
      %p195 = scmp.ne.s32.totalorder %s183, %s184
      %p196 = scmp.eq.s32.totalorder %s43, 1
      %p197 = por %p195, %p196
      %p199 = scmp.ne.s32.totalorder %s184, %s198
      %p200 = scmp.eq.s32.totalorder %s43, 0
      %p201 = por %p199, %p200
      %s203 = sadd.s32 %s202, 1
      %p206 = scmp.eq.s32.totalorder %s37, 1
      %p207 = scmp.ne.s32.totalorder %s202, %s204
      %p208 = scmp.eq.s32.totalorder %s37, 0
      %p209 = por %p207, %p208
      %p210 = scmp.ne.s32.totalorder %s202, %s204
      %p211 = scmp.eq.s32.totalorder %s42, 1
      %p212 = por %p210, %p211
      %p213 = scmp.ne.s32.totalorder %s204, %s205
      %p214 = scmp.eq.s32.totalorder %s42, 0
      %p215 = por %p213, %p214
      %p216 = scmp.ne.s32.totalorder %s204, %s205
      %p217 = scmp.eq.s32.totalorder %s43, 1
      %p218 = por %p216, %p217
      %p220 = scmp.ne.s32.totalorder %s205, %s219
      %p221 = scmp.eq.s32.totalorder %s43, 0
      %p222 = por %p220, %p221
      %s224 = sadd.s32 %s223, 1
      %p227 = scmp.eq.s32.totalorder %s37, 1
      %p228 = scmp.ne.s32.totalorder %s223, %s225
      %p229 = scmp.eq.s32.totalorder %s37, 0
      %p230 = por %p228, %p229
      %p231 = scmp.ne.s32.totalorder %s223, %s225
      %p232 = scmp.eq.s32.totalorder %s42, 1
      %p233 = por %p231, %p232
      %p234 = scmp.ne.s32.totalorder %s225, %s226
      %p235 = scmp.eq.s32.totalorder %s42, 0
      %p236 = por %p234, %p235
      %p237 = scmp.ne.s32.totalorder %s225, %s226
      %p238 = scmp.eq.s32.totalorder %s43, 1
      %p239 = por %p237, %p238
      %p241 = scmp.ne.s32.totalorder %s226, %s240
      %p242 = scmp.eq.s32.totalorder %s43, 0
      %p243 = por %p241, %p242
      %s245 = sadd.s32 %s244, 1
      %p248 = scmp.eq.s32.totalorder %s37, 1
      %p249 = scmp.ne.s32.totalorder %s244, %s246
      %p250 = scmp.eq.s32.totalorder %s37, 0
      %p251 = por %p249, %p250
      %p252 = scmp.ne.s32.totalorder %s244, %s246
      %p253 = scmp.eq.s32.totalorder %s42, 1
      %p254 = por %p252, %p253
      %p255 = scmp.ne.s32.totalorder %s246, %s247
      %p256 = scmp.eq.s32.totalorder %s42, 0
      %p257 = por %p255, %p256
      %p258 = scmp.ne.s32.totalorder %s246, %s247
      %p259 = scmp.eq.s32.totalorder %s43, 1
      %p260 = por %p258, %p259
      %p262 = scmp.ne.s32.totalorder %s247, %s261
      %p263 = scmp.eq.s32.totalorder %s43, 0
      %p264 = por %p262, %p263
      %s266 = sadd.s32 %s265, 1
      %p269 = scmp.eq.s32.totalorder %s37, 1
      %p270 = scmp.ne.s32.totalorder %s265, %s267
      %p271 = scmp.eq.s32.totalorder %s37, 0
      %p272 = por %p270, %p271
      %p273 = scmp.ne.s32.totalorder %s265, %s267
      %p274 = scmp.eq.s32.totalorder %s42, 1
      %p275 = por %p273, %p274
      %p276 = scmp.ne.s32.totalorder %s267, %s268
      %p277 = scmp.eq.s32.totalorder %s42, 0
      %p278 = por %p276, %p277
      %p279 = scmp.ne.s32.totalorder %s267, %s268
      %p280 = scmp.eq.s32.totalorder %s43, 1
      %p281 = por %p279, %p280
      %p283 = scmp.ne.s32.totalorder %s268, %s282
      %p284 = scmp.eq.s32.totalorder %s43, 0
      %p285 = por %p283, %p284
      %s287 = sadd.s32 %s286, 1
      %p290 = scmp.eq.s32.totalorder %s37, 1
      %p291 = scmp.ne.s32.totalorder %s286, %s288
      %p292 = scmp.eq.s32.totalorder %s37, 0
      %p293 = por %p291, %p292
      %p294 = scmp.ne.s32.totalorder %s286, %s288
      %p295 = scmp.eq.s32.totalorder %s42, 1
      %p296 = por %p294, %p295
      %p297 = scmp.ne.s32.totalorder %s288, %s289
      %p298 = scmp.eq.s32.totalorder %s42, 0
      %p299 = por %p297, %p298
      %p300 = scmp.ne.s32.totalorder %s288, %s289
      %p301 = scmp.eq.s32.totalorder %s43, 1
      %p302 = por %p300, %p301
      %p304 = scmp.ne.s32.totalorder %s289, %s303
      %p305 = scmp.eq.s32.totalorder %s43, 0
      %p306 = por %p304, %p305
      %s308 = sadd.s32 %s307, 1
      %p311 = scmp.eq.s32.totalorder %s37, 1
      %p312 = scmp.ne.s32.totalorder %s307, %s309
      %p313 = scmp.eq.s32.totalorder %s37, 0
      %p314 = por %p312, %p313
      %p315 = scmp.ne.s32.totalorder %s307, %s309
      %p316 = scmp.eq.s32.totalorder %s42, 1
      %p317 = por %p315, %p316
      %p318 = scmp.ne.s32.totalorder %s309, %s310
      %p319 = scmp.eq.s32.totalorder %s42, 0
      %p320 = por %p318, %p319
      %p321 = scmp.ne.s32.totalorder %s309, %s310
      %p322 = scmp.eq.s32.totalorder %s43, 1
      %p323 = por %p321, %p322
      %p325 = scmp.ne.s32.totalorder %s310, %s324
      %p326 = scmp.eq.s32.totalorder %s43, 0
      %p327 = por %p325, %p326
      %s329 = sadd.s32 %s328, 1
      %p332 = scmp.eq.s32.totalorder %s37, 1
      %p333 = scmp.ne.s32.totalorder %s328, %s330
      %p334 = scmp.eq.s32.totalorder %s37, 0
      %p335 = por %p333, %p334
      %p336 = scmp.ne.s32.totalorder %s328, %s330
      %p337 = scmp.eq.s32.totalorder %s42, 1
      %p338 = por %p336, %p337
      %p339 = scmp.ne.s32.totalorder %s330, %s331
      %p340 = scmp.eq.s32.totalorder %s42, 0
      %p341 = por %p339, %p340
      %p342 = scmp.ne.s32.totalorder %s330, %s331
      %p343 = scmp.eq.s32.totalorder %s43, 1
      %p344 = por %p342, %p343
      %p346 = scmp.ne.s32.totalorder %s331, %s345
      %p347 = scmp.eq.s32.totalorder %s43, 0
      %p348 = por %p346, %p347
      %s349 = ssub.s32 %s37, %s44
      %p350 = scmp.eq.s32.totalorder %s349, 0
      %s352 = sadd.s32 %s351, 1
      %s353 = scalar_select %p350, %s351, %s352
      %p356 = pneg %p350
      %p357 = scmp.eq.s32.totalorder %s37, 1
      %p358 = por %p356, %p357
      %p359 = scmp.ne.s32.totalorder %s351, %s354
      %p360 = scmp.eq.s32.totalorder %s37, 0
      %p361 = por %p359, %p360
      %p362 = scmp.ne.s32.totalorder %s351, %s354
      %p363 = scmp.eq.s32.totalorder %s42, 1
      %p364 = por %p362, %p363
      %p365 = scmp.ne.s32.totalorder %s354, %s355
      %p366 = scmp.eq.s32.totalorder %s42, 0
      %p367 = por %p365, %p366
      %p368 = scmp.ne.s32.totalorder %s354, %s355
      %p369 = scmp.eq.s32.totalorder %s43, 1
      %p370 = por %p368, %p369
      %p372 = scmp.ne.s32.totalorder %s355, %s371
      %p373 = scmp.eq.s32.totalorder %s43, 0
      %p374 = por %p372, %p373
      %p375 = scmp.le.s32.totalorder 1, %s37
      %p376 = scmp.lt.s32.totalorder %s37, 3
      %p377 = pnand %p375, %p376
      %p378 = pneg %p377
      // Predicated region
      $region9: #{tpu_custom_call.1} parent=5 // pred_check
        _
      $region10: #{tpu_custom_call.1} parent=5 // pred_check_branch
        %380 = sbr.rel (%p377) target = $region12
      $region11: #{tpu_custom_call.1} parent=5 // pred_region
        %s381 = ssub.s32 %s37, 1
        // Predicated region
        $region13: #{tpu_custom_call.1} parent=11 // pred_check
          %p382 = pneg %p110
        $region14: #{tpu_custom_call.1} parent=11 // pred_check_branch
          %384 = sbr.rel (%p382) target = $region16
        $region15: #{tpu_custom_call.1} parent=11 // pred_region
          %s386 = ssub.s32 128, 128
          %387 = vsyncadd [#allocation9], %s386
          %s389 = sshll.u32 [#allocation8], 4
          %s390 = int_to_ptr.vmem [resolvable:$true] %s389
          %392 = dma.hbm_to_vmem [thread:$0]  %s3, 128, %s390, [#allocation9]
        $region16: #{tpu_custom_call.1} parent=11 // pred_fallthru
          _
        // Predicated region
        $region17: #{tpu_custom_call.1} parent=11 // pred_check
          %p393 = pneg %p131
        $region18: #{tpu_custom_call.1} parent=11 // pred_check_branch
          %395 = sbr.rel (%p393) target = $region20
        $region19: #{tpu_custom_call.1} parent=11 // pred_region
          %s397 = ssub.s32 128, 128
          %398 = vsyncadd [#allocation9], %s397
          %s400 = sshll.u32 [#allocation10], 4
          %s401 = int_to_ptr.vmem [resolvable:$true] %s400
          %403 = dma.hbm_to_vmem [thread:$0]  %s4, 128, %s401, [#allocation9]
        $region20: #{tpu_custom_call.1} parent=11 // pred_fallthru
          _
        // Predicated region
        $region21: #{tpu_custom_call.1} parent=11 // pred_check
          %p404 = pneg %p152
        $region22: #{tpu_custom_call.1} parent=11 // pred_check_branch
          %406 = sbr.rel (%p404) target = $region24
        $region23: #{tpu_custom_call.1} parent=11 // pred_region
          %s408 = ssub.s32 4096, 4096
          %409 = vsyncadd [#allocation12], %s408
          %s410 = sshll.u32 [#allocation11], 4
          %s411 = int_to_ptr.vmem [resolvable:$true] %s410
          %416 = dma.hbm_to_vmem [thread:$0]  %s5, 4096, %s411, [#allocation12], 128, 128, 8
        $region24: #{tpu_custom_call.1} parent=11 // pred_fallthru
          _
        // Predicated region
        $region25: #{tpu_custom_call.1} parent=11 // pred_check
          %p417 = pneg %p173
        $region26: #{tpu_custom_call.1} parent=11 // pred_check_branch
          %419 = sbr.rel (%p417) target = $region28
        $region27: #{tpu_custom_call.1} parent=11 // pred_region
          %s421 = ssub.s32 128, 128
          %422 = vsyncadd [#allocation12], %s421
          %s424 = sshll.u32 [#allocation13], 4
          %s425 = int_to_ptr.vmem [resolvable:$true] %s424
          %427 = dma.hbm_to_vmem [thread:$0]  %s6, 128, %s425, [#allocation12]
        $region28: #{tpu_custom_call.1} parent=11 // pred_fallthru
          _
        // Predicated region
        $region29: #{tpu_custom_call.1} parent=11 // pred_check
          %p428 = pneg %p194
        $region30: #{tpu_custom_call.1} parent=11 // pred_check_branch
          %430 = sbr.rel (%p428) target = $region32
        $region31: #{tpu_custom_call.1} parent=11 // pred_region
          %s432 = ssub.s32 4608, 4608
          %433 = vsyncadd [#allocation15], %s432
          %s434 = sshll.u32 [#allocation14], 4
          %s435 = int_to_ptr.vmem [resolvable:$true] %s434
          %440 = dma.hbm_to_vmem [thread:$0]  %s7, 4608, %s435, [#allocation15], 128, 128, 8
        $region32: #{tpu_custom_call.1} parent=11 // pred_fallthru
          _
        // Predicated region
        $region33: #{tpu_custom_call.1} parent=11 // pred_check
          %p441 = pneg %p215
        $region34: #{tpu_custom_call.1} parent=11 // pred_check_branch
          %443 = sbr.rel (%p441) target = $region36
        $region35: #{tpu_custom_call.1} parent=11 // pred_region
          _
        $region36: #{tpu_custom_call.1} parent=11 // pred_fallthru
          _
        // Predicated region
        $region37: #{tpu_custom_call.1} parent=11 // pred_check
          %p444 = pneg %p236
        $region38: #{tpu_custom_call.1} parent=11 // pred_check_branch
          %446 = sbr.rel (%p444) target = $region40
        $region39: #{tpu_custom_call.1} parent=11 // pred_region
          _
        $region40: #{tpu_custom_call.1} parent=11 // pred_fallthru
          _
        // Predicated region
        $region41: #{tpu_custom_call.1} parent=11 // pred_check
          %p447 = pneg %p257
        $region42: #{tpu_custom_call.1} parent=11 // pred_check_branch
          %449 = sbr.rel (%p447) target = $region44
        $region43: #{tpu_custom_call.1} parent=11 // pred_region
          _
        $region44: #{tpu_custom_call.1} parent=11 // pred_fallthru
          _
        // Predicated region
        $region45: #{tpu_custom_call.1} parent=11 // pred_check
          %p450 = pneg %p278
        $region46: #{tpu_custom_call.1} parent=11 // pred_check_branch
          %452 = sbr.rel (%p450) target = $region48
        $region47: #{tpu_custom_call.1} parent=11 // pred_region
          %s454 = ssub.s32 2560, 2560
          %455 = vsyncadd [#allocation15], %s454
          %s456 = sshll.u32 [#allocation16], 4
          %s457 = int_to_ptr.vmem [resolvable:$true] %s456
          %462 = dma.hbm_to_vmem [thread:$0]  %s11, 2560, %s457, [#allocation15], 128, 128, 8
        $region48: #{tpu_custom_call.1} parent=11 // pred_fallthru
          _
        // Predicated region
        $region49: #{tpu_custom_call.1} parent=11 // pred_check
          %p463 = pneg %p299
        $region50: #{tpu_custom_call.1} parent=11 // pred_check_branch
          %465 = sbr.rel (%p463) target = $region52
        $region51: #{tpu_custom_call.1} parent=11 // pred_region
          _
        $region52: #{tpu_custom_call.1} parent=11 // pred_fallthru
          _
        // Predicated region
        $region53: #{tpu_custom_call.1} parent=11 // pred_check
          %p466 = pneg %p320
        $region54: #{tpu_custom_call.1} parent=11 // pred_check_branch
          %468 = sbr.rel (%p466) target = $region56
        $region55: #{tpu_custom_call.1} parent=11 // pred_region
          %s470 = ssub.s32 512, 512
          %471 = vsyncadd [#allocation18], %s470
          %s472 = sshll.u32 [#allocation17], 4
          %s473 = int_to_ptr.vmem [resolvable:$true] %s472
          %478 = dma.hbm_to_vmem [thread:$0]  %s13, 512, %s473, [#allocation18], 128, 128, 8
        $region56: #{tpu_custom_call.1} parent=11 // pred_fallthru
          _
        // Predicated region
        $region57: #{tpu_custom_call.1} parent=11 // pred_check
          %p479 = pneg %p341
        $region58: #{tpu_custom_call.1} parent=11 // pred_check_branch
          %481 = sbr.rel (%p479) target = $region60
        $region59: #{tpu_custom_call.1} parent=11 // pred_region
          _
        $region60: #{tpu_custom_call.1} parent=11 // pred_fallthru
          _
      $region12: #{tpu_custom_call.1} parent=5 // pred_fallthru
        _
      %p482 = scmp.lt.s32.totalorder %s37, 2
      // Predicated region
      $region61: #{tpu_custom_call.1} parent=5 // pred_check
        %p483 = pneg %p482
      $region62: #{tpu_custom_call.1} parent=5 // pred_check_branch
        %485 = sbr.rel (%p483) target = $region64
      $region63: #{tpu_custom_call.1} parent=5 // pred_region
        // Predicated region
        $region65: #{tpu_custom_call.1} parent=63 // pred_check
          %p486 = pneg %p57
        $region66: #{tpu_custom_call.1} parent=63 // pred_check_branch
          %488 = sbr.rel (%p486) target = $region68
        $region67: #{tpu_custom_call.1} parent=63 // pred_region
          %s489 = sand.u32 %s47, 1
          %s490 = scalar_lea.sflag [#allocation6], %s489
          %s491 = sand.u32 %s47, 1
          %s492 = smul.addr %s491, 4
          %s493 = scalar_lea.vmem [#allocation5], %s492
          %s495 = ssub.s32 64, 64
          %496 = vsyncadd %s490, %s495
          %s497 = smul.addr %s37, 64
          %s498 = scalar_lea.hbm %s1, %s497
          %s500 = sshll.u32 %s493, 4
          %s501 = int_to_ptr.vmem [resolvable:$true] %s500
          %503 = dma.hbm_to_vmem [thread:$0]  %s498, 64, %s501, %s490
        $region68: #{tpu_custom_call.1} parent=63 // pred_fallthru
          _
        // Predicated region
        $region69: #{tpu_custom_call.1} parent=63 // pred_check
          %p504 = pneg %p83
        $region70: #{tpu_custom_call.1} parent=63 // pred_check_branch
          %506 = sbr.rel (%p504) target = $region72
        $region71: #{tpu_custom_call.1} parent=63 // pred_region
          %p507 = scmp.lt.s32.totalorder %s37, 1
          %s508 = scalar_select %p507, %s37, 1
          %s509 = smul.addr %s508, 8
          %s510 = smul.addr %s509, 8
          %s511 = scalar_lea.vmem %s2, %s510
        $region72: #{tpu_custom_call.1} parent=63 // pred_fallthru
          _
      $region64: #{tpu_custom_call.1} parent=5 // pred_fallthru
        _
      %p512 = scmp.le.s32.totalorder 1, %s37
      %p513 = scmp.lt.s32.totalorder %s37, 3
      %p514 = pnand %p512, %p513
      %p515 = pneg %p514
      // Predicated region
      $region73: #{tpu_custom_call.1} parent=5 // pred_check
        _
      $region74: #{tpu_custom_call.1} parent=5 // pred_check_branch
        %517 = sbr.rel (%p514) target = $region76
      $region75: #{tpu_custom_call.1} parent=5 // pred_region
        %s518 = ssub.s32 %s37, 1
        %s519 = sand.u32 %s50, 1
        %s520 = scalar_lea.sflag [#allocation6], %s519
        %s521 = sand.u32 %s50, 1
        %s522 = smul.addr %s521, 4
        %s523 = scalar_lea.vmem [#allocation5], %s522
        // Predicated region
        $region77: #{tpu_custom_call.1} parent=75 // pred_check
          %p524 = pneg %p63
        $region78: #{tpu_custom_call.1} parent=75 // pred_check_branch
          %526 = sbr.rel (%p524) target = $region80
        $region79: #{tpu_custom_call.1} parent=75 // pred_region
          %527 = dma.done %s520, 64
        $region80: #{tpu_custom_call.1} parent=75 // pred_fallthru
          _
        // Predicated region
        $region81: #{tpu_custom_call.1} parent=75 // pred_check
          %p528 = pneg %p110
        $region82: #{tpu_custom_call.1} parent=75 // pred_check_branch
          %530 = sbr.rel (%p528) target = $region84
        $region83: #{tpu_custom_call.1} parent=75 // pred_region
          %531 = dma.done [#allocation9], 128
        $region84: #{tpu_custom_call.1} parent=75 // pred_fallthru
          _
        // Predicated region
        $region85: #{tpu_custom_call.1} parent=75 // pred_check
          %p532 = pneg %p131
        $region86: #{tpu_custom_call.1} parent=75 // pred_check_branch
          %534 = sbr.rel (%p532) target = $region88
        $region87: #{tpu_custom_call.1} parent=75 // pred_region
          %535 = dma.done [#allocation9], 128
        $region88: #{tpu_custom_call.1} parent=75 // pred_fallthru
          _
        // Predicated region
        $region89: #{tpu_custom_call.1} parent=75 // pred_check
          %p536 = pneg %p152
        $region90: #{tpu_custom_call.1} parent=75 // pred_check_branch
          %538 = sbr.rel (%p536) target = $region92
        $region91: #{tpu_custom_call.1} parent=75 // pred_region
          %539 = dma.done [#allocation12], 4096
        $region92: #{tpu_custom_call.1} parent=75 // pred_fallthru
          _
        // Predicated region
        $region93: #{tpu_custom_call.1} parent=75 // pred_check
          %p540 = pneg %p173
        $region94: #{tpu_custom_call.1} parent=75 // pred_check_branch
          %542 = sbr.rel (%p540) target = $region96
        $region95: #{tpu_custom_call.1} parent=75 // pred_region
          %543 = dma.done [#allocation12], 128
        $region96: #{tpu_custom_call.1} parent=75 // pred_fallthru
          _
        // Predicated region
        $region97: #{tpu_custom_call.1} parent=75 // pred_check
          %p544 = pneg %p194
        $region98: #{tpu_custom_call.1} parent=75 // pred_check_branch
          %546 = sbr.rel (%p544) target = $region100
        $region99: #{tpu_custom_call.1} parent=75 // pred_region
          %547 = dma.done [#allocation15], 4608
        $region100: #{tpu_custom_call.1} parent=75 // pred_fallthru
          _
        // Predicated region
        $region101: #{tpu_custom_call.1} parent=75 // pred_check
          %p548 = pneg %p278
        $region102: #{tpu_custom_call.1} parent=75 // pred_check_branch
          %550 = sbr.rel (%p548) target = $region104
        $region103: #{tpu_custom_call.1} parent=75 // pred_region
          %551 = dma.done [#allocation15], 2560
        $region104: #{tpu_custom_call.1} parent=75 // pred_fallthru
          _
        // Predicated region
        $region105: #{tpu_custom_call.1} parent=75 // pred_check
          %p552 = pneg %p320
        $region106: #{tpu_custom_call.1} parent=75 // pred_check_branch
          %554 = sbr.rel (%p552) target = $region108
        $region107: #{tpu_custom_call.1} parent=75 // pred_region
          %555 = dma.done [#allocation18], 512
        $region108: #{tpu_custom_call.1} parent=75 // pred_fallthru
          _
        %s556 = sand.u32 %s50, 1
        %s557 = scalar_lea.sflag [#allocation6], %s556
        %s558 = sand.u32 %s50, 1
        %s559 = smul.addr %s558, 4
        %s560 = scalar_lea.vmem [#allocation5], %s559
        %p561 = pneg %p63
        %p562 = pneg %p60
        %p563 = scmp.lt.s32.totalorder %s42, 1
        %s564 = scalar_select %p563, %s42, 1
        %s565 = smul.addr %s564, 8
        %s566 = smul.addr %s565, 8
        %s567 = scalar_lea.vmem %s2, %s566
        %p568 = pneg %p89
        %p569 = pneg %p86
        %p570 = pneg %p110
        %p571 = pneg %p107
        %p572 = pneg %p131
        %p573 = pneg %p128
        %p574 = pneg %p152
        %p575 = pneg %p149
        %p576 = pneg %p173
        %p577 = pneg %p170
        %p578 = pneg %p194
        %p579 = pneg %p191
        %p580 = pneg %p215
        %p581 = pneg %p212
        %p582 = pneg %p236
        %p583 = pneg %p233
        %p584 = pneg %p257
        %p585 = pneg %p254
        %p586 = pneg %p278
        %p587 = pneg %p275
        %p588 = pneg %p299
        %p589 = pneg %p296
        %p590 = pneg %p320
        %p591 = pneg %p317
        %p592 = pneg %p341
        %p593 = pneg %p338
        %p594 = pneg %p367
        %p595 = pneg %p364
        %s596 = sand.u32 %s354, 1
        %s597 = scalar_lea.sflag [#allocation7], %s596
        %s598 = sand.u32 %s354, 1
        %s599 = scalar_lea.vmem [#allocation19], %s598
        %p600 = scmp.lt.s32.totalorder %s42, 1
        %s601 = scalar_select %p600, %s42, 1
        %s602 = smul.addr %s601, 8
        %s603 = smul.addr %s602, 8
        %s604 = scalar_lea.vmem %s2, %s603
        %s605 = sld [smem:[#allocation4 + %s42]]
        %v606 = vld [vmem:[%s523] sm:$0xf]
        %v607 = vld [vmem:[#allocation8] sm:$0xff]
        %v608 = vld [vmem:[#allocation13] sm:$0x1]
        %v609 = vld [vmem:[#allocation11] sm:$0xff]
        %v610 = vld [vmem:[#allocation11 + $0x8] sm:$0xff]
        %v611 = vld [vmem:[#allocation11 + $0x10] sm:$0xff]
        %v612 = vld [vmem:[#allocation11 + $0x18] sm:$0xff]
        %v613 = vld [vmem:[#allocation13 + $0x1] sm:$0x1]
        %v614 = vlaneseq
        %v615 = vshrl.u32 %v614, 7
        %v616 = vsub.s32 0, %v615
        %v617 = vrot.slane %v608, %v616
        %vm618 = vcmask 64512
        %v620 = vsel %vm618, %v606, 0
        %622 = vmatprep.subr.mxu0 0.0
        %623 = vmatpush1.msra.mxu0 %v607
        %624 = vmatprep.subr.mxu0 0.0
        %625 = vmatpush1.msra.mxu0 0.0
        %626 = vmatprep.subr.mxu0 0.0
        %627 = vmatpush1.msra.mxu0 0.0
        %628 = vmatprep.subr.mxu0 0.0
        %629 = vmatpush1.msra.mxu0 0.0
        %630 = vmatprep.subr.mxu0 0.0
        %631 = vmatpush1.msra.mxu0 0.0
        %632 = vmatprep.subr.mxu0 0.0
        %633 = vmatpush1.msra.mxu0 0.0
        %634 = vmatprep.subr.mxu0 0.0
        %635 = vmatpush1.msra.mxu0 0.0
        %636 = vmatprep.subr.mxu0 0.0
        %637 = vmatpush1.msra.mxu0 0.0
        %638 = vmatprep.subr.mxu0 0.0
        %639 = vmatpush1.msra.mxu0 0.0
        %640 = vmatprep.subr.mxu0 0.0
        %641 = vmatpush1.msra.mxu0 0.0
        %642 = vmatprep.subr.mxu0 0.0
        %643 = vmatpush1.msra.mxu0 0.0
        %644 = vmatprep.subr.mxu0 0.0
        %645 = vmatpush1.msra.mxu0 0.0
        %646 = vmatprep.subr.mxu0 0.0
        %647 = vmatpush1.msra.mxu0 0.0
        %648 = vmatprep.subr.mxu0 0.0
        %649 = vmatpush1.msra.mxu0 0.0
        %650 = vmatprep.subr.mxu0 0.0
        %651 = vmatpush1.msra.mxu0 0.0
        %652 = vmatprep.subr.mxu0 0.0
        %653 = vmatpush1.msra.mxu0 0.0
        %654 = vmatprep.subr.mxu0 0.0
        %655 = vmatpush1.msra.mxu0 0.0
        %656 = vmatprep.subr.mxu0 0.0
        %657 = vmatpush1.msra.mxu0 0.0
        %658 = vmatprep.subr.mxu0 0.0
        %659 = vmatpush1.msra.mxu0 0.0
        %660 = vmatprep.subr.mxu0 0.0
        %661 = vmatpush1.msra.mxu0 0.0
        %662 = vmatprep.subr.mxu0 0.0
        %663 = vmatpush1.msra.mxu0 0.0
        %664 = vmatprep.subr.mxu0 0.0
        %665 = vmatpush1.msra.mxu0 0.0
        %666 = vmatprep.subr.mxu0 0.0
        %667 = vmatpush1.msra.mxu0 0.0
        %668 = vmatprep.subr.mxu0 0.0
        %669 = vmatpush1.msra.mxu0 0.0
        %670 = vmatprep.subr.mxu0 0.0
        %671 = vmatpush1.msra.mxu0 0.0
        %672 = vmatprep.subr.mxu0 0.0
        %673 = vmatpush1.msra.mxu0 0.0
        %674 = vmatprep.subr.mxu0 0.0
        %675 = vmatpush1.msra.mxu0 0.0
        %676 = vmatprep.subr.mxu0 0.0
        %677 = vmatpush1.msra.mxu0 0.0
        %678 = vmatprep.subr.mxu0 0.0
        %679 = vmatpush1.msra.mxu0 0.0
        %680 = vmatprep.subr.mxu0 0.0
        %681 = vmatpush1.msra.mxu0 0.0
        %682 = vmatprep.subr.mxu0 0.0
        %683 = vmatpush1.msra.mxu0 0.0
        %684 = vmatprep.subr.mxu0 0.0
        %685 = vmatpush1.msra.mxu0 0.0
        %686 = vmatprep.mubr.f32.mxu0 0.0
        %687 = vmatmul.mubr.f32.gmra.mrb[0].mxu0 %v620
        %v688 = vpop.f32.mrb[0].mxu0
        %v689 = vadd.f32 %v617, %v688
        %v690 = vpop.f32.mrb[0].mxu0
        %691 = vdwg.mxu0
        %v692 = vmax.f32 %v689, 0.0
        %v693 = vlaneseq
        %v694 = vshrl.u32 %v693, 7
        %v695 = vsub.s32 0, %v694
        %v696 = vrot.slane %v613, %v695
        %vm697 = vcmask 261120
        %v699 = vsel %vm697, %v692, 0
        %701 = vmatprep.subr.mxu0 0.0
        %702 = vmatpush1.msra.mxu0 %v609
        %703 = vmatprep.subr.mxu0 0.0
        %704 = vmatpush1.msra.mxu0 %v610
        %705 = vmatprep.subr.mxu0 0.0
        %706 = vmatpush1.msra.mxu0 %v611
        %707 = vmatprep.subr.mxu0 0.0
        %708 = vmatpush1.msra.mxu0 %v612
        %709 = vmatprep.subr.mxu0 0.0
        %710 = vmatpush1.msra.mxu0 0.0
        %711 = vmatprep.subr.mxu0 0.0
        %712 = vmatpush1.msra.mxu0 0.0
        %713 = vmatprep.subr.mxu0 0.0
        %714 = vmatpush1.msra.mxu0 0.0
        %715 = vmatprep.subr.mxu0 0.0
        %716 = vmatpush1.msra.mxu0 0.0
        %717 = vmatprep.subr.mxu0 0.0
        %718 = vmatpush1.msra.mxu0 0.0
        %719 = vmatprep.subr.mxu0 0.0
        %720 = vmatpush1.msra.mxu0 0.0
        %721 = vmatprep.subr.mxu0 0.0
        %722 = vmatpush1.msra.mxu0 0.0
        %723 = vmatprep.subr.mxu0 0.0
        %724 = vmatpush1.msra.mxu0 0.0
        %725 = vmatprep.subr.mxu0 0.0
        %726 = vmatpush1.msra.mxu0 0.0
        %727 = vmatprep.subr.mxu0 0.0
        %728 = vmatpush1.msra.mxu0 0.0
        %729 = vmatprep.subr.mxu0 0.0
        %730 = vmatpush1.msra.mxu0 0.0
        %731 = vmatprep.subr.mxu0 0.0
        %732 = vmatpush1.msra.mxu0 0.0
        %733 = vmatprep.subr.mxu0 0.0
        %734 = vmatpush1.msra.mxu0 0.0
        %735 = vmatprep.subr.mxu0 0.0
        %736 = vmatpush1.msra.mxu0 0.0
        %737 = vmatprep.subr.mxu0 0.0
        %738 = vmatpush1.msra.mxu0 0.0
        %739 = vmatprep.subr.mxu0 0.0
        %740 = vmatpush1.msra.mxu0 0.0
        %741 = vmatprep.subr.mxu0 0.0
        %742 = vmatpush1.msra.mxu0 0.0
        %743 = vmatprep.subr.mxu0 0.0
        %744 = vmatpush1.msra.mxu0 0.0
        %745 = vmatprep.subr.mxu0 0.0
        %746 = vmatpush1.msra.mxu0 0.0
        %747 = vmatprep.subr.mxu0 0.0
        %748 = vmatpush1.msra.mxu0 0.0
        %749 = vmatprep.subr.mxu0 0.0
        %750 = vmatpush1.msra.mxu0 0.0
        %751 = vmatprep.subr.mxu0 0.0
        %752 = vmatpush1.msra.mxu0 0.0
        %753 = vmatprep.subr.mxu0 0.0
        %754 = vmatpush1.msra.mxu0 0.0
        %755 = vmatprep.subr.mxu0 0.0
        %756 = vmatpush1.msra.mxu0 0.0
        %757 = vmatprep.subr.mxu0 0.0
        %758 = vmatpush1.msra.mxu0 0.0
        %759 = vmatprep.subr.mxu0 0.0
        %760 = vmatpush1.msra.mxu0 0.0
        %761 = vmatprep.subr.mxu0 0.0
        %762 = vmatpush1.msra.mxu0 0.0
        %763 = vmatprep.subr.mxu0 0.0
        %764 = vmatpush1.msra.mxu0 0.0
        %765 = vmatprep.mubr.f32.mxu0 0.0
        %766 = vmatmul.mubr.f32.gmra.mrb[0].mxu0 %v699
        %v767 = vpop.f32.mrb[0].mxu0
        %v768 = vadd.f32 %v696, %v767
        %v769 = vpop.f32.mrb[0].mxu0
        %770 = vdwg.mxu0
        %v771 = vmax.f32 %v768, 0.0
        %v772 = vlaneseq
        %v773 = vshrl.u32 %v772, 7
        %v774 = vstv %s605
        %vm775 = vcmp.eq.s32.totalorder %v773, %v774
        %v776 = vsel %vm775, 1, 0
        %v777 = vcvt.s32.f32 %v776
        %v778 = vmul.f32 %v777, %v771
        %vm779 = vcmask 257024
        %v780 = vsel %vm779, %v778, 0.0
        %v781 = vrot.slane %v780, 4
        %v782 = vadd.f32 %v780, %v781
        %v783 = vrot.slane %v782, 2
        %v784 = vadd.f32 %v782, %v783
        %v785 = vrot.slane %v784, 1
        %v786 = vadd.f32 %v784, %v785
        %s787 = scalar_lea.vmem [#allocation11], 64
        %v788 = vld [vmem:[%s787] sm:$0xff]
        %v789 = vld [vmem:[%s787 + $0x8] sm:$0xff]
        %v790 = vld [vmem:[%s787 + $0x10] sm:$0xff]
        %v791 = vld [vmem:[%s787 + $0x18] sm:$0xff]
        %s792 = scalar_lea.vmem [#allocation11], 96
        %v793 = vld [vmem:[%s792] sm:$0xff]
        %v794 = vld [vmem:[%s792 + $0x8] sm:$0xff]
        %v795 = vld [vmem:[%s792 + $0x10] sm:$0xff]
        %v796 = vld [vmem:[%s792 + $0x18] sm:$0xff]
        %v798 = vsel %vm697, %v786, 0
        %800 = vmatprep.subr.mxu0 0.0
        %801 = vmatpush1.msra.mxu0 %v793
        %802 = vmatprep.subr.mxu0 0.0
        %803 = vmatpush1.msra.mxu0 %v794
        %804 = vmatprep.subr.mxu0 0.0
        %805 = vmatpush1.msra.mxu0 %v795
        %806 = vmatprep.subr.mxu0 0.0
        %807 = vmatpush1.msra.mxu0 %v796
        %808 = vmatprep.subr.mxu0 0.0
        %809 = vmatpush1.msra.mxu0 0.0
        %810 = vmatprep.subr.mxu0 0.0
        %811 = vmatpush1.msra.mxu0 0.0
        %812 = vmatprep.subr.mxu0 0.0
        %813 = vmatpush1.msra.mxu0 0.0
        %814 = vmatprep.subr.mxu0 0.0
        %815 = vmatpush1.msra.mxu0 0.0
        %816 = vmatprep.subr.mxu0 0.0
        %817 = vmatpush1.msra.mxu0 0.0
        %818 = vmatprep.subr.mxu0 0.0
        %819 = vmatpush1.msra.mxu0 0.0
        %820 = vmatprep.subr.mxu0 0.0
        %821 = vmatpush1.msra.mxu0 0.0
        %822 = vmatprep.subr.mxu0 0.0
        %823 = vmatpush1.msra.mxu0 0.0
        %824 = vmatprep.subr.mxu0 0.0
        %825 = vmatpush1.msra.mxu0 0.0
        %826 = vmatprep.subr.mxu0 0.0
        %827 = vmatpush1.msra.mxu0 0.0
        %828 = vmatprep.subr.mxu0 0.0
        %829 = vmatpush1.msra.mxu0 0.0
        %830 = vmatprep.subr.mxu0 0.0
        %831 = vmatpush1.msra.mxu0 0.0
        %832 = vmatprep.subr.mxu0 0.0
        %833 = vmatpush1.msra.mxu0 0.0
        %834 = vmatprep.subr.mxu0 0.0
        %835 = vmatpush1.msra.mxu0 0.0
        %836 = vmatprep.subr.mxu0 0.0
        %837 = vmatpush1.msra.mxu0 0.0
        %838 = vmatprep.subr.mxu0 0.0
        %839 = vmatpush1.msra.mxu0 0.0
        %840 = vmatprep.subr.mxu0 0.0
        %841 = vmatpush1.msra.mxu0 0.0
        %842 = vmatprep.subr.mxu0 0.0
        %843 = vmatpush1.msra.mxu0 0.0
        %844 = vmatprep.subr.mxu0 0.0
        %845 = vmatpush1.msra.mxu0 0.0
        %846 = vmatprep.subr.mxu0 0.0
        %847 = vmatpush1.msra.mxu0 0.0
        %848 = vmatprep.subr.mxu0 0.0
        %849 = vmatpush1.msra.mxu0 0.0
        %850 = vmatprep.subr.mxu0 0.0
        %851 = vmatpush1.msra.mxu0 0.0
        %852 = vmatprep.subr.mxu0 0.0
        %853 = vmatpush1.msra.mxu0 0.0
        %854 = vmatprep.subr.mxu0 0.0
        %855 = vmatpush1.msra.mxu0 0.0
        %856 = vmatprep.subr.mxu0 0.0
        %857 = vmatpush1.msra.mxu0 0.0
        %858 = vmatprep.subr.mxu0 0.0
        %859 = vmatpush1.msra.mxu0 0.0
        %860 = vmatprep.subr.mxu0 0.0
        %861 = vmatpush1.msra.mxu0 0.0
        %862 = vmatprep.subr.mxu0 0.0
        %863 = vmatpush1.msra.mxu0 0.0
        %864 = vmatprep.mubr.f32.mxu0 0.0
        %865 = vmatmul.mubr.f32.gmra.mrb[0].mxu0 %v798
        %v866 = vpop.f32.mrb[0].mxu0
        %v867 = vadd.f32 0.0, %v866
        %v868 = vpop.f32.mrb[0].mxu0
        %869 = vdwg.mxu0
        %v870 = vlaneseq
        %v871 = vshrl.u32 %v870, 7
        %v872 = vsub.s32 0, %v871
        %v873 = vrot.slane %v867, %v872
        %v875 = vsel %vm697, %v771, 0
        %877 = vmatprep.subr.mxu0 0.0
        %878 = vmatpush1.msra.mxu0 %v788
        %879 = vmatprep.subr.mxu0 0.0
        %880 = vmatpush1.msra.mxu0 %v789
        %881 = vmatprep.subr.mxu0 0.0
        %882 = vmatpush1.msra.mxu0 %v790
        %883 = vmatprep.subr.mxu0 0.0
        %884 = vmatpush1.msra.mxu0 %v791
        %885 = vmatprep.subr.mxu0 0.0
        %886 = vmatpush1.msra.mxu0 0.0
        %887 = vmatprep.subr.mxu0 0.0
        %888 = vmatpush1.msra.mxu0 0.0
        %889 = vmatprep.subr.mxu0 0.0
        %890 = vmatpush1.msra.mxu0 0.0
        %891 = vmatprep.subr.mxu0 0.0
        %892 = vmatpush1.msra.mxu0 0.0
        %893 = vmatprep.subr.mxu0 0.0
        %894 = vmatpush1.msra.mxu0 0.0
        %895 = vmatprep.subr.mxu0 0.0
        %896 = vmatpush1.msra.mxu0 0.0
        %897 = vmatprep.subr.mxu0 0.0
        %898 = vmatpush1.msra.mxu0 0.0
        %899 = vmatprep.subr.mxu0 0.0
        %900 = vmatpush1.msra.mxu0 0.0
        %901 = vmatprep.subr.mxu0 0.0
        %902 = vmatpush1.msra.mxu0 0.0
        %903 = vmatprep.subr.mxu0 0.0
        %904 = vmatpush1.msra.mxu0 0.0
        %905 = vmatprep.subr.mxu0 0.0
        %906 = vmatpush1.msra.mxu0 0.0
        %907 = vmatprep.subr.mxu0 0.0
        %908 = vmatpush1.msra.mxu0 0.0
        %909 = vmatprep.subr.mxu0 0.0
        %910 = vmatpush1.msra.mxu0 0.0
        %911 = vmatprep.subr.mxu0 0.0
        %912 = vmatpush1.msra.mxu0 0.0
        %913 = vmatprep.subr.mxu0 0.0
        %914 = vmatpush1.msra.mxu0 0.0
        %915 = vmatprep.subr.mxu0 0.0
        %916 = vmatpush1.msra.mxu0 0.0
        %917 = vmatprep.subr.mxu0 0.0
        %918 = vmatpush1.msra.mxu0 0.0
        %919 = vmatprep.subr.mxu0 0.0
        %920 = vmatpush1.msra.mxu0 0.0
        %921 = vmatprep.subr.mxu0 0.0
        %922 = vmatpush1.msra.mxu0 0.0
        %923 = vmatprep.subr.mxu0 0.0
        %924 = vmatpush1.msra.mxu0 0.0
        %925 = vmatprep.subr.mxu0 0.0
        %926 = vmatpush1.msra.mxu0 0.0
        %927 = vmatprep.subr.mxu0 0.0
        %928 = vmatpush1.msra.mxu0 0.0
        %929 = vmatprep.subr.mxu0 0.0
        %930 = vmatpush1.msra.mxu0 0.0
        %931 = vmatprep.subr.mxu0 0.0
        %932 = vmatpush1.msra.mxu0 0.0
        %933 = vmatprep.subr.mxu0 0.0
        %934 = vmatpush1.msra.mxu0 0.0
        %935 = vmatprep.subr.mxu0 0.0
        %936 = vmatpush1.msra.mxu0 0.0
        %937 = vmatprep.subr.mxu0 0.0
        %938 = vmatpush1.msra.mxu0 0.0
        %939 = vmatprep.subr.mxu0 0.0
        %940 = vmatpush1.msra.mxu0 0.0
        %941 = vmatprep.mubr.f32.mxu0 0.0
        %942 = vmatmul.mubr.f32.gmra.mrb[0].mxu0 %v875
        %v943 = vpop.f32.mrb[0].mxu0
        %v944 = vadd.f32 %v873, %v943
        %v945 = vpop.f32.mrb[0].mxu0
        %946 = vdwg.mxu0
        %v947 = vld [vmem:[#allocation13 + $0x4] sm:$0x1]
        %v948 = vlaneseq
        %v949 = vshrl.u32 %v948, 7
        %v950 = vsub.s32 0, %v949
        %v951 = vrot.slane %v947, %v950
        %v952 = vadd.f32 %v944, %v951
        %v953 = vmax.f32 %v952, 0.0
        %s954 = scalar_lea.vmem [#allocation11], 128
        %v955 = vld [vmem:[%s954] sm:$0xff]
        %v956 = vld [vmem:[%s954 + $0x8] sm:$0xff]
        %v957 = vld [vmem:[%s954 + $0x10] sm:$0xff]
        %v958 = vld [vmem:[%s954 + $0x18] sm:$0xff]
        %v959 = vld [vmem:[#allocation13 + $0x5] sm:$0x1]
        %v960 = vlaneseq
        %v961 = vshrl.u32 %v960, 7
        %v962 = vsub.s32 0, %v961
        %v963 = vrot.slane %v959, %v962
        %v965 = vsel %vm697, %v953, 0
        %967 = vmatprep.subr.mxu0 0.0
        %968 = vmatpush1.msra.mxu0 %v955
        %969 = vmatprep.subr.mxu0 0.0
        %970 = vmatpush1.msra.mxu0 %v956
        %971 = vmatprep.subr.mxu0 0.0
        %972 = vmatpush1.msra.mxu0 %v957
        %973 = vmatprep.subr.mxu0 0.0
        %974 = vmatpush1.msra.mxu0 %v958
        %975 = vmatprep.subr.mxu0 0.0
        %976 = vmatpush1.msra.mxu0 0.0
        %977 = vmatprep.subr.mxu0 0.0
        %978 = vmatpush1.msra.mxu0 0.0
        %979 = vmatprep.subr.mxu0 0.0
        %980 = vmatpush1.msra.mxu0 0.0
        %981 = vmatprep.subr.mxu0 0.0
        %982 = vmatpush1.msra.mxu0 0.0
        %983 = vmatprep.subr.mxu0 0.0
        %984 = vmatpush1.msra.mxu0 0.0
        %985 = vmatprep.subr.mxu0 0.0
        %986 = vmatpush1.msra.mxu0 0.0
        %987 = vmatprep.subr.mxu0 0.0
        %988 = vmatpush1.msra.mxu0 0.0
        %989 = vmatprep.subr.mxu0 0.0
        %990 = vmatpush1.msra.mxu0 0.0
        %991 = vmatprep.subr.mxu0 0.0
        %992 = vmatpush1.msra.mxu0 0.0
        %993 = vmatprep.subr.mxu0 0.0
        %994 = vmatpush1.msra.mxu0 0.0
        %995 = vmatprep.subr.mxu0 0.0
        %996 = vmatpush1.msra.mxu0 0.0
        %997 = vmatprep.subr.mxu0 0.0
        %998 = vmatpush1.msra.mxu0 0.0
        %999 = vmatprep.subr.mxu0 0.0
        %1000 = vmatpush1.msra.mxu0 0.0
        %1001 = vmatprep.subr.mxu0 0.0
        %1002 = vmatpush1.msra.mxu0 0.0
        %1003 = vmatprep.subr.mxu0 0.0
        %1004 = vmatpush1.msra.mxu0 0.0
        %1005 = vmatprep.subr.mxu0 0.0
        %1006 = vmatpush1.msra.mxu0 0.0
        %1007 = vmatprep.subr.mxu0 0.0
        %1008 = vmatpush1.msra.mxu0 0.0
        %1009 = vmatprep.subr.mxu0 0.0
        %1010 = vmatpush1.msra.mxu0 0.0
        %1011 = vmatprep.subr.mxu0 0.0
        %1012 = vmatpush1.msra.mxu0 0.0
        %1013 = vmatprep.subr.mxu0 0.0
        %1014 = vmatpush1.msra.mxu0 0.0
        %1015 = vmatprep.subr.mxu0 0.0
        %1016 = vmatpush1.msra.mxu0 0.0
        %1017 = vmatprep.subr.mxu0 0.0
        %1018 = vmatpush1.msra.mxu0 0.0
        %1019 = vmatprep.subr.mxu0 0.0
        %1020 = vmatpush1.msra.mxu0 0.0
        %1021 = vmatprep.subr.mxu0 0.0
        %1022 = vmatpush1.msra.mxu0 0.0
        %1023 = vmatprep.subr.mxu0 0.0
        %1024 = vmatpush1.msra.mxu0 0.0
        %1025 = vmatprep.subr.mxu0 0.0
        %1026 = vmatpush1.msra.mxu0 0.0
        %1027 = vmatprep.subr.mxu0 0.0
        %1028 = vmatpush1.msra.mxu0 0.0
        %1029 = vmatprep.subr.mxu0 0.0
        %1030 = vmatpush1.msra.mxu0 0.0
        %1031 = vmatprep.mubr.f32.mxu0 0.0
        %1032 = vmatmul.mubr.f32.gmra.mrb[0].mxu0 %v965
        %v1033 = vpop.f32.mrb[0].mxu0
        %v1034 = vadd.f32 %v963, %v1033
        %v1035 = vpop.f32.mrb[0].mxu0
        %1036 = vdwg.mxu0
        %v1037 = vmax.f32 %v1034, 0.0
        %s1038 = scalar_lea.vmem [#allocation11], 224
        %v1039 = vld [vmem:[%s1038] sm:$0xff]
        %v1040 = vld [vmem:[%s1038 + $0x8] sm:$0xff]
        %v1041 = vld [vmem:[%s1038 + $0x10] sm:$0xff]
        %v1042 = vld [vmem:[%s1038 + $0x18] sm:$0xff]
        %v1044 = vsel %vm697, %v1037, 0
        %1046 = vmatprep.subr.mxu0 0.0
        %1047 = vmatpush1.msra.mxu0 %v1039
        %1048 = vmatprep.subr.mxu0 0.0
        %1049 = vmatpush1.msra.mxu0 %v1040
        %1050 = vmatprep.subr.mxu0 0.0
        %1051 = vmatpush1.msra.mxu0 %v1041
        %1052 = vmatprep.subr.mxu0 0.0
        %1053 = vmatpush1.msra.mxu0 %v1042
        %1054 = vmatprep.subr.mxu0 0.0
        %1055 = vmatpush1.msra.mxu0 0.0
        %1056 = vmatprep.subr.mxu0 0.0
        %1057 = vmatpush1.msra.mxu0 0.0
        %1058 = vmatprep.subr.mxu0 0.0
        %1059 = vmatpush1.msra.mxu0 0.0
        %1060 = vmatprep.subr.mxu0 0.0
        %1061 = vmatpush1.msra.mxu0 0.0
        %1062 = vmatprep.subr.mxu0 0.0
        %1063 = vmatpush1.msra.mxu0 0.0
        %1064 = vmatprep.subr.mxu0 0.0
        %1065 = vmatpush1.msra.mxu0 0.0
        %1066 = vmatprep.subr.mxu0 0.0
        %1067 = vmatpush1.msra.mxu0 0.0
        %1068 = vmatprep.subr.mxu0 0.0
        %1069 = vmatpush1.msra.mxu0 0.0
        %1070 = vmatprep.subr.mxu0 0.0
        %1071 = vmatpush1.msra.mxu0 0.0
        %1072 = vmatprep.subr.mxu0 0.0
        %1073 = vmatpush1.msra.mxu0 0.0
        %1074 = vmatprep.subr.mxu0 0.0
        %1075 = vmatpush1.msra.mxu0 0.0
        %1076 = vmatprep.subr.mxu0 0.0
        %1077 = vmatpush1.msra.mxu0 0.0
        %1078 = vmatprep.subr.mxu0 0.0
        %1079 = vmatpush1.msra.mxu0 0.0
        %1080 = vmatprep.subr.mxu0 0.0
        %1081 = vmatpush1.msra.mxu0 0.0
        %1082 = vmatprep.subr.mxu0 0.0
        %1083 = vmatpush1.msra.mxu0 0.0
        %1084 = vmatprep.subr.mxu0 0.0
        %1085 = vmatpush1.msra.mxu0 0.0
        %1086 = vmatprep.subr.mxu0 0.0
        %1087 = vmatpush1.msra.mxu0 0.0
        %1088 = vmatprep.subr.mxu0 0.0
        %1089 = vmatpush1.msra.mxu0 0.0
        %1090 = vmatprep.subr.mxu0 0.0
        %1091 = vmatpush1.msra.mxu0 0.0
        %1092 = vmatprep.subr.mxu0 0.0
        %1093 = vmatpush1.msra.mxu0 0.0
        %1094 = vmatprep.subr.mxu0 0.0
        %1095 = vmatpush1.msra.mxu0 0.0
        %1096 = vmatprep.subr.mxu0 0.0
        %1097 = vmatpush1.msra.mxu0 0.0
        %1098 = vmatprep.subr.mxu0 0.0
        %1099 = vmatpush1.msra.mxu0 0.0
        %1100 = vmatprep.subr.mxu0 0.0
        %1101 = vmatpush1.msra.mxu0 0.0
        %1102 = vmatprep.subr.mxu0 0.0
        %1103 = vmatpush1.msra.mxu0 0.0
        %1104 = vmatprep.subr.mxu0 0.0
        %1105 = vmatpush1.msra.mxu0 0.0
        %1106 = vmatprep.subr.mxu0 0.0
        %1107 = vmatpush1.msra.mxu0 0.0
        %1108 = vmatprep.subr.mxu0 0.0
        %1109 = vmatpush1.msra.mxu0 0.0
        %1110 = vmatprep.mubr.f32.mxu0 0.0
        %1111 = vmatmul.mubr.f32.gmra.mrb[0].mxu0 %v1044
        %v1112 = vpop.f32.mrb[0].mxu0
        %v1113 = vadd.f32 0.0, %v1112
        %v1114 = vpop.f32.mrb[0].mxu0
        %1115 = vdwg.mxu0
        %v1116 = vld [vmem:[%s604] sm:$0xff]
        %v1117 = vld [vmem:[%s604 + $0x8] sm:$0xff]
        %v1118 = vld [vmem:[#allocation10] sm:$0xff]
        %v1119 = vld [vmem:[#allocation13 + $0x2] sm:$0x1]
        %s1120 = scalar_lea.vmem [#allocation11], 32
        %v1121 = vld [vmem:[%s1120] sm:$0xff]
        %v1122 = vld [vmem:[%s1120 + $0x8] sm:$0xff]
        %v1123 = vld [vmem:[%s1120 + $0x10] sm:$0xff]
        %v1124 = vld [vmem:[%s1120 + $0x18] sm:$0xff]
        %v1125 = vld [vmem:[#allocation13 + $0x3] sm:$0x1]
        %v1126 = vlaneseq
        %v1127 = vshrl.u32 %v1126, 7
        %v1128 = vsub.s32 0, %v1127
        %v1129 = vrot.slane %v1119, %v1128
        %v1131 = vsel %vm618, %v1116, 0
        %v1134 = vsel %vm618, %v1117, 0
        %1136 = vmatprep.subr.mxu0 0.0
        %1137 = vmatpush1.msra.mxu0 %v1118
        %1138 = vmatprep.subr.mxu0 0.0
        %1139 = vmatpush1.msra.mxu0 0.0
        %1140 = vmatprep.subr.mxu0 0.0
        %1141 = vmatpush1.msra.mxu0 0.0
        %1142 = vmatprep.subr.mxu0 0.0
        %1143 = vmatpush1.msra.mxu0 0.0
        %1144 = vmatprep.subr.mxu0 0.0
        %1145 = vmatpush1.msra.mxu0 0.0
        %1146 = vmatprep.subr.mxu0 0.0
        %1147 = vmatpush1.msra.mxu0 0.0
        %1148 = vmatprep.subr.mxu0 0.0
        %1149 = vmatpush1.msra.mxu0 0.0
        %1150 = vmatprep.subr.mxu0 0.0
        %1151 = vmatpush1.msra.mxu0 0.0
        %1152 = vmatprep.subr.mxu0 0.0
        %1153 = vmatpush1.msra.mxu0 0.0
        %1154 = vmatprep.subr.mxu0 0.0
        %1155 = vmatpush1.msra.mxu0 0.0
        %1156 = vmatprep.subr.mxu0 0.0
        %1157 = vmatpush1.msra.mxu0 0.0
        %1158 = vmatprep.subr.mxu0 0.0
        %1159 = vmatpush1.msra.mxu0 0.0
        %1160 = vmatprep.subr.mxu0 0.0
        %1161 = vmatpush1.msra.mxu0 0.0
        %1162 = vmatprep.subr.mxu0 0.0
        %1163 = vmatpush1.msra.mxu0 0.0
        %1164 = vmatprep.subr.mxu0 0.0
        %1165 = vmatpush1.msra.mxu0 0.0
        %1166 = vmatprep.subr.mxu0 0.0
        %1167 = vmatpush1.msra.mxu0 0.0
        %1168 = vmatprep.subr.mxu0 0.0
        %1169 = vmatpush1.msra.mxu0 0.0
        %1170 = vmatprep.subr.mxu0 0.0
        %1171 = vmatpush1.msra.mxu0 0.0
        %1172 = vmatprep.subr.mxu0 0.0
        %1173 = vmatpush1.msra.mxu0 0.0
        %1174 = vmatprep.subr.mxu0 0.0
        %1175 = vmatpush1.msra.mxu0 0.0
        %1176 = vmatprep.subr.mxu0 0.0
        %1177 = vmatpush1.msra.mxu0 0.0
        %1178 = vmatprep.subr.mxu0 0.0
        %1179 = vmatpush1.msra.mxu0 0.0
        %1180 = vmatprep.subr.mxu0 0.0
        %1181 = vmatpush1.msra.mxu0 0.0
        %1182 = vmatprep.subr.mxu0 0.0
        %1183 = vmatpush1.msra.mxu0 0.0
        %1184 = vmatprep.subr.mxu0 0.0
        %1185 = vmatpush1.msra.mxu0 0.0
        %1186 = vmatprep.subr.mxu0 0.0
        %1187 = vmatpush1.msra.mxu0 0.0
        %1188 = vmatprep.subr.mxu0 0.0
        %1189 = vmatpush1.msra.mxu0 0.0
        %1190 = vmatprep.subr.mxu0 0.0
        %1191 = vmatpush1.msra.mxu0 0.0
        %1192 = vmatprep.subr.mxu0 0.0
        %1193 = vmatpush1.msra.mxu0 0.0
        %1194 = vmatprep.subr.mxu0 0.0
        %1195 = vmatpush1.msra.mxu0 0.0
        %1196 = vmatprep.subr.mxu0 0.0
        %1197 = vmatpush1.msra.mxu0 0.0
        %1198 = vmatprep.subr.mxu0 0.0
        %1199 = vmatpush1.msra.mxu0 0.0
        %1200 = vmatprep.mubr.f32.mxu0 0.0
        %1201 = vmatmul.mubr.f32.gmra.mrb[0].mxu0 %v1131
        %v1202 = vpop.f32.mrb[0].mxu0
        %v1203 = vadd.f32 %v1129, %v1202
        %v1204 = vpop.f32.mrb[0].mxu0
        %1205 = vmatprep.mubr.f32.mxu0 0.0
        %1206 = vmatmul.mubr.f32.gmra.mrb[0].mxu0 %v1134
        %v1207 = vpop.f32.mrb[0].mxu0
        %v1208 = vadd.f32 %v1129, %v1207
        %v1209 = vpop.f32.mrb[0].mxu0
        %1210 = vdwg.mxu0
        %v1211 = vmax.f32 %v1203, 0.0
        %v1212 = vmax.f32 %v1208, 0.0
        %v1213 = vlaneseq
        %v1214 = vshrl.u32 %v1213, 7
        %v1215 = vsub.s32 0, %v1214
        %v1216 = vrot.slane %v1125, %v1215
        %v1218 = vsel %vm697, %v1211, 0
        %v1221 = vsel %vm697, %v1212, 0
        %1223 = vmatprep.subr.mxu0 0.0
        %1224 = vmatpush1.msra.mxu0 %v1121
        %1225 = vmatprep.subr.mxu0 0.0
        %1226 = vmatpush1.msra.mxu0 %v1122
        %1227 = vmatprep.subr.mxu0 0.0
        %1228 = vmatpush1.msra.mxu0 %v1123
        %1229 = vmatprep.subr.mxu0 0.0
        %1230 = vmatpush1.msra.mxu0 %v1124
        %1231 = vmatprep.subr.mxu0 0.0
        %1232 = vmatpush1.msra.mxu0 0.0
        %1233 = vmatprep.subr.mxu0 0.0
        %1234 = vmatpush1.msra.mxu0 0.0
        %1235 = vmatprep.subr.mxu0 0.0
        %1236 = vmatpush1.msra.mxu0 0.0
        %1237 = vmatprep.subr.mxu0 0.0
        %1238 = vmatpush1.msra.mxu0 0.0
        %1239 = vmatprep.subr.mxu0 0.0
        %1240 = vmatpush1.msra.mxu0 0.0
        %1241 = vmatprep.subr.mxu0 0.0
        %1242 = vmatpush1.msra.mxu0 0.0
        %1243 = vmatprep.subr.mxu0 0.0
        %1244 = vmatpush1.msra.mxu0 0.0
        %1245 = vmatprep.subr.mxu0 0.0
        %1246 = vmatpush1.msra.mxu0 0.0
        %1247 = vmatprep.subr.mxu0 0.0
        %1248 = vmatpush1.msra.mxu0 0.0
        %1249 = vmatprep.subr.mxu0 0.0
        %1250 = vmatpush1.msra.mxu0 0.0
        %1251 = vmatprep.subr.mxu0 0.0
        %1252 = vmatpush1.msra.mxu0 0.0
        %1253 = vmatprep.subr.mxu0 0.0
        %1254 = vmatpush1.msra.mxu0 0.0
        %1255 = vmatprep.subr.mxu0 0.0
        %1256 = vmatpush1.msra.mxu0 0.0
        %1257 = vmatprep.subr.mxu0 0.0
        %1258 = vmatpush1.msra.mxu0 0.0
        %1259 = vmatprep.subr.mxu0 0.0
        %1260 = vmatpush1.msra.mxu0 0.0
        %1261 = vmatprep.subr.mxu0 0.0
        %1262 = vmatpush1.msra.mxu0 0.0
        %1263 = vmatprep.subr.mxu0 0.0
        %1264 = vmatpush1.msra.mxu0 0.0
        %1265 = vmatprep.subr.mxu0 0.0
        %1266 = vmatpush1.msra.mxu0 0.0
        %1267 = vmatprep.subr.mxu0 0.0
        %1268 = vmatpush1.msra.mxu0 0.0
        %1269 = vmatprep.subr.mxu0 0.0
        %1270 = vmatpush1.msra.mxu0 0.0
        %1271 = vmatprep.subr.mxu0 0.0
        %1272 = vmatpush1.msra.mxu0 0.0
        %1273 = vmatprep.subr.mxu0 0.0
        %1274 = vmatpush1.msra.mxu0 0.0
        %1275 = vmatprep.subr.mxu0 0.0
        %1276 = vmatpush1.msra.mxu0 0.0
        %1277 = vmatprep.subr.mxu0 0.0
        %1278 = vmatpush1.msra.mxu0 0.0
        %1279 = vmatprep.subr.mxu0 0.0
        %1280 = vmatpush1.msra.mxu0 0.0
        %1281 = vmatprep.subr.mxu0 0.0
        %1282 = vmatpush1.msra.mxu0 0.0
        %1283 = vmatprep.subr.mxu0 0.0
        %1284 = vmatpush1.msra.mxu0 0.0
        %1285 = vmatprep.subr.mxu0 0.0
        %1286 = vmatpush1.msra.mxu0 0.0
        %1287 = vmatprep.mubr.f32.mxu0 0.0
        %1288 = vmatmul.mubr.f32.gmra.mrb[0].mxu0 %v1218
        %v1289 = vpop.f32.mrb[0].mxu0
        %v1290 = vadd.f32 %v1216, %v1289
        %v1291 = vpop.f32.mrb[0].mxu0
        %1292 = vmatprep.mubr.f32.mxu0 0.0
        %1293 = vmatmul.mubr.f32.gmra.mrb[0].mxu0 %v1221
        %v1294 = vpop.f32.mrb[0].mxu0
        %v1295 = vadd.f32 %v1216, %v1294
        %v1296 = vpop.f32.mrb[0].mxu0
        %1297 = vdwg.mxu0
        %v1298 = vmax.f32 %v1290, 0.0
        %v1299 = vmax.f32 %v1295, 0.0
        %s1300 = scalar_lea.vmem %s604, 16
        %v1301 = vld [vmem:[%s1300] sm:$0xff]
        %v1302 = vld [vmem:[%s1300 + $0x8] sm:$0xff]
        %v1304 = vsel %vm618, %v1301, 0
        %v1307 = vsel %vm618, %v1302, 0
        %1309 = vmatprep.subr.mxu0 0.0
        %1310 = vmatpush1.msra.mxu0 %v1118
        %1311 = vmatprep.subr.mxu0 0.0
        %1312 = vmatpush1.msra.mxu0 0.0
        %1313 = vmatprep.subr.mxu0 0.0
        %1314 = vmatpush1.msra.mxu0 0.0
        %1315 = vmatprep.subr.mxu0 0.0
        %1316 = vmatpush1.msra.mxu0 0.0
        %1317 = vmatprep.subr.mxu0 0.0
        %1318 = vmatpush1.msra.mxu0 0.0
        %1319 = vmatprep.subr.mxu0 0.0
        %1320 = vmatpush1.msra.mxu0 0.0
        %1321 = vmatprep.subr.mxu0 0.0
        %1322 = vmatpush1.msra.mxu0 0.0
        %1323 = vmatprep.subr.mxu0 0.0
        %1324 = vmatpush1.msra.mxu0 0.0
        %1325 = vmatprep.subr.mxu0 0.0
        %1326 = vmatpush1.msra.mxu0 0.0
        %1327 = vmatprep.subr.mxu0 0.0
        %1328 = vmatpush1.msra.mxu0 0.0
        %1329 = vmatprep.subr.mxu0 0.0
        %1330 = vmatpush1.msra.mxu0 0.0
        %1331 = vmatprep.subr.mxu0 0.0
        %1332 = vmatpush1.msra.mxu0 0.0
        %1333 = vmatprep.subr.mxu0 0.0
        %1334 = vmatpush1.msra.mxu0 0.0
        %1335 = vmatprep.subr.mxu0 0.0
        %1336 = vmatpush1.msra.mxu0 0.0
        %1337 = vmatprep.subr.mxu0 0.0
        %1338 = vmatpush1.msra.mxu0 0.0
        %1339 = vmatprep.subr.mxu0 0.0
        %1340 = vmatpush1.msra.mxu0 0.0
        %1341 = vmatprep.subr.mxu0 0.0
        %1342 = vmatpush1.msra.mxu0 0.0
        %1343 = vmatprep.subr.mxu0 0.0
        %1344 = vmatpush1.msra.mxu0 0.0
        %1345 = vmatprep.subr.mxu0 0.0
        %1346 = vmatpush1.msra.mxu0 0.0
        %1347 = vmatprep.subr.mxu0 0.0
        %1348 = vmatpush1.msra.mxu0 0.0
        %1349 = vmatprep.subr.mxu0 0.0
        %1350 = vmatpush1.msra.mxu0 0.0
        %1351 = vmatprep.subr.mxu0 0.0
        %1352 = vmatpush1.msra.mxu0 0.0
        %1353 = vmatprep.subr.mxu0 0.0
        %1354 = vmatpush1.msra.mxu0 0.0
        %1355 = vmatprep.subr.mxu0 0.0
        %1356 = vmatpush1.msra.mxu0 0.0
        %1357 = vmatprep.subr.mxu0 0.0
        %1358 = vmatpush1.msra.mxu0 0.0
        %1359 = vmatprep.subr.mxu0 0.0
        %1360 = vmatpush1.msra.mxu0 0.0
        %1361 = vmatprep.subr.mxu0 0.0
        %1362 = vmatpush1.msra.mxu0 0.0
        %1363 = vmatprep.subr.mxu0 0.0
        %1364 = vmatpush1.msra.mxu0 0.0
        %1365 = vmatprep.subr.mxu0 0.0
        %1366 = vmatpush1.msra.mxu0 0.0
        %1367 = vmatprep.subr.mxu0 0.0
        %1368 = vmatpush1.msra.mxu0 0.0
        %1369 = vmatprep.subr.mxu0 0.0
        %1370 = vmatpush1.msra.mxu0 0.0
        %1371 = vmatprep.subr.mxu0 0.0
        %1372 = vmatpush1.msra.mxu0 0.0
        %1373 = vmatprep.mubr.f32.mxu0 0.0
        %1374 = vmatmul.mubr.f32.gmra.mrb[0].mxu0 %v1304
        %v1375 = vpop.f32.mrb[0].mxu0
        %v1376 = vadd.f32 %v1129, %v1375
        %v1377 = vpop.f32.mrb[0].mxu0
        %1378 = vmatprep.mubr.f32.mxu0 0.0
        %1379 = vmatmul.mubr.f32.gmra.mrb[0].mxu0 %v1307
        %v1380 = vpop.f32.mrb[0].mxu0
        %v1381 = vadd.f32 %v1129, %v1380
        %v1382 = vpop.f32.mrb[0].mxu0
        %1383 = vdwg.mxu0
        %v1384 = vmax.f32 %v1376, 0.0
        %v1385 = vmax.f32 %v1381, 0.0
        %v1387 = vsel %vm697, %v1384, 0
        %v1390 = vsel %vm697, %v1385, 0
        %1392 = vmatprep.subr.mxu0 0.0
        %1393 = vmatpush1.msra.mxu0 %v1121
        %1394 = vmatprep.subr.mxu0 0.0
        %1395 = vmatpush1.msra.mxu0 %v1122
        %1396 = vmatprep.subr.mxu0 0.0
        %1397 = vmatpush1.msra.mxu0 %v1123
        %1398 = vmatprep.subr.mxu0 0.0
        %1399 = vmatpush1.msra.mxu0 %v1124
        %1400 = vmatprep.subr.mxu0 0.0
        %1401 = vmatpush1.msra.mxu0 0.0
        %1402 = vmatprep.subr.mxu0 0.0
        %1403 = vmatpush1.msra.mxu0 0.0
        %1404 = vmatprep.subr.mxu0 0.0
        %1405 = vmatpush1.msra.mxu0 0.0
        %1406 = vmatprep.subr.mxu0 0.0
        %1407 = vmatpush1.msra.mxu0 0.0
        %1408 = vmatprep.subr.mxu0 0.0
        %1409 = vmatpush1.msra.mxu0 0.0
        %1410 = vmatprep.subr.mxu0 0.0
        %1411 = vmatpush1.msra.mxu0 0.0
        %1412 = vmatprep.subr.mxu0 0.0
        %1413 = vmatpush1.msra.mxu0 0.0
        %1414 = vmatprep.subr.mxu0 0.0
        %1415 = vmatpush1.msra.mxu0 0.0
        %1416 = vmatprep.subr.mxu0 0.0
        %1417 = vmatpush1.msra.mxu0 0.0
        %1418 = vmatprep.subr.mxu0 0.0
        %1419 = vmatpush1.msra.mxu0 0.0
        %1420 = vmatprep.subr.mxu0 0.0
        %1421 = vmatpush1.msra.mxu0 0.0
        %1422 = vmatprep.subr.mxu0 0.0
        %1423 = vmatpush1.msra.mxu0 0.0
        %1424 = vmatprep.subr.mxu0 0.0
        %1425 = vmatpush1.msra.mxu0 0.0
        %1426 = vmatprep.subr.mxu0 0.0
        %1427 = vmatpush1.msra.mxu0 0.0
        %1428 = vmatprep.subr.mxu0 0.0
        %1429 = vmatpush1.msra.mxu0 0.0
        %1430 = vmatprep.subr.mxu0 0.0
        %1431 = vmatpush1.msra.mxu0 0.0
        %1432 = vmatprep.subr.mxu0 0.0
        %1433 = vmatpush1.msra.mxu0 0.0
        %1434 = vmatprep.subr.mxu0 0.0
        %1435 = vmatpush1.msra.mxu0 0.0
        %1436 = vmatprep.subr.mxu0 0.0
        %1437 = vmatpush1.msra.mxu0 0.0
        %1438 = vmatprep.subr.mxu0 0.0
        %1439 = vmatpush1.msra.mxu0 0.0
        %1440 = vmatprep.subr.mxu0 0.0
        %1441 = vmatpush1.msra.mxu0 0.0
        %1442 = vmatprep.subr.mxu0 0.0
        %1443 = vmatpush1.msra.mxu0 0.0
        %1444 = vmatprep.subr.mxu0 0.0
        %1445 = vmatpush1.msra.mxu0 0.0
        %1446 = vmatprep.subr.mxu0 0.0
        %1447 = vmatpush1.msra.mxu0 0.0
        %1448 = vmatprep.subr.mxu0 0.0
        %1449 = vmatpush1.msra.mxu0 0.0
        %1450 = vmatprep.subr.mxu0 0.0
        %1451 = vmatpush1.msra.mxu0 0.0
        %1452 = vmatprep.subr.mxu0 0.0
        %1453 = vmatpush1.msra.mxu0 0.0
        %1454 = vmatprep.subr.mxu0 0.0
        %1455 = vmatpush1.msra.mxu0 0.0
        %1456 = vmatprep.mubr.f32.mxu0 0.0
        %1457 = vmatmul.mubr.f32.gmra.mrb[0].mxu0 %v1387
        %v1458 = vpop.f32.mrb[0].mxu0
        %v1459 = vadd.f32 %v1216, %v1458
        %v1460 = vpop.f32.mrb[0].mxu0
        %1461 = vmatprep.mubr.f32.mxu0 0.0
        %1462 = vmatmul.mubr.f32.gmra.mrb[0].mxu0 %v1390
        %v1463 = vpop.f32.mrb[0].mxu0
        %v1464 = vadd.f32 %v1216, %v1463
        %v1465 = vpop.f32.mrb[0].mxu0
        %1466 = vdwg.mxu0
        %v1467 = vmax.f32 %v1459, 0.0
        %v1468 = vmax.f32 %v1464, 0.0
        %s1469 = scalar_lea.vmem %s604, 32
        %v1470 = vld [vmem:[%s1469] sm:$0xff]
        %v1471 = vld [vmem:[%s1469 + $0x8] sm:$0xff]
        %v1473 = vsel %vm618, %v1470, 0
        %v1476 = vsel %vm618, %v1471, 0
        %1478 = vmatprep.subr.mxu0 0.0
        %1479 = vmatpush1.msra.mxu0 %v1118
        %1480 = vmatprep.subr.mxu0 0.0
        %1481 = vmatpush1.msra.mxu0 0.0
        %1482 = vmatprep.subr.mxu0 0.0
        %1483 = vmatpush1.msra.mxu0 0.0
        %1484 = vmatprep.subr.mxu0 0.0
        %1485 = vmatpush1.msra.mxu0 0.0
        %1486 = vmatprep.subr.mxu0 0.0
        %1487 = vmatpush1.msra.mxu0 0.0
        %1488 = vmatprep.subr.mxu0 0.0
        %1489 = vmatpush1.msra.mxu0 0.0
        %1490 = vmatprep.subr.mxu0 0.0
        %1491 = vmatpush1.msra.mxu0 0.0
        %1492 = vmatprep.subr.mxu0 0.0
        %1493 = vmatpush1.msra.mxu0 0.0
        %1494 = vmatprep.subr.mxu0 0.0
        %1495 = vmatpush1.msra.mxu0 0.0
        %1496 = vmatprep.subr.mxu0 0.0
        %1497 = vmatpush1.msra.mxu0 0.0
        %1498 = vmatprep.subr.mxu0 0.0
        %1499 = vmatpush1.msra.mxu0 0.0
        %1500 = vmatprep.subr.mxu0 0.0
        %1501 = vmatpush1.msra.mxu0 0.0
        %1502 = vmatprep.subr.mxu0 0.0
        %1503 = vmatpush1.msra.mxu0 0.0
        %1504 = vmatprep.subr.mxu0 0.0
        %1505 = vmatpush1.msra.mxu0 0.0
        %1506 = vmatprep.subr.mxu0 0.0
        %1507 = vmatpush1.msra.mxu0 0.0
        %1508 = vmatprep.subr.mxu0 0.0
        %1509 = vmatpush1.msra.mxu0 0.0
        %1510 = vmatprep.subr.mxu0 0.0
        %1511 = vmatpush1.msra.mxu0 0.0
        %1512 = vmatprep.subr.mxu0 0.0
        %1513 = vmatpush1.msra.mxu0 0.0
        %1514 = vmatprep.subr.mxu0 0.0
        %1515 = vmatpush1.msra.mxu0 0.0
        %1516 = vmatprep.subr.mxu0 0.0
        %1517 = vmatpush1.msra.mxu0 0.0
        %1518 = vmatprep.subr.mxu0 0.0
        %1519 = vmatpush1.msra.mxu0 0.0
        %1520 = vmatprep.subr.mxu0 0.0
        %1521 = vmatpush1.msra.mxu0 0.0
        %1522 = vmatprep.subr.mxu0 0.0
        %1523 = vmatpush1.msra.mxu0 0.0
        %1524 = vmatprep.subr.mxu0 0.0
        %1525 = vmatpush1.msra.mxu0 0.0
        %1526 = vmatprep.subr.mxu0 0.0
        %1527 = vmatpush1.msra.mxu0 0.0
        %1528 = vmatprep.subr.mxu0 0.0
        %1529 = vmatpush1.msra.mxu0 0.0
        %1530 = vmatprep.subr.mxu0 0.0
        %1531 = vmatpush1.msra.mxu0 0.0
        %1532 = vmatprep.subr.mxu0 0.0
        %1533 = vmatpush1.msra.mxu0 0.0
        %1534 = vmatprep.subr.mxu0 0.0
        %1535 = vmatpush1.msra.mxu0 0.0
        %1536 = vmatprep.subr.mxu0 0.0
        %1537 = vmatpush1.msra.mxu0 0.0
        %1538 = vmatprep.subr.mxu0 0.0
        %1539 = vmatpush1.msra.mxu0 0.0
        %1540 = vmatprep.subr.mxu0 0.0
        %1541 = vmatpush1.msra.mxu0 0.0
        %1542 = vmatprep.mubr.f32.mxu0 0.0
        %1543 = vmatmul.mubr.f32.gmra.mrb[0].mxu0 %v1473
        %v1544 = vpop.f32.mrb[0].mxu0
        %v1545 = vadd.f32 %v1129, %v1544
        %v1546 = vpop.f32.mrb[0].mxu0
        %1547 = vmatprep.mubr.f32.mxu0 0.0
        %1548 = vmatmul.mubr.f32.gmra.mrb[0].mxu0 %v1476
        %v1549 = vpop.f32.mrb[0].mxu0
        %v1550 = vadd.f32 %v1129, %v1549
        %v1551 = vpop.f32.mrb[0].mxu0
        %1552 = vdwg.mxu0
        %v1553 = vmax.f32 %v1545, 0.0
        %v1554 = vmax.f32 %v1550, 0.0
        %v1556 = vsel %vm697, %v1553, 0
        %v1559 = vsel %vm697, %v1554, 0
        %1561 = vmatprep.subr.mxu0 0.0
        %1562 = vmatpush1.msra.mxu0 %v1121
        %1563 = vmatprep.subr.mxu0 0.0
        %1564 = vmatpush1.msra.mxu0 %v1122
        %1565 = vmatprep.subr.mxu0 0.0
        %1566 = vmatpush1.msra.mxu0 %v1123
        %1567 = vmatprep.subr.mxu0 0.0
        %1568 = vmatpush1.msra.mxu0 %v1124
        %1569 = vmatprep.subr.mxu0 0.0
        %1570 = vmatpush1.msra.mxu0 0.0
        %1571 = vmatprep.subr.mxu0 0.0
        %1572 = vmatpush1.msra.mxu0 0.0
        %1573 = vmatprep.subr.mxu0 0.0
        %1574 = vmatpush1.msra.mxu0 0.0
        %1575 = vmatprep.subr.mxu0 0.0
        %1576 = vmatpush1.msra.mxu0 0.0
        %1577 = vmatprep.subr.mxu0 0.0
        %1578 = vmatpush1.msra.mxu0 0.0
        %1579 = vmatprep.subr.mxu0 0.0
        %1580 = vmatpush1.msra.mxu0 0.0
        %1581 = vmatprep.subr.mxu0 0.0
        %1582 = vmatpush1.msra.mxu0 0.0
        %1583 = vmatprep.subr.mxu0 0.0
        %1584 = vmatpush1.msra.mxu0 0.0
        %1585 = vmatprep.subr.mxu0 0.0
        %1586 = vmatpush1.msra.mxu0 0.0
        %1587 = vmatprep.subr.mxu0 0.0
        %1588 = vmatpush1.msra.mxu0 0.0
        %1589 = vmatprep.subr.mxu0 0.0
        %1590 = vmatpush1.msra.mxu0 0.0
        %1591 = vmatprep.subr.mxu0 0.0
        %1592 = vmatpush1.msra.mxu0 0.0
        %1593 = vmatprep.subr.mxu0 0.0
        %1594 = vmatpush1.msra.mxu0 0.0
        %1595 = vmatprep.subr.mxu0 0.0
        %1596 = vmatpush1.msra.mxu0 0.0
        %1597 = vmatprep.subr.mxu0 0.0
        %1598 = vmatpush1.msra.mxu0 0.0
        %1599 = vmatprep.subr.mxu0 0.0
        %1600 = vmatpush1.msra.mxu0 0.0
        %1601 = vmatprep.subr.mxu0 0.0
        %1602 = vmatpush1.msra.mxu0 0.0
        %1603 = vmatprep.subr.mxu0 0.0
        %1604 = vmatpush1.msra.mxu0 0.0
        %1605 = vmatprep.subr.mxu0 0.0
        %1606 = vmatpush1.msra.mxu0 0.0
        %1607 = vmatprep.subr.mxu0 0.0
        %1608 = vmatpush1.msra.mxu0 0.0
        %1609 = vmatprep.subr.mxu0 0.0
        %1610 = vmatpush1.msra.mxu0 0.0
        %1611 = vmatprep.subr.mxu0 0.0
        %1612 = vmatpush1.msra.mxu0 0.0
        %1613 = vmatprep.subr.mxu0 0.0
        %1614 = vmatpush1.msra.mxu0 0.0
        %1615 = vmatprep.subr.mxu0 0.0
        %1616 = vmatpush1.msra.mxu0 0.0
        %1617 = vmatprep.subr.mxu0 0.0
        %1618 = vmatpush1.msra.mxu0 0.0
        %1619 = vmatprep.subr.mxu0 0.0
        %1620 = vmatpush1.msra.mxu0 0.0
        %1621 = vmatprep.subr.mxu0 0.0
        %1622 = vmatpush1.msra.mxu0 0.0
        %1623 = vmatprep.subr.mxu0 0.0
        %1624 = vmatpush1.msra.mxu0 0.0
        %1625 = vmatprep.mubr.f32.mxu0 0.0
        %1626 = vmatmul.mubr.f32.gmra.mrb[0].mxu0 %v1556
        %v1627 = vpop.f32.mrb[0].mxu0
        %v1628 = vadd.f32 %v1216, %v1627
        %v1629 = vpop.f32.mrb[0].mxu0
        %1630 = vmatprep.mubr.f32.mxu0 0.0
        %1631 = vmatmul.mubr.f32.gmra.mrb[0].mxu0 %v1559
        %v1632 = vpop.f32.mrb[0].mxu0
        %v1633 = vadd.f32 %v1216, %v1632
        %v1634 = vpop.f32.mrb[0].mxu0
        %1635 = vdwg.mxu0
        %v1636 = vmax.f32 %v1628, 0.0
        %v1637 = vmax.f32 %v1633, 0.0
        %s1638 = scalar_lea.vmem %s604, 48
        %v1639 = vld [vmem:[%s1638] sm:$0xff]
        %v1640 = vld [vmem:[%s1638 + $0x8] sm:$0xff]
        %v1642 = vsel %vm618, %v1639, 0
        %v1645 = vsel %vm618, %v1640, 0
        %1647 = vmatprep.subr.mxu0 0.0
        %1648 = vmatpush1.msra.mxu0 %v1118
        %1649 = vmatprep.subr.mxu0 0.0
        %1650 = vmatpush1.msra.mxu0 0.0
        %1651 = vmatprep.subr.mxu0 0.0
        %1652 = vmatpush1.msra.mxu0 0.0
        %1653 = vmatprep.subr.mxu0 0.0
        %1654 = vmatpush1.msra.mxu0 0.0
        %1655 = vmatprep.subr.mxu0 0.0
        %1656 = vmatpush1.msra.mxu0 0.0
        %1657 = vmatprep.subr.mxu0 0.0
        %1658 = vmatpush1.msra.mxu0 0.0
        %1659 = vmatprep.subr.mxu0 0.0
        %1660 = vmatpush1.msra.mxu0 0.0
        %1661 = vmatprep.subr.mxu0 0.0
        %1662 = vmatpush1.msra.mxu0 0.0
        %1663 = vmatprep.subr.mxu0 0.0
        %1664 = vmatpush1.msra.mxu0 0.0
        %1665 = vmatprep.subr.mxu0 0.0
        %1666 = vmatpush1.msra.mxu0 0.0
        %1667 = vmatprep.subr.mxu0 0.0
        %1668 = vmatpush1.msra.mxu0 0.0
        %1669 = vmatprep.subr.mxu0 0.0
        %1670 = vmatpush1.msra.mxu0 0.0
        %1671 = vmatprep.subr.mxu0 0.0
        %1672 = vmatpush1.msra.mxu0 0.0
        %1673 = vmatprep.subr.mxu0 0.0
        %1674 = vmatpush1.msra.mxu0 0.0
        %1675 = vmatprep.subr.mxu0 0.0
        %1676 = vmatpush1.msra.mxu0 0.0
        %1677 = vmatprep.subr.mxu0 0.0
        %1678 = vmatpush1.msra.mxu0 0.0
        %1679 = vmatprep.subr.mxu0 0.0
        %1680 = vmatpush1.msra.mxu0 0.0
        %1681 = vmatprep.subr.mxu0 0.0
        %1682 = vmatpush1.msra.mxu0 0.0
        %1683 = vmatprep.subr.mxu0 0.0
        %1684 = vmatpush1.msra.mxu0 0.0
        %1685 = vmatprep.subr.mxu0 0.0
        %1686 = vmatpush1.msra.mxu0 0.0
        %1687 = vmatprep.subr.mxu0 0.0
        %1688 = vmatpush1.msra.mxu0 0.0
        %1689 = vmatprep.subr.mxu0 0.0
        %1690 = vmatpush1.msra.mxu0 0.0
        %1691 = vmatprep.subr.mxu0 0.0
        %1692 = vmatpush1.msra.mxu0 0.0
        %1693 = vmatprep.subr.mxu0 0.0
        %1694 = vmatpush1.msra.mxu0 0.0
        %1695 = vmatprep.subr.mxu0 0.0
        %1696 = vmatpush1.msra.mxu0 0.0
        %1697 = vmatprep.subr.mxu0 0.0
        %1698 = vmatpush1.msra.mxu0 0.0
        %1699 = vmatprep.subr.mxu0 0.0
        %1700 = vmatpush1.msra.mxu0 0.0
        %1701 = vmatprep.subr.mxu0 0.0
        %1702 = vmatpush1.msra.mxu0 0.0
        %1703 = vmatprep.subr.mxu0 0.0
        %1704 = vmatpush1.msra.mxu0 0.0
        %1705 = vmatprep.subr.mxu0 0.0
        %1706 = vmatpush1.msra.mxu0 0.0
        %1707 = vmatprep.subr.mxu0 0.0
        %1708 = vmatpush1.msra.mxu0 0.0
        %1709 = vmatprep.subr.mxu0 0.0
        %1710 = vmatpush1.msra.mxu0 0.0
        %1711 = vmatprep.mubr.f32.mxu0 0.0
        %1712 = vmatmul.mubr.f32.gmra.mrb[0].mxu0 %v1642
        %v1713 = vpop.f32.mrb[0].mxu0
        %v1714 = vadd.f32 %v1129, %v1713
        %v1715 = vpop.f32.mrb[0].mxu0
        %1716 = vmatprep.mubr.f32.mxu0 0.0
        %1717 = vmatmul.mubr.f32.gmra.mrb[0].mxu0 %v1645
        %v1718 = vpop.f32.mrb[0].mxu0
        %v1719 = vadd.f32 %v1129, %v1718
        %v1720 = vpop.f32.mrb[0].mxu0
        %1721 = vdwg.mxu0
        %v1722 = vmax.f32 %v1714, 0.0
        %v1723 = vmax.f32 %v1719, 0.0
        %v1725 = vsel %vm697, %v1722, 0
        %v1728 = vsel %vm697, %v1723, 0
        %1730 = vmatprep.subr.mxu0 0.0
        %1731 = vmatpush1.msra.mxu0 %v1121
        %1732 = vmatprep.subr.mxu0 0.0
        %1733 = vmatpush1.msra.mxu0 %v1122
        %1734 = vmatprep.subr.mxu0 0.0
        %1735 = vmatpush1.msra.mxu0 %v1123
        %1736 = vmatprep.subr.mxu0 0.0
        %1737 = vmatpush1.msra.mxu0 %v1124
        %1738 = vmatprep.subr.mxu0 0.0
        %1739 = vmatpush1.msra.mxu0 0.0
        %1740 = vmatprep.subr.mxu0 0.0
        %1741 = vmatpush1.msra.mxu0 0.0
        %1742 = vmatprep.subr.mxu0 0.0
        %1743 = vmatpush1.msra.mxu0 0.0
        %1744 = vmatprep.subr.mxu0 0.0
        %1745 = vmatpush1.msra.mxu0 0.0
        %1746 = vmatprep.subr.mxu0 0.0
        %1747 = vmatpush1.msra.mxu0 0.0
        %1748 = vmatprep.subr.mxu0 0.0
        %1749 = vmatpush1.msra.mxu0 0.0
        %1750 = vmatprep.subr.mxu0 0.0
        %1751 = vmatpush1.msra.mxu0 0.0
        %1752 = vmatprep.subr.mxu0 0.0
        %1753 = vmatpush1.msra.mxu0 0.0
        %1754 = vmatprep.subr.mxu0 0.0
        %1755 = vmatpush1.msra.mxu0 0.0
        %1756 = vmatprep.subr.mxu0 0.0
        %1757 = vmatpush1.msra.mxu0 0.0
        %1758 = vmatprep.subr.mxu0 0.0
        %1759 = vmatpush1.msra.mxu0 0.0
        %1760 = vmatprep.subr.mxu0 0.0
        %1761 = vmatpush1.msra.mxu0 0.0
        %1762 = vmatprep.subr.mxu0 0.0
        %1763 = vmatpush1.msra.mxu0 0.0
        %1764 = vmatprep.subr.mxu0 0.0
        %1765 = vmatpush1.msra.mxu0 0.0
        %1766 = vmatprep.subr.mxu0 0.0
        %1767 = vmatpush1.msra.mxu0 0.0
        %1768 = vmatprep.subr.mxu0 0.0
        %1769 = vmatpush1.msra.mxu0 0.0
        %1770 = vmatprep.subr.mxu0 0.0
        %1771 = vmatpush1.msra.mxu0 0.0
        %1772 = vmatprep.subr.mxu0 0.0
        %1773 = vmatpush1.msra.mxu0 0.0
        %1774 = vmatprep.subr.mxu0 0.0
        %1775 = vmatpush1.msra.mxu0 0.0
        %1776 = vmatprep.subr.mxu0 0.0
        %1777 = vmatpush1.msra.mxu0 0.0
        %1778 = vmatprep.subr.mxu0 0.0
        %1779 = vmatpush1.msra.mxu0 0.0
        %1780 = vmatprep.subr.mxu0 0.0
        %1781 = vmatpush1.msra.mxu0 0.0
        %1782 = vmatprep.subr.mxu0 0.0
        %1783 = vmatpush1.msra.mxu0 0.0
        %1784 = vmatprep.subr.mxu0 0.0
        %1785 = vmatpush1.msra.mxu0 0.0
        %1786 = vmatprep.subr.mxu0 0.0
        %1787 = vmatpush1.msra.mxu0 0.0
        %1788 = vmatprep.subr.mxu0 0.0
        %1789 = vmatpush1.msra.mxu0 0.0
        %1790 = vmatprep.subr.mxu0 0.0
        %1791 = vmatpush1.msra.mxu0 0.0
        %1792 = vmatprep.subr.mxu0 0.0
        %1793 = vmatpush1.msra.mxu0 0.0
        %1794 = vmatprep.mubr.f32.mxu0 0.0
        %1795 = vmatmul.mubr.f32.gmra.mrb[0].mxu0 %v1725
        %v1796 = vpop.f32.mrb[0].mxu0
        %v1797 = vadd.f32 %v1216, %v1796
        %v1798 = vpop.f32.mrb[0].mxu0
        %1799 = vmatprep.mubr.f32.mxu0 0.0
        %1800 = vmatmul.mubr.f32.gmra.mrb[0].mxu0 %v1728
        %v1801 = vpop.f32.mrb[0].mxu0
        %v1802 = vadd.f32 %v1216, %v1801
        %v1803 = vpop.f32.mrb[0].mxu0
        %1804 = vdwg.mxu0
        %v1805 = vmax.f32 %v1797, 0.0
        %v1806 = vmax.f32 %v1802, 0.0
        %p1807 = scmp.eq.s32.totalorder %s605, 0
        %s1808 = scalar_select %p1807, 1, 0
        %s1809 = scvt.s32.f32 %s1808
        %v1810 = vstv %s1809
        %v1811 = vmul.f32 %v1810, %v1298
        %v1812 = vmul.f32 %v1810, %v1299
        %v1813 = vadd.f32 %v1811, 0.0
        %v1814 = vadd.f32 %v1812, 0.0
        %p1815 = scmp.eq.s32.totalorder %s605, 1
        %s1816 = scalar_select %p1815, 1, 0
        %s1817 = scvt.s32.f32 %s1816
        %v1818 = vstv %s1817
        %v1819 = vmul.f32 %v1818, %v1467
        %v1820 = vmul.f32 %v1818, %v1468
        %v1821 = vadd.f32 %v1813, %v1819
        %v1822 = vadd.f32 %v1814, %v1820
        %p1823 = scmp.eq.s32.totalorder %s605, 2
        %s1824 = scalar_select %p1823, 1, 0
        %s1825 = scvt.s32.f32 %s1824
        %v1826 = vstv %s1825
        %v1827 = vmul.f32 %v1826, %v1636
        %v1828 = vmul.f32 %v1826, %v1637
        %v1829 = vadd.f32 %v1821, %v1827
        %v1830 = vadd.f32 %v1822, %v1828
        %p1831 = scmp.eq.s32.totalorder %s605, 3
        %s1832 = scalar_select %p1831, 1, 0
        %s1833 = scvt.s32.f32 %s1832
        %v1834 = vstv %s1833
        %v1835 = vmul.f32 %v1834, %v1805
        %v1836 = vmul.f32 %v1834, %v1806
        %v1837 = vadd.f32 %v1829, %v1835
        %v1838 = vadd.f32 %v1830, %v1836
        %s1839 = scalar_lea.vmem [#allocation11], 160
        %v1840 = vld [vmem:[%s1839] sm:$0xff]
        %v1841 = vld [vmem:[%s1839 + $0x8] sm:$0xff]
        %v1842 = vld [vmem:[%s1839 + $0x10] sm:$0xff]
        %v1843 = vld [vmem:[%s1839 + $0x18] sm:$0xff]
        %v1845 = vsel %vm697, %v1837, 0
        %v1848 = vsel %vm697, %v1838, 0
        %1850 = vmatprep.subr.mxu0 0.0
        %1851 = vmatpush1.msra.mxu0 %v1840
        %1852 = vmatprep.subr.mxu0 0.0
        %1853 = vmatpush1.msra.mxu0 %v1841
        %1854 = vmatprep.subr.mxu0 0.0
        %1855 = vmatpush1.msra.mxu0 %v1842
        %1856 = vmatprep.subr.mxu0 0.0
        %1857 = vmatpush1.msra.mxu0 %v1843
        %1858 = vmatprep.subr.mxu0 0.0
        %1859 = vmatpush1.msra.mxu0 0.0
        %1860 = vmatprep.subr.mxu0 0.0
        %1861 = vmatpush1.msra.mxu0 0.0
        %1862 = vmatprep.subr.mxu0 0.0
        %1863 = vmatpush1.msra.mxu0 0.0
        %1864 = vmatprep.subr.mxu0 0.0
        %1865 = vmatpush1.msra.mxu0 0.0
        %1866 = vmatprep.subr.mxu0 0.0
        %1867 = vmatpush1.msra.mxu0 0.0
        %1868 = vmatprep.subr.mxu0 0.0
        %1869 = vmatpush1.msra.mxu0 0.0
        %1870 = vmatprep.subr.mxu0 0.0
        %1871 = vmatpush1.msra.mxu0 0.0
        %1872 = vmatprep.subr.mxu0 0.0
        %1873 = vmatpush1.msra.mxu0 0.0
        %1874 = vmatprep.subr.mxu0 0.0
        %1875 = vmatpush1.msra.mxu0 0.0
        %1876 = vmatprep.subr.mxu0 0.0
        %1877 = vmatpush1.msra.mxu0 0.0
        %1878 = vmatprep.subr.mxu0 0.0
        %1879 = vmatpush1.msra.mxu0 0.0
        %1880 = vmatprep.subr.mxu0 0.0
        %1881 = vmatpush1.msra.mxu0 0.0
        %1882 = vmatprep.subr.mxu0 0.0
        %1883 = vmatpush1.msra.mxu0 0.0
        %1884 = vmatprep.subr.mxu0 0.0
        %1885 = vmatpush1.msra.mxu0 0.0
        %1886 = vmatprep.subr.mxu0 0.0
        %1887 = vmatpush1.msra.mxu0 0.0
        %1888 = vmatprep.subr.mxu0 0.0
        %1889 = vmatpush1.msra.mxu0 0.0
        %1890 = vmatprep.subr.mxu0 0.0
        %1891 = vmatpush1.msra.mxu0 0.0
        %1892 = vmatprep.subr.mxu0 0.0
        %1893 = vmatpush1.msra.mxu0 0.0
        %1894 = vmatprep.subr.mxu0 0.0
        %1895 = vmatpush1.msra.mxu0 0.0
        %1896 = vmatprep.subr.mxu0 0.0
        %1897 = vmatpush1.msra.mxu0 0.0
        %1898 = vmatprep.subr.mxu0 0.0
        %1899 = vmatpush1.msra.mxu0 0.0
        %1900 = vmatprep.subr.mxu0 0.0
        %1901 = vmatpush1.msra.mxu0 0.0
        %1902 = vmatprep.subr.mxu0 0.0
        %1903 = vmatpush1.msra.mxu0 0.0
        %1904 = vmatprep.subr.mxu0 0.0
        %1905 = vmatpush1.msra.mxu0 0.0
        %1906 = vmatprep.subr.mxu0 0.0
        %1907 = vmatpush1.msra.mxu0 0.0
        %1908 = vmatprep.subr.mxu0 0.0
        %1909 = vmatpush1.msra.mxu0 0.0
        %1910 = vmatprep.subr.mxu0 0.0
        %1911 = vmatpush1.msra.mxu0 0.0
        %1912 = vmatprep.subr.mxu0 0.0
        %1913 = vmatpush1.msra.mxu0 0.0
        %1914 = vmatprep.mubr.f32.mxu0 0.0
        %1915 = vmatmul.mubr.f32.gmra.mrb[0].mxu0 %v1845
        %v1916 = vpop.f32.mrb[0].mxu0
        %v1917 = vadd.f32 0.0, %v1916
        %v1918 = vpop.f32.mrb[0].mxu0
        %1919 = vmatprep.mubr.f32.mxu0 0.0
        %1920 = vmatmul.mubr.f32.gmra.mrb[0].mxu0 %v1848
        %v1921 = vpop.f32.mrb[0].mxu0
        %v1922 = vadd.f32 0.0, %v1921
        %v1923 = vpop.f32.mrb[0].mxu0
        %1924 = vdwg.mxu0
        %v1925 = vld [vmem:[#allocation13 + $0x6] sm:$0x1]
        %s1926 = scalar_lea.vmem [#allocation11], 192
        %v1927 = vld [vmem:[%s1926] sm:$0xff]
        %v1928 = vld [vmem:[%s1926 + $0x8] sm:$0xff]
        %v1929 = vld [vmem:[%s1926 + $0x10] sm:$0xff]
        %v1930 = vld [vmem:[%s1926 + $0x18] sm:$0xff]
        %v1932 = vsel %vm697, %v1298, 0
        %v1935 = vsel %vm697, %v1299, 0
        %1937 = vmatprep.subr.mxu0 0.0
        %1938 = vmatpush1.msra.mxu0 %v1927
        %1939 = vmatprep.subr.mxu0 0.0
        %1940 = vmatpush1.msra.mxu0 %v1928
        %1941 = vmatprep.subr.mxu0 0.0
        %1942 = vmatpush1.msra.mxu0 %v1929
        %1943 = vmatprep.subr.mxu0 0.0
        %1944 = vmatpush1.msra.mxu0 %v1930
        %1945 = vmatprep.subr.mxu0 0.0
        %1946 = vmatpush1.msra.mxu0 0.0
        %1947 = vmatprep.subr.mxu0 0.0
        %1948 = vmatpush1.msra.mxu0 0.0
        %1949 = vmatprep.subr.mxu0 0.0
        %1950 = vmatpush1.msra.mxu0 0.0
        %1951 = vmatprep.subr.mxu0 0.0
        %1952 = vmatpush1.msra.mxu0 0.0
        %1953 = vmatprep.subr.mxu0 0.0
        %1954 = vmatpush1.msra.mxu0 0.0
        %1955 = vmatprep.subr.mxu0 0.0
        %1956 = vmatpush1.msra.mxu0 0.0
        %1957 = vmatprep.subr.mxu0 0.0
        %1958 = vmatpush1.msra.mxu0 0.0
        %1959 = vmatprep.subr.mxu0 0.0
        %1960 = vmatpush1.msra.mxu0 0.0
        %1961 = vmatprep.subr.mxu0 0.0
        %1962 = vmatpush1.msra.mxu0 0.0
        %1963 = vmatprep.subr.mxu0 0.0
        %1964 = vmatpush1.msra.mxu0 0.0
        %1965 = vmatprep.subr.mxu0 0.0
        %1966 = vmatpush1.msra.mxu0 0.0
        %1967 = vmatprep.subr.mxu0 0.0
        %1968 = vmatpush1.msra.mxu0 0.0
        %1969 = vmatprep.subr.mxu0 0.0
        %1970 = vmatpush1.msra.mxu0 0.0
        %1971 = vmatprep.subr.mxu0 0.0
        %1972 = vmatpush1.msra.mxu0 0.0
        %1973 = vmatprep.subr.mxu0 0.0
        %1974 = vmatpush1.msra.mxu0 0.0
        %1975 = vmatprep.subr.mxu0 0.0
        %1976 = vmatpush1.msra.mxu0 0.0
        %1977 = vmatprep.subr.mxu0 0.0
        %1978 = vmatpush1.msra.mxu0 0.0
        %1979 = vmatprep.subr.mxu0 0.0
        %1980 = vmatpush1.msra.mxu0 0.0
        %1981 = vmatprep.subr.mxu0 0.0
        %1982 = vmatpush1.msra.mxu0 0.0
        %1983 = vmatprep.subr.mxu0 0.0
        %1984 = vmatpush1.msra.mxu0 0.0
        %1985 = vmatprep.subr.mxu0 0.0
        %1986 = vmatpush1.msra.mxu0 0.0
        %1987 = vmatprep.subr.mxu0 0.0
        %1988 = vmatpush1.msra.mxu0 0.0
        %1989 = vmatprep.subr.mxu0 0.0
        %1990 = vmatpush1.msra.mxu0 0.0
        %1991 = vmatprep.subr.mxu0 0.0
        %1992 = vmatpush1.msra.mxu0 0.0
        %1993 = vmatprep.subr.mxu0 0.0
        %1994 = vmatpush1.msra.mxu0 0.0
        %1995 = vmatprep.subr.mxu0 0.0
        %1996 = vmatpush1.msra.mxu0 0.0
        %1997 = vmatprep.subr.mxu0 0.0
        %1998 = vmatpush1.msra.mxu0 0.0
        %1999 = vmatprep.subr.mxu0 0.0
        %2000 = vmatpush1.msra.mxu0 0.0
        %2001 = vmatprep.mubr.f32.mxu0 0.0
        %2002 = vmatmul.mubr.f32.gmra.mrb[0].mxu0 %v1932
        %v2003 = vpop.f32.mrb[0].mxu0
        %v2004 = vadd.f32 0.0, %v2003
        %v2005 = vpop.f32.mrb[0].mxu0
        %2006 = vmatprep.mubr.f32.mxu0 0.0
        %2007 = vmatmul.mubr.f32.gmra.mrb[0].mxu0 %v1935
        %v2008 = vpop.f32.mrb[0].mxu0
        %v2009 = vadd.f32 0.0, %v2008
        %v2010 = vpop.f32.mrb[0].mxu0
        %2011 = vdwg.mxu0
        %v2012 = vadd.f32 %v1917, %v2004
        %v2013 = vadd.f32 %v1922, %v2009
        %v2014 = vlaneseq
        %v2015 = vshrl.u32 %v2014, 7
        %v2016 = vsub.s32 0, %v2015
        %v2017 = vrot.slane %v1113, %v2016
        %v2018 = vadd.f32 %v2012, %v2017
        %v2019 = vadd.f32 %v2013, %v2017
        %v2020 = vlaneseq
        %v2021 = vshrl.u32 %v2020, 7
        %v2022 = vsub.s32 0, %v2021
        %v2023 = vrot.slane %v1925, %v2022
        %v2024 = vadd.f32 %v2018, %v2023
        %v2025 = vadd.f32 %v2019, %v2023
        %v2026 = vmax.f32 %v2024, 0.0
        %v2027 = vmax.f32 %v2025, 0.0
        %v2028 = vadd.f32 %v2026, 0.0
        %v2029 = vadd.f32 %v2027, 0.0
        %v2031 = vsel %vm697, %v1467, 0
        %v2034 = vsel %vm697, %v1468, 0
        %2036 = vmatprep.subr.mxu0 0.0
        %2037 = vmatpush1.msra.mxu0 %v1927
        %2038 = vmatprep.subr.mxu0 0.0
        %2039 = vmatpush1.msra.mxu0 %v1928
        %2040 = vmatprep.subr.mxu0 0.0
        %2041 = vmatpush1.msra.mxu0 %v1929
        %2042 = vmatprep.subr.mxu0 0.0
        %2043 = vmatpush1.msra.mxu0 %v1930
        %2044 = vmatprep.subr.mxu0 0.0
        %2045 = vmatpush1.msra.mxu0 0.0
        %2046 = vmatprep.subr.mxu0 0.0
        %2047 = vmatpush1.msra.mxu0 0.0
        %2048 = vmatprep.subr.mxu0 0.0
        %2049 = vmatpush1.msra.mxu0 0.0
        %2050 = vmatprep.subr.mxu0 0.0
        %2051 = vmatpush1.msra.mxu0 0.0
        %2052 = vmatprep.subr.mxu0 0.0
        %2053 = vmatpush1.msra.mxu0 0.0
        %2054 = vmatprep.subr.mxu0 0.0
        %2055 = vmatpush1.msra.mxu0 0.0
        %2056 = vmatprep.subr.mxu0 0.0
        %2057 = vmatpush1.msra.mxu0 0.0
        %2058 = vmatprep.subr.mxu0 0.0
        %2059 = vmatpush1.msra.mxu0 0.0
        %2060 = vmatprep.subr.mxu0 0.0
        %2061 = vmatpush1.msra.mxu0 0.0
        %2062 = vmatprep.subr.mxu0 0.0
        %2063 = vmatpush1.msra.mxu0 0.0
        %2064 = vmatprep.subr.mxu0 0.0
        %2065 = vmatpush1.msra.mxu0 0.0
        %2066 = vmatprep.subr.mxu0 0.0
        %2067 = vmatpush1.msra.mxu0 0.0
        %2068 = vmatprep.subr.mxu0 0.0
        %2069 = vmatpush1.msra.mxu0 0.0
        %2070 = vmatprep.subr.mxu0 0.0
        %2071 = vmatpush1.msra.mxu0 0.0
        %2072 = vmatprep.subr.mxu0 0.0
        %2073 = vmatpush1.msra.mxu0 0.0
        %2074 = vmatprep.subr.mxu0 0.0
        %2075 = vmatpush1.msra.mxu0 0.0
        %2076 = vmatprep.subr.mxu0 0.0
        %2077 = vmatpush1.msra.mxu0 0.0
        %2078 = vmatprep.subr.mxu0 0.0
        %2079 = vmatpush1.msra.mxu0 0.0
        %2080 = vmatprep.subr.mxu0 0.0
        %2081 = vmatpush1.msra.mxu0 0.0
        %2082 = vmatprep.subr.mxu0 0.0
        %2083 = vmatpush1.msra.mxu0 0.0
        %2084 = vmatprep.subr.mxu0 0.0
        %2085 = vmatpush1.msra.mxu0 0.0
        %2086 = vmatprep.subr.mxu0 0.0
        %2087 = vmatpush1.msra.mxu0 0.0
        %2088 = vmatprep.subr.mxu0 0.0
        %2089 = vmatpush1.msra.mxu0 0.0
        %2090 = vmatprep.subr.mxu0 0.0
        %2091 = vmatpush1.msra.mxu0 0.0
        %2092 = vmatprep.subr.mxu0 0.0
        %2093 = vmatpush1.msra.mxu0 0.0
        %2094 = vmatprep.subr.mxu0 0.0
        %2095 = vmatpush1.msra.mxu0 0.0
        %2096 = vmatprep.subr.mxu0 0.0
        %2097 = vmatpush1.msra.mxu0 0.0
        %2098 = vmatprep.subr.mxu0 0.0
        %2099 = vmatpush1.msra.mxu0 0.0
        %2100 = vmatprep.mubr.f32.mxu0 0.0
        %2101 = vmatmul.mubr.f32.gmra.mrb[0].mxu0 %v2031
        %v2102 = vpop.f32.mrb[0].mxu0
        %v2103 = vadd.f32 0.0, %v2102
        %v2104 = vpop.f32.mrb[0].mxu0
        %2105 = vmatprep.mubr.f32.mxu0 0.0
        %2106 = vmatmul.mubr.f32.gmra.mrb[0].mxu0 %v2034
        %v2107 = vpop.f32.mrb[0].mxu0
        %v2108 = vadd.f32 0.0, %v2107
        %v2109 = vpop.f32.mrb[0].mxu0
        %2110 = vdwg.mxu0
        %v2111 = vadd.f32 %v1917, %v2103
        %v2112 = vadd.f32 %v1922, %v2108
        %v2113 = vlaneseq
        %v2114 = vshrl.u32 %v2113, 7
        %v2115 = vsub.s32 1, %v2114
        %v2116 = vrot.slane %v1113, %v2115
        %v2117 = vadd.f32 %v2111, %v2116
        %v2118 = vadd.f32 %v2112, %v2116
        %v2119 = vadd.f32 %v2117, %v2023
        %v2120 = vadd.f32 %v2118, %v2023
        %v2121 = vmax.f32 %v2119, 0.0
        %v2122 = vmax.f32 %v2120, 0.0
        %v2123 = vadd.f32 %v2028, %v2121
        %v2124 = vadd.f32 %v2029, %v2122
        %v2126 = vsel %vm697, %v1636, 0
        %v2129 = vsel %vm697, %v1637, 0
        %2131 = vmatprep.subr.mxu0 0.0
        %2132 = vmatpush1.msra.mxu0 %v1927
        %2133 = vmatprep.subr.mxu0 0.0
        %2134 = vmatpush1.msra.mxu0 %v1928
        %2135 = vmatprep.subr.mxu0 0.0
        %2136 = vmatpush1.msra.mxu0 %v1929
        %2137 = vmatprep.subr.mxu0 0.0
        %2138 = vmatpush1.msra.mxu0 %v1930
        %2139 = vmatprep.subr.mxu0 0.0
        %2140 = vmatpush1.msra.mxu0 0.0
        %2141 = vmatprep.subr.mxu0 0.0
        %2142 = vmatpush1.msra.mxu0 0.0
        %2143 = vmatprep.subr.mxu0 0.0
        %2144 = vmatpush1.msra.mxu0 0.0
        %2145 = vmatprep.subr.mxu0 0.0
        %2146 = vmatpush1.msra.mxu0 0.0
        %2147 = vmatprep.subr.mxu0 0.0
        %2148 = vmatpush1.msra.mxu0 0.0
        %2149 = vmatprep.subr.mxu0 0.0
        %2150 = vmatpush1.msra.mxu0 0.0
        %2151 = vmatprep.subr.mxu0 0.0
        %2152 = vmatpush1.msra.mxu0 0.0
        %2153 = vmatprep.subr.mxu0 0.0
        %2154 = vmatpush1.msra.mxu0 0.0
        %2155 = vmatprep.subr.mxu0 0.0
        %2156 = vmatpush1.msra.mxu0 0.0
        %2157 = vmatprep.subr.mxu0 0.0
        %2158 = vmatpush1.msra.mxu0 0.0
        %2159 = vmatprep.subr.mxu0 0.0
        %2160 = vmatpush1.msra.mxu0 0.0
        %2161 = vmatprep.subr.mxu0 0.0
        %2162 = vmatpush1.msra.mxu0 0.0
        %2163 = vmatprep.subr.mxu0 0.0
        %2164 = vmatpush1.msra.mxu0 0.0
        %2165 = vmatprep.subr.mxu0 0.0
        %2166 = vmatpush1.msra.mxu0 0.0
        %2167 = vmatprep.subr.mxu0 0.0
        %2168 = vmatpush1.msra.mxu0 0.0
        %2169 = vmatprep.subr.mxu0 0.0
        %2170 = vmatpush1.msra.mxu0 0.0
        %2171 = vmatprep.subr.mxu0 0.0
        %2172 = vmatpush1.msra.mxu0 0.0
        %2173 = vmatprep.subr.mxu0 0.0
        %2174 = vmatpush1.msra.mxu0 0.0
        %2175 = vmatprep.subr.mxu0 0.0
        %2176 = vmatpush1.msra.mxu0 0.0
        %2177 = vmatprep.subr.mxu0 0.0
        %2178 = vmatpush1.msra.mxu0 0.0
        %2179 = vmatprep.subr.mxu0 0.0
        %2180 = vmatpush1.msra.mxu0 0.0
        %2181 = vmatprep.subr.mxu0 0.0
        %2182 = vmatpush1.msra.mxu0 0.0
        %2183 = vmatprep.subr.mxu0 0.0
        %2184 = vmatpush1.msra.mxu0 0.0
        %2185 = vmatprep.subr.mxu0 0.0
        %2186 = vmatpush1.msra.mxu0 0.0
        %2187 = vmatprep.subr.mxu0 0.0
        %2188 = vmatpush1.msra.mxu0 0.0
        %2189 = vmatprep.subr.mxu0 0.0
        %2190 = vmatpush1.msra.mxu0 0.0
        %2191 = vmatprep.subr.mxu0 0.0
        %2192 = vmatpush1.msra.mxu0 0.0
        %2193 = vmatprep.subr.mxu0 0.0
        %2194 = vmatpush1.msra.mxu0 0.0
        %2195 = vmatprep.mubr.f32.mxu0 0.0
        %2196 = vmatmul.mubr.f32.gmra.mrb[0].mxu0 %v2126
        %v2197 = vpop.f32.mrb[0].mxu0
        %v2198 = vadd.f32 0.0, %v2197
        %v2199 = vpop.f32.mrb[0].mxu0
        %2200 = vmatprep.mubr.f32.mxu0 0.0
        %2201 = vmatmul.mubr.f32.gmra.mrb[0].mxu0 %v2129
        %v2202 = vpop.f32.mrb[0].mxu0
        %v2203 = vadd.f32 0.0, %v2202
        %v2204 = vpop.f32.mrb[0].mxu0
        %2205 = vdwg.mxu0
        %v2206 = vadd.f32 %v1917, %v2198
        %v2207 = vadd.f32 %v1922, %v2203
        %v2208 = vlaneseq
        %v2209 = vshrl.u32 %v2208, 7
        %v2210 = vsub.s32 2, %v2209
        %v2211 = vrot.slane %v1113, %v2210
        %v2212 = vadd.f32 %v2206, %v2211
        %v2213 = vadd.f32 %v2207, %v2211
        %v2214 = vadd.f32 %v2212, %v2023
        %v2215 = vadd.f32 %v2213, %v2023
        %v2216 = vmax.f32 %v2214, 0.0
        %v2217 = vmax.f32 %v2215, 0.0
        %v2218 = vadd.f32 %v2123, %v2216
        %v2219 = vadd.f32 %v2124, %v2217
        %v2221 = vsel %vm697, %v1805, 0
        %v2224 = vsel %vm697, %v1806, 0
        %2226 = vmatprep.subr.mxu0 0.0
        %2227 = vmatpush1.msra.mxu0 %v1927
        %2228 = vmatprep.subr.mxu0 0.0
        %2229 = vmatpush1.msra.mxu0 %v1928
        %2230 = vmatprep.subr.mxu0 0.0
        %2231 = vmatpush1.msra.mxu0 %v1929
        %2232 = vmatprep.subr.mxu0 0.0
        %2233 = vmatpush1.msra.mxu0 %v1930
        %2234 = vmatprep.subr.mxu0 0.0
        %2235 = vmatpush1.msra.mxu0 0.0
        %2236 = vmatprep.subr.mxu0 0.0
        %2237 = vmatpush1.msra.mxu0 0.0
        %2238 = vmatprep.subr.mxu0 0.0
        %2239 = vmatpush1.msra.mxu0 0.0
        %2240 = vmatprep.subr.mxu0 0.0
        %2241 = vmatpush1.msra.mxu0 0.0
        %2242 = vmatprep.subr.mxu0 0.0
        %2243 = vmatpush1.msra.mxu0 0.0
        %2244 = vmatprep.subr.mxu0 0.0
        %2245 = vmatpush1.msra.mxu0 0.0
        %2246 = vmatprep.subr.mxu0 0.0
        %2247 = vmatpush1.msra.mxu0 0.0
        %2248 = vmatprep.subr.mxu0 0.0
        %2249 = vmatpush1.msra.mxu0 0.0
        %2250 = vmatprep.subr.mxu0 0.0
        %2251 = vmatpush1.msra.mxu0 0.0
        %2252 = vmatprep.subr.mxu0 0.0
        %2253 = vmatpush1.msra.mxu0 0.0
        %2254 = vmatprep.subr.mxu0 0.0
        %2255 = vmatpush1.msra.mxu0 0.0
        %2256 = vmatprep.subr.mxu0 0.0
        %2257 = vmatpush1.msra.mxu0 0.0
        %2258 = vmatprep.subr.mxu0 0.0
        %2259 = vmatpush1.msra.mxu0 0.0
        %2260 = vmatprep.subr.mxu0 0.0
        %2261 = vmatpush1.msra.mxu0 0.0
        %2262 = vmatprep.subr.mxu0 0.0
        %2263 = vmatpush1.msra.mxu0 0.0
        %2264 = vmatprep.subr.mxu0 0.0
        %2265 = vmatpush1.msra.mxu0 0.0
        %2266 = vmatprep.subr.mxu0 0.0
        %2267 = vmatpush1.msra.mxu0 0.0
        %2268 = vmatprep.subr.mxu0 0.0
        %2269 = vmatpush1.msra.mxu0 0.0
        %2270 = vmatprep.subr.mxu0 0.0
        %2271 = vmatpush1.msra.mxu0 0.0
        %2272 = vmatprep.subr.mxu0 0.0
        %2273 = vmatpush1.msra.mxu0 0.0
        %2274 = vmatprep.subr.mxu0 0.0
        %2275 = vmatpush1.msra.mxu0 0.0
        %2276 = vmatprep.subr.mxu0 0.0
        %2277 = vmatpush1.msra.mxu0 0.0
        %2278 = vmatprep.subr.mxu0 0.0
        %2279 = vmatpush1.msra.mxu0 0.0
        %2280 = vmatprep.subr.mxu0 0.0
        %2281 = vmatpush1.msra.mxu0 0.0
        %2282 = vmatprep.subr.mxu0 0.0
        %2283 = vmatpush1.msra.mxu0 0.0
        %2284 = vmatprep.subr.mxu0 0.0
        %2285 = vmatpush1.msra.mxu0 0.0
        %2286 = vmatprep.subr.mxu0 0.0
        %2287 = vmatpush1.msra.mxu0 0.0
        %2288 = vmatprep.subr.mxu0 0.0
        %2289 = vmatpush1.msra.mxu0 0.0
        %2290 = vmatprep.mubr.f32.mxu0 0.0
        %2291 = vmatmul.mubr.f32.gmra.mrb[0].mxu0 %v2221
        %v2292 = vpop.f32.mrb[0].mxu0
        %v2293 = vadd.f32 0.0, %v2292
        %v2294 = vpop.f32.mrb[0].mxu0
        %2295 = vmatprep.mubr.f32.mxu0 0.0
        %2296 = vmatmul.mubr.f32.gmra.mrb[0].mxu0 %v2224
        %v2297 = vpop.f32.mrb[0].mxu0
        %v2298 = vadd.f32 0.0, %v2297
        %v2299 = vpop.f32.mrb[0].mxu0
        %2300 = vdwg.mxu0
        %v2301 = vadd.f32 %v1917, %v2293
        %v2302 = vadd.f32 %v1922, %v2298
        %v2303 = vlaneseq
        %v2304 = vshrl.u32 %v2303, 7
        %v2305 = vsub.s32 3, %v2304
        %v2306 = vrot.slane %v1113, %v2305
        %v2307 = vadd.f32 %v2301, %v2306
        %v2308 = vadd.f32 %v2302, %v2306
        %v2309 = vadd.f32 %v2307, %v2023
        %v2310 = vadd.f32 %v2308, %v2023
        %v2311 = vmax.f32 %v2309, 0.0
        %v2312 = vmax.f32 %v2310, 0.0
        %v2313 = vadd.f32 %v2218, %v2311
        %v2314 = vadd.f32 %v2219, %v2312
        %2315 = vst.msk [vmem:[#allocation2] sm:$0xff] %vm697, 0.0
        %2316 = vst.msk [vmem:[#allocation2 + $0x8] sm:$0xff] %vm697, 0.0
        %2317 = vst.msk [vmem:[#allocation2 + $0x10] sm:$0xff] %vm697, 0.0
        %2318 = vst.msk [vmem:[#allocation2 + $0x18] sm:$0xff] %vm697, 0.0
        %2319 = vst.msk [vmem:[#allocation2 + $0x8] sm:$0xff] %vm697, %v2313
        %2320 = vst.msk [vmem:[#allocation2 + $0x10] sm:$0xff] %vm697, %v2314
        %s2321 = scalar_lea.vmem [#allocation2], 4
        %v2322 = vld [vmem:[%s2321] ss:$3 sm:$0x3f]
        %v2323 = vld [vmem:[#allocation14] sm:$0xff]
        %v2324 = vld [vmem:[#allocation14 + $0x8] sm:$0xff]
        %v2325 = vld [vmem:[#allocation14 + $0x10] sm:$0xff]
        %v2326 = vld [vmem:[#allocation14 + $0x18] sm:$0xff]
        %s2327 = scalar_lea.vmem [#allocation2], 5
        %v2328 = vld [vmem:[%s2327] ss:$3 sm:$0x3f]
        %s2329 = scalar_lea.vmem [#allocation14], 32
        %v2330 = vld [vmem:[%s2329] sm:$0xff]
        %v2331 = vld [vmem:[%s2329 + $0x8] sm:$0xff]
        %v2332 = vld [vmem:[%s2329 + $0x10] sm:$0xff]
        %v2333 = vld [vmem:[%s2329 + $0x18] sm:$0xff]
        %v2335 = vsel %vm697, %v2328, 0
        %2337 = vmatprep.subr.mxu0 0.0
        %2338 = vmatpush1.msra.mxu0 %v2330
        %2339 = vmatprep.subr.mxu0 0.0
        %2340 = vmatpush1.msra.mxu0 %v2331
        %2341 = vmatprep.subr.mxu0 0.0
        %2342 = vmatpush1.msra.mxu0 %v2332
        %2343 = vmatprep.subr.mxu0 0.0
        %2344 = vmatpush1.msra.mxu0 %v2333
        %2345 = vmatprep.subr.mxu0 0.0
        %2346 = vmatpush1.msra.mxu0 0.0
        %2347 = vmatprep.subr.mxu0 0.0
        %2348 = vmatpush1.msra.mxu0 0.0
        %2349 = vmatprep.subr.mxu0 0.0
        %2350 = vmatpush1.msra.mxu0 0.0
        %2351 = vmatprep.subr.mxu0 0.0
        %2352 = vmatpush1.msra.mxu0 0.0
        %2353 = vmatprep.subr.mxu0 0.0
        %2354 = vmatpush1.msra.mxu0 0.0
        %2355 = vmatprep.subr.mxu0 0.0
        %2356 = vmatpush1.msra.mxu0 0.0
        %2357 = vmatprep.subr.mxu0 0.0
        %2358 = vmatpush1.msra.mxu0 0.0
        %2359 = vmatprep.subr.mxu0 0.0
        %2360 = vmatpush1.msra.mxu0 0.0
        %2361 = vmatprep.subr.mxu0 0.0
        %2362 = vmatpush1.msra.mxu0 0.0
        %2363 = vmatprep.subr.mxu0 0.0
        %2364 = vmatpush1.msra.mxu0 0.0
        %2365 = vmatprep.subr.mxu0 0.0
        %2366 = vmatpush1.msra.mxu0 0.0
        %2367 = vmatprep.subr.mxu0 0.0
        %2368 = vmatpush1.msra.mxu0 0.0
        %2369 = vmatprep.subr.mxu0 0.0
        %2370 = vmatpush1.msra.mxu0 0.0
        %2371 = vmatprep.subr.mxu0 0.0
        %2372 = vmatpush1.msra.mxu0 0.0
        %2373 = vmatprep.subr.mxu0 0.0
        %2374 = vmatpush1.msra.mxu0 0.0
        %2375 = vmatprep.subr.mxu0 0.0
        %2376 = vmatpush1.msra.mxu0 0.0
        %2377 = vmatprep.subr.mxu0 0.0
        %2378 = vmatpush1.msra.mxu0 0.0
        %2379 = vmatprep.subr.mxu0 0.0
        %2380 = vmatpush1.msra.mxu0 0.0
        %2381 = vmatprep.subr.mxu0 0.0
        %2382 = vmatpush1.msra.mxu0 0.0
        %2383 = vmatprep.subr.mxu0 0.0
        %2384 = vmatpush1.msra.mxu0 0.0
        %2385 = vmatprep.subr.mxu0 0.0
        %2386 = vmatpush1.msra.mxu0 0.0
        %2387 = vmatprep.subr.mxu0 0.0
        %2388 = vmatpush1.msra.mxu0 0.0
        %2389 = vmatprep.subr.mxu0 0.0
        %2390 = vmatpush1.msra.mxu0 0.0
        %2391 = vmatprep.subr.mxu0 0.0
        %2392 = vmatpush1.msra.mxu0 0.0
        %2393 = vmatprep.subr.mxu0 0.0
        %2394 = vmatpush1.msra.mxu0 0.0
        %2395 = vmatprep.subr.mxu0 0.0
        %2396 = vmatpush1.msra.mxu0 0.0
        %2397 = vmatprep.subr.mxu0 0.0
        %2398 = vmatpush1.msra.mxu0 0.0
        %2399 = vmatprep.subr.mxu0 0.0
        %2400 = vmatpush1.msra.mxu0 0.0
        %2401 = vmatprep.mubr.f32.mxu0 0.0
        %2402 = vmatmul.mubr.f32.gmra.mrb[0].mxu0 %v2335
        %v2403 = vpop.f32.mrb[0].mxu0
        %v2404 = vadd.f32 0.0, %v2403
        %v2405 = vpop.f32.mrb[0].mxu0
        %2406 = vdwg.mxu0
        %v2408 = vsel %vm697, %v2322, 0
        %2410 = vmatprep.subr.mxu0 0.0
        %2411 = vmatpush1.msra.mxu0 %v2323
        %2412 = vmatprep.subr.mxu0 0.0
        %2413 = vmatpush1.msra.mxu0 %v2324
        %2414 = vmatprep.subr.mxu0 0.0
        %2415 = vmatpush1.msra.mxu0 %v2325
        %2416 = vmatprep.subr.mxu0 0.0
        %2417 = vmatpush1.msra.mxu0 %v2326
        %2418 = vmatprep.subr.mxu0 0.0
        %2419 = vmatpush1.msra.mxu0 0.0
        %2420 = vmatprep.subr.mxu0 0.0
        %2421 = vmatpush1.msra.mxu0 0.0
        %2422 = vmatprep.subr.mxu0 0.0
        %2423 = vmatpush1.msra.mxu0 0.0
        %2424 = vmatprep.subr.mxu0 0.0
        %2425 = vmatpush1.msra.mxu0 0.0
        %2426 = vmatprep.subr.mxu0 0.0
        %2427 = vmatpush1.msra.mxu0 0.0
        %2428 = vmatprep.subr.mxu0 0.0
        %2429 = vmatpush1.msra.mxu0 0.0
        %2430 = vmatprep.subr.mxu0 0.0
        %2431 = vmatpush1.msra.mxu0 0.0
        %2432 = vmatprep.subr.mxu0 0.0
        %2433 = vmatpush1.msra.mxu0 0.0
        %2434 = vmatprep.subr.mxu0 0.0
        %2435 = vmatpush1.msra.mxu0 0.0
        %2436 = vmatprep.subr.mxu0 0.0
        %2437 = vmatpush1.msra.mxu0 0.0
        %2438 = vmatprep.subr.mxu0 0.0
        %2439 = vmatpush1.msra.mxu0 0.0
        %2440 = vmatprep.subr.mxu0 0.0
        %2441 = vmatpush1.msra.mxu0 0.0
        %2442 = vmatprep.subr.mxu0 0.0
        %2443 = vmatpush1.msra.mxu0 0.0
        %2444 = vmatprep.subr.mxu0 0.0
        %2445 = vmatpush1.msra.mxu0 0.0
        %2446 = vmatprep.subr.mxu0 0.0
        %2447 = vmatpush1.msra.mxu0 0.0
        %2448 = vmatprep.subr.mxu0 0.0
        %2449 = vmatpush1.msra.mxu0 0.0
        %2450 = vmatprep.subr.mxu0 0.0
        %2451 = vmatpush1.msra.mxu0 0.0
        %2452 = vmatprep.subr.mxu0 0.0
        %2453 = vmatpush1.msra.mxu0 0.0
        %2454 = vmatprep.subr.mxu0 0.0
        %2455 = vmatpush1.msra.mxu0 0.0
        %2456 = vmatprep.subr.mxu0 0.0
        %2457 = vmatpush1.msra.mxu0 0.0
        %2458 = vmatprep.subr.mxu0 0.0
        %2459 = vmatpush1.msra.mxu0 0.0
        %2460 = vmatprep.subr.mxu0 0.0
        %2461 = vmatpush1.msra.mxu0 0.0
        %2462 = vmatprep.subr.mxu0 0.0
        %2463 = vmatpush1.msra.mxu0 0.0
        %2464 = vmatprep.subr.mxu0 0.0
        %2465 = vmatpush1.msra.mxu0 0.0
        %2466 = vmatprep.subr.mxu0 0.0
        %2467 = vmatpush1.msra.mxu0 0.0
        %2468 = vmatprep.subr.mxu0 0.0
        %2469 = vmatpush1.msra.mxu0 0.0
        %2470 = vmatprep.subr.mxu0 0.0
        %2471 = vmatpush1.msra.mxu0 0.0
        %2472 = vmatprep.subr.mxu0 0.0
        %2473 = vmatpush1.msra.mxu0 0.0
        %2474 = vmatprep.mubr.f32.mxu0 0.0
        %2475 = vmatmul.mubr.f32.gmra.mrb[0].mxu0 %v2408
        %v2476 = vpop.f32.mrb[0].mxu0
        %v2477 = vadd.f32 %v2404, %v2476
        %v2478 = vpop.f32.mrb[0].mxu0
        %2479 = vdwg.mxu0
        %s2480 = scalar_lea.vmem [#allocation2], 6
        %v2481 = vld [vmem:[%s2480] ss:$3 sm:$0x3f]
        %s2482 = scalar_lea.vmem [#allocation14], 64
        %v2483 = vld [vmem:[%s2482] sm:$0xff]
        %v2484 = vld [vmem:[%s2482 + $0x8] sm:$0xff]
        %v2485 = vld [vmem:[%s2482 + $0x10] sm:$0xff]
        %v2486 = vld [vmem:[%s2482 + $0x18] sm:$0xff]
        %v2488 = vsel %vm697, %v2481, 0
        %2490 = vmatprep.subr.mxu0 0.0
        %2491 = vmatpush1.msra.mxu0 %v2483
        %2492 = vmatprep.subr.mxu0 0.0
        %2493 = vmatpush1.msra.mxu0 %v2484
        %2494 = vmatprep.subr.mxu0 0.0
        %2495 = vmatpush1.msra.mxu0 %v2485
        %2496 = vmatprep.subr.mxu0 0.0
        %2497 = vmatpush1.msra.mxu0 %v2486
        %2498 = vmatprep.subr.mxu0 0.0
        %2499 = vmatpush1.msra.mxu0 0.0
        %2500 = vmatprep.subr.mxu0 0.0
        %2501 = vmatpush1.msra.mxu0 0.0
        %2502 = vmatprep.subr.mxu0 0.0
        %2503 = vmatpush1.msra.mxu0 0.0
        %2504 = vmatprep.subr.mxu0 0.0
        %2505 = vmatpush1.msra.mxu0 0.0
        %2506 = vmatprep.subr.mxu0 0.0
        %2507 = vmatpush1.msra.mxu0 0.0
        %2508 = vmatprep.subr.mxu0 0.0
        %2509 = vmatpush1.msra.mxu0 0.0
        %2510 = vmatprep.subr.mxu0 0.0
        %2511 = vmatpush1.msra.mxu0 0.0
        %2512 = vmatprep.subr.mxu0 0.0
        %2513 = vmatpush1.msra.mxu0 0.0
        %2514 = vmatprep.subr.mxu0 0.0
        %2515 = vmatpush1.msra.mxu0 0.0
        %2516 = vmatprep.subr.mxu0 0.0
        %2517 = vmatpush1.msra.mxu0 0.0
        %2518 = vmatprep.subr.mxu0 0.0
        %2519 = vmatpush1.msra.mxu0 0.0
        %2520 = vmatprep.subr.mxu0 0.0
        %2521 = vmatpush1.msra.mxu0 0.0
        %2522 = vmatprep.subr.mxu0 0.0
        %2523 = vmatpush1.msra.mxu0 0.0
        %2524 = vmatprep.subr.mxu0 0.0
        %2525 = vmatpush1.msra.mxu0 0.0
        %2526 = vmatprep.subr.mxu0 0.0
        %2527 = vmatpush1.msra.mxu0 0.0
        %2528 = vmatprep.subr.mxu0 0.0
        %2529 = vmatpush1.msra.mxu0 0.0
        %2530 = vmatprep.subr.mxu0 0.0
        %2531 = vmatpush1.msra.mxu0 0.0
        %2532 = vmatprep.subr.mxu0 0.0
        %2533 = vmatpush1.msra.mxu0 0.0
        %2534 = vmatprep.subr.mxu0 0.0
        %2535 = vmatpush1.msra.mxu0 0.0
        %2536 = vmatprep.subr.mxu0 0.0
        %2537 = vmatpush1.msra.mxu0 0.0
        %2538 = vmatprep.subr.mxu0 0.0
        %2539 = vmatpush1.msra.mxu0 0.0
        %2540 = vmatprep.subr.mxu0 0.0
        %2541 = vmatpush1.msra.mxu0 0.0
        %2542 = vmatprep.subr.mxu0 0.0
        %2543 = vmatpush1.msra.mxu0 0.0
        %2544 = vmatprep.subr.mxu0 0.0
        %2545 = vmatpush1.msra.mxu0 0.0
        %2546 = vmatprep.subr.mxu0 0.0
        %2547 = vmatpush1.msra.mxu0 0.0
        %2548 = vmatprep.subr.mxu0 0.0
        %2549 = vmatpush1.msra.mxu0 0.0
        %2550 = vmatprep.subr.mxu0 0.0
        %2551 = vmatpush1.msra.mxu0 0.0
        %2552 = vmatprep.subr.mxu0 0.0
        %2553 = vmatpush1.msra.mxu0 0.0
        %2554 = vmatprep.mubr.f32.mxu0 0.0
        %2555 = vmatmul.mubr.f32.gmra.mrb[0].mxu0 %v2488
        %v2556 = vpop.f32.mrb[0].mxu0
        %v2557 = vadd.f32 0.0, %v2556
        %v2558 = vpop.f32.mrb[0].mxu0
        %2559 = vdwg.mxu0
        %v2560 = vadd.f32 %v2477, %v2557
        %s2561 = scalar_lea.vmem [#allocation2], 7
        %v2562 = vld [vmem:[%s2561] ss:$3 sm:$0x3f]
        %s2563 = scalar_lea.vmem [#allocation14], 96
        %v2564 = vld [vmem:[%s2563] sm:$0xff]
        %v2565 = vld [vmem:[%s2563 + $0x8] sm:$0xff]
        %v2566 = vld [vmem:[%s2563 + $0x10] sm:$0xff]
        %v2567 = vld [vmem:[%s2563 + $0x18] sm:$0xff]
        %v2569 = vsel %vm697, %v2562, 0
        %2571 = vmatprep.subr.mxu0 0.0
        %2572 = vmatpush1.msra.mxu0 %v2564
        %2573 = vmatprep.subr.mxu0 0.0
        %2574 = vmatpush1.msra.mxu0 %v2565
        %2575 = vmatprep.subr.mxu0 0.0
        %2576 = vmatpush1.msra.mxu0 %v2566
        %2577 = vmatprep.subr.mxu0 0.0
        %2578 = vmatpush1.msra.mxu0 %v2567
        %2579 = vmatprep.subr.mxu0 0.0
        %2580 = vmatpush1.msra.mxu0 0.0
        %2581 = vmatprep.subr.mxu0 0.0
        %2582 = vmatpush1.msra.mxu0 0.0
        %2583 = vmatprep.subr.mxu0 0.0
        %2584 = vmatpush1.msra.mxu0 0.0
        %2585 = vmatprep.subr.mxu0 0.0
        %2586 = vmatpush1.msra.mxu0 0.0
        %2587 = vmatprep.subr.mxu0 0.0
        %2588 = vmatpush1.msra.mxu0 0.0
        %2589 = vmatprep.subr.mxu0 0.0
        %2590 = vmatpush1.msra.mxu0 0.0
        %2591 = vmatprep.subr.mxu0 0.0
        %2592 = vmatpush1.msra.mxu0 0.0
        %2593 = vmatprep.subr.mxu0 0.0
        %2594 = vmatpush1.msra.mxu0 0.0
        %2595 = vmatprep.subr.mxu0 0.0
        %2596 = vmatpush1.msra.mxu0 0.0
        %2597 = vmatprep.subr.mxu0 0.0
        %2598 = vmatpush1.msra.mxu0 0.0
        %2599 = vmatprep.subr.mxu0 0.0
        %2600 = vmatpush1.msra.mxu0 0.0
        %2601 = vmatprep.subr.mxu0 0.0
        %2602 = vmatpush1.msra.mxu0 0.0
        %2603 = vmatprep.subr.mxu0 0.0
        %2604 = vmatpush1.msra.mxu0 0.0
        %2605 = vmatprep.subr.mxu0 0.0
        %2606 = vmatpush1.msra.mxu0 0.0
        %2607 = vmatprep.subr.mxu0 0.0
        %2608 = vmatpush1.msra.mxu0 0.0
        %2609 = vmatprep.subr.mxu0 0.0
        %2610 = vmatpush1.msra.mxu0 0.0
        %2611 = vmatprep.subr.mxu0 0.0
        %2612 = vmatpush1.msra.mxu0 0.0
        %2613 = vmatprep.subr.mxu0 0.0
        %2614 = vmatpush1.msra.mxu0 0.0
        %2615 = vmatprep.subr.mxu0 0.0
        %2616 = vmatpush1.msra.mxu0 0.0
        %2617 = vmatprep.subr.mxu0 0.0
        %2618 = vmatpush1.msra.mxu0 0.0
        %2619 = vmatprep.subr.mxu0 0.0
        %2620 = vmatpush1.msra.mxu0 0.0
        %2621 = vmatprep.subr.mxu0 0.0
        %2622 = vmatpush1.msra.mxu0 0.0
        %2623 = vmatprep.subr.mxu0 0.0
        %2624 = vmatpush1.msra.mxu0 0.0
        %2625 = vmatprep.subr.mxu0 0.0
        %2626 = vmatpush1.msra.mxu0 0.0
        %2627 = vmatprep.subr.mxu0 0.0
        %2628 = vmatpush1.msra.mxu0 0.0
        %2629 = vmatprep.subr.mxu0 0.0
        %2630 = vmatpush1.msra.mxu0 0.0
        %2631 = vmatprep.subr.mxu0 0.0
        %2632 = vmatpush1.msra.mxu0 0.0
        %2633 = vmatprep.subr.mxu0 0.0
        %2634 = vmatpush1.msra.mxu0 0.0
        %2635 = vmatprep.mubr.f32.mxu0 0.0
        %2636 = vmatmul.mubr.f32.gmra.mrb[0].mxu0 %v2569
        %v2637 = vpop.f32.mrb[0].mxu0
        %v2638 = vadd.f32 0.0, %v2637
        %v2639 = vpop.f32.mrb[0].mxu0
        %2640 = vdwg.mxu0
        %v2641 = vadd.f32 %v2560, %v2638
        %s2642 = scalar_lea.vmem [#allocation2], 8
        %v2643 = vld [vmem:[%s2642] ss:$3 sm:$0x3f]
        %s2644 = scalar_lea.vmem [#allocation14], 128
        %v2645 = vld [vmem:[%s2644] sm:$0xff]
        %v2646 = vld [vmem:[%s2644 + $0x8] sm:$0xff]
        %v2647 = vld [vmem:[%s2644 + $0x10] sm:$0xff]
        %v2648 = vld [vmem:[%s2644 + $0x18] sm:$0xff]
        %v2650 = vsel %vm697, %v2643, 0
        %2652 = vmatprep.subr.mxu0 0.0
        %2653 = vmatpush1.msra.mxu0 %v2645
        %2654 = vmatprep.subr.mxu0 0.0
        %2655 = vmatpush1.msra.mxu0 %v2646
        %2656 = vmatprep.subr.mxu0 0.0
        %2657 = vmatpush1.msra.mxu0 %v2647
        %2658 = vmatprep.subr.mxu0 0.0
        %2659 = vmatpush1.msra.mxu0 %v2648
        %2660 = vmatprep.subr.mxu0 0.0
        %2661 = vmatpush1.msra.mxu0 0.0
        %2662 = vmatprep.subr.mxu0 0.0
        %2663 = vmatpush1.msra.mxu0 0.0
        %2664 = vmatprep.subr.mxu0 0.0
        %2665 = vmatpush1.msra.mxu0 0.0
        %2666 = vmatprep.subr.mxu0 0.0
        %2667 = vmatpush1.msra.mxu0 0.0
        %2668 = vmatprep.subr.mxu0 0.0
        %2669 = vmatpush1.msra.mxu0 0.0
        %2670 = vmatprep.subr.mxu0 0.0
        %2671 = vmatpush1.msra.mxu0 0.0
        %2672 = vmatprep.subr.mxu0 0.0
        %2673 = vmatpush1.msra.mxu0 0.0
        %2674 = vmatprep.subr.mxu0 0.0
        %2675 = vmatpush1.msra.mxu0 0.0
        %2676 = vmatprep.subr.mxu0 0.0
        %2677 = vmatpush1.msra.mxu0 0.0
        %2678 = vmatprep.subr.mxu0 0.0
        %2679 = vmatpush1.msra.mxu0 0.0
        %2680 = vmatprep.subr.mxu0 0.0
        %2681 = vmatpush1.msra.mxu0 0.0
        %2682 = vmatprep.subr.mxu0 0.0
        %2683 = vmatpush1.msra.mxu0 0.0
        %2684 = vmatprep.subr.mxu0 0.0
        %2685 = vmatpush1.msra.mxu0 0.0
        %2686 = vmatprep.subr.mxu0 0.0
        %2687 = vmatpush1.msra.mxu0 0.0
        %2688 = vmatprep.subr.mxu0 0.0
        %2689 = vmatpush1.msra.mxu0 0.0
        %2690 = vmatprep.subr.mxu0 0.0
        %2691 = vmatpush1.msra.mxu0 0.0
        %2692 = vmatprep.subr.mxu0 0.0
        %2693 = vmatpush1.msra.mxu0 0.0
        %2694 = vmatprep.subr.mxu0 0.0
        %2695 = vmatpush1.msra.mxu0 0.0
        %2696 = vmatprep.subr.mxu0 0.0
        %2697 = vmatpush1.msra.mxu0 0.0
        %2698 = vmatprep.subr.mxu0 0.0
        %2699 = vmatpush1.msra.mxu0 0.0
        %2700 = vmatprep.subr.mxu0 0.0
        %2701 = vmatpush1.msra.mxu0 0.0
        %2702 = vmatprep.subr.mxu0 0.0
        %2703 = vmatpush1.msra.mxu0 0.0
        %2704 = vmatprep.subr.mxu0 0.0
        %2705 = vmatpush1.msra.mxu0 0.0
        %2706 = vmatprep.subr.mxu0 0.0
        %2707 = vmatpush1.msra.mxu0 0.0
        %2708 = vmatprep.subr.mxu0 0.0
        %2709 = vmatpush1.msra.mxu0 0.0
        %2710 = vmatprep.subr.mxu0 0.0
        %2711 = vmatpush1.msra.mxu0 0.0
        %2712 = vmatprep.subr.mxu0 0.0
        %2713 = vmatpush1.msra.mxu0 0.0
        %2714 = vmatprep.subr.mxu0 0.0
        %2715 = vmatpush1.msra.mxu0 0.0
        %2716 = vmatprep.mubr.f32.mxu0 0.0
        %2717 = vmatmul.mubr.f32.gmra.mrb[0].mxu0 %v2650
        %v2718 = vpop.f32.mrb[0].mxu0
        %v2719 = vadd.f32 0.0, %v2718
        %v2720 = vpop.f32.mrb[0].mxu0
        %2721 = vdwg.mxu0
        %v2722 = vadd.f32 %v2641, %v2719
        %s2723 = scalar_lea.vmem [#allocation2], 9
        %v2724 = vld [vmem:[%s2723] ss:$3 sm:$0x3f]
        %s2725 = scalar_lea.vmem [#allocation14], 160
        %v2726 = vld [vmem:[%s2725] sm:$0xff]
        %v2727 = vld [vmem:[%s2725 + $0x8] sm:$0xff]
        %v2728 = vld [vmem:[%s2725 + $0x10] sm:$0xff]
        %v2729 = vld [vmem:[%s2725 + $0x18] sm:$0xff]
        %v2731 = vsel %vm697, %v2724, 0
        %2733 = vmatprep.subr.mxu0 0.0
        %2734 = vmatpush1.msra.mxu0 %v2726
        %2735 = vmatprep.subr.mxu0 0.0
        %2736 = vmatpush1.msra.mxu0 %v2727
        %2737 = vmatprep.subr.mxu0 0.0
        %2738 = vmatpush1.msra.mxu0 %v2728
        %2739 = vmatprep.subr.mxu0 0.0
        %2740 = vmatpush1.msra.mxu0 %v2729
        %2741 = vmatprep.subr.mxu0 0.0
        %2742 = vmatpush1.msra.mxu0 0.0
        %2743 = vmatprep.subr.mxu0 0.0
        %2744 = vmatpush1.msra.mxu0 0.0
        %2745 = vmatprep.subr.mxu0 0.0
        %2746 = vmatpush1.msra.mxu0 0.0
        %2747 = vmatprep.subr.mxu0 0.0
        %2748 = vmatpush1.msra.mxu0 0.0
        %2749 = vmatprep.subr.mxu0 0.0
        %2750 = vmatpush1.msra.mxu0 0.0
        %2751 = vmatprep.subr.mxu0 0.0
        %2752 = vmatpush1.msra.mxu0 0.0
        %2753 = vmatprep.subr.mxu0 0.0
        %2754 = vmatpush1.msra.mxu0 0.0
        %2755 = vmatprep.subr.mxu0 0.0
        %2756 = vmatpush1.msra.mxu0 0.0
        %2757 = vmatprep.subr.mxu0 0.0
        %2758 = vmatpush1.msra.mxu0 0.0
        %2759 = vmatprep.subr.mxu0 0.0
        %2760 = vmatpush1.msra.mxu0 0.0
        %2761 = vmatprep.subr.mxu0 0.0
        %2762 = vmatpush1.msra.mxu0 0.0
        %2763 = vmatprep.subr.mxu0 0.0
        %2764 = vmatpush1.msra.mxu0 0.0
        %2765 = vmatprep.subr.mxu0 0.0
        %2766 = vmatpush1.msra.mxu0 0.0
        %2767 = vmatprep.subr.mxu0 0.0
        %2768 = vmatpush1.msra.mxu0 0.0
        %2769 = vmatprep.subr.mxu0 0.0
        %2770 = vmatpush1.msra.mxu0 0.0
        %2771 = vmatprep.subr.mxu0 0.0
        %2772 = vmatpush1.msra.mxu0 0.0
        %2773 = vmatprep.subr.mxu0 0.0
        %2774 = vmatpush1.msra.mxu0 0.0
        %2775 = vmatprep.subr.mxu0 0.0
        %2776 = vmatpush1.msra.mxu0 0.0
        %2777 = vmatprep.subr.mxu0 0.0
        %2778 = vmatpush1.msra.mxu0 0.0
        %2779 = vmatprep.subr.mxu0 0.0
        %2780 = vmatpush1.msra.mxu0 0.0
        %2781 = vmatprep.subr.mxu0 0.0
        %2782 = vmatpush1.msra.mxu0 0.0
        %2783 = vmatprep.subr.mxu0 0.0
        %2784 = vmatpush1.msra.mxu0 0.0
        %2785 = vmatprep.subr.mxu0 0.0
        %2786 = vmatpush1.msra.mxu0 0.0
        %2787 = vmatprep.subr.mxu0 0.0
        %2788 = vmatpush1.msra.mxu0 0.0
        %2789 = vmatprep.subr.mxu0 0.0
        %2790 = vmatpush1.msra.mxu0 0.0
        %2791 = vmatprep.subr.mxu0 0.0
        %2792 = vmatpush1.msra.mxu0 0.0
        %2793 = vmatprep.subr.mxu0 0.0
        %2794 = vmatpush1.msra.mxu0 0.0
        %2795 = vmatprep.subr.mxu0 0.0
        %2796 = vmatpush1.msra.mxu0 0.0
        %2797 = vmatprep.mubr.f32.mxu0 0.0
        %2798 = vmatmul.mubr.f32.gmra.mrb[0].mxu0 %v2731
        %v2799 = vpop.f32.mrb[0].mxu0
        %v2800 = vadd.f32 0.0, %v2799
        %v2801 = vpop.f32.mrb[0].mxu0
        %2802 = vdwg.mxu0
        %v2803 = vadd.f32 %v2722, %v2800
        %s2804 = scalar_lea.vmem [#allocation2], 10
        %v2805 = vld [vmem:[%s2804] ss:$3 sm:$0x3f]
        %s2806 = scalar_lea.vmem [#allocation14], 192
        %v2807 = vld [vmem:[%s2806] sm:$0xff]
        %v2808 = vld [vmem:[%s2806 + $0x8] sm:$0xff]
        %v2809 = vld [vmem:[%s2806 + $0x10] sm:$0xff]
        %v2810 = vld [vmem:[%s2806 + $0x18] sm:$0xff]
        %v2812 = vsel %vm697, %v2805, 0
        %2814 = vmatprep.subr.mxu0 0.0
        %2815 = vmatpush1.msra.mxu0 %v2807
        %2816 = vmatprep.subr.mxu0 0.0
        %2817 = vmatpush1.msra.mxu0 %v2808
        %2818 = vmatprep.subr.mxu0 0.0
        %2819 = vmatpush1.msra.mxu0 %v2809
        %2820 = vmatprep.subr.mxu0 0.0
        %2821 = vmatpush1.msra.mxu0 %v2810
        %2822 = vmatprep.subr.mxu0 0.0
        %2823 = vmatpush1.msra.mxu0 0.0
        %2824 = vmatprep.subr.mxu0 0.0
        %2825 = vmatpush1.msra.mxu0 0.0
        %2826 = vmatprep.subr.mxu0 0.0
        %2827 = vmatpush1.msra.mxu0 0.0
        %2828 = vmatprep.subr.mxu0 0.0
        %2829 = vmatpush1.msra.mxu0 0.0
        %2830 = vmatprep.subr.mxu0 0.0
        %2831 = vmatpush1.msra.mxu0 0.0
        %2832 = vmatprep.subr.mxu0 0.0
        %2833 = vmatpush1.msra.mxu0 0.0
        %2834 = vmatprep.subr.mxu0 0.0
        %2835 = vmatpush1.msra.mxu0 0.0
        %2836 = vmatprep.subr.mxu0 0.0
        %2837 = vmatpush1.msra.mxu0 0.0
        %2838 = vmatprep.subr.mxu0 0.0
        %2839 = vmatpush1.msra.mxu0 0.0
        %2840 = vmatprep.subr.mxu0 0.0
        %2841 = vmatpush1.msra.mxu0 0.0
        %2842 = vmatprep.subr.mxu0 0.0
        %2843 = vmatpush1.msra.mxu0 0.0
        %2844 = vmatprep.subr.mxu0 0.0
        %2845 = vmatpush1.msra.mxu0 0.0
        %2846 = vmatprep.subr.mxu0 0.0
        %2847 = vmatpush1.msra.mxu0 0.0
        %2848 = vmatprep.subr.mxu0 0.0
        %2849 = vmatpush1.msra.mxu0 0.0
        %2850 = vmatprep.subr.mxu0 0.0
        %2851 = vmatpush1.msra.mxu0 0.0
        %2852 = vmatprep.subr.mxu0 0.0
        %2853 = vmatpush1.msra.mxu0 0.0
        %2854 = vmatprep.subr.mxu0 0.0
        %2855 = vmatpush1.msra.mxu0 0.0
        %2856 = vmatprep.subr.mxu0 0.0
        %2857 = vmatpush1.msra.mxu0 0.0
        %2858 = vmatprep.subr.mxu0 0.0
        %2859 = vmatpush1.msra.mxu0 0.0
        %2860 = vmatprep.subr.mxu0 0.0
        %2861 = vmatpush1.msra.mxu0 0.0
        %2862 = vmatprep.subr.mxu0 0.0
        %2863 = vmatpush1.msra.mxu0 0.0
        %2864 = vmatprep.subr.mxu0 0.0
        %2865 = vmatpush1.msra.mxu0 0.0
        %2866 = vmatprep.subr.mxu0 0.0
        %2867 = vmatpush1.msra.mxu0 0.0
        %2868 = vmatprep.subr.mxu0 0.0
        %2869 = vmatpush1.msra.mxu0 0.0
        %2870 = vmatprep.subr.mxu0 0.0
        %2871 = vmatpush1.msra.mxu0 0.0
        %2872 = vmatprep.subr.mxu0 0.0
        %2873 = vmatpush1.msra.mxu0 0.0
        %2874 = vmatprep.subr.mxu0 0.0
        %2875 = vmatpush1.msra.mxu0 0.0
        %2876 = vmatprep.subr.mxu0 0.0
        %2877 = vmatpush1.msra.mxu0 0.0
        %2878 = vmatprep.mubr.f32.mxu0 0.0
        %2879 = vmatmul.mubr.f32.gmra.mrb[0].mxu0 %v2812
        %v2880 = vpop.f32.mrb[0].mxu0
        %v2881 = vadd.f32 0.0, %v2880
        %v2882 = vpop.f32.mrb[0].mxu0
        %2883 = vdwg.mxu0
        %v2884 = vadd.f32 %v2803, %v2881
        %s2885 = scalar_lea.vmem [#allocation2], 11
        %v2886 = vld [vmem:[%s2885] ss:$3 sm:$0x3f]
        %s2887 = scalar_lea.vmem [#allocation14], 224
        %v2888 = vld [vmem:[%s2887] sm:$0xff]
        %v2889 = vld [vmem:[%s2887 + $0x8] sm:$0xff]
        %v2890 = vld [vmem:[%s2887 + $0x10] sm:$0xff]
        %v2891 = vld [vmem:[%s2887 + $0x18] sm:$0xff]
        %v2893 = vsel %vm697, %v2886, 0
        %2895 = vmatprep.subr.mxu0 0.0
        %2896 = vmatpush1.msra.mxu0 %v2888
        %2897 = vmatprep.subr.mxu0 0.0
        %2898 = vmatpush1.msra.mxu0 %v2889
        %2899 = vmatprep.subr.mxu0 0.0
        %2900 = vmatpush1.msra.mxu0 %v2890
        %2901 = vmatprep.subr.mxu0 0.0
        %2902 = vmatpush1.msra.mxu0 %v2891
        %2903 = vmatprep.subr.mxu0 0.0
        %2904 = vmatpush1.msra.mxu0 0.0
        %2905 = vmatprep.subr.mxu0 0.0
        %2906 = vmatpush1.msra.mxu0 0.0
        %2907 = vmatprep.subr.mxu0 0.0
        %2908 = vmatpush1.msra.mxu0 0.0
        %2909 = vmatprep.subr.mxu0 0.0
        %2910 = vmatpush1.msra.mxu0 0.0
        %2911 = vmatprep.subr.mxu0 0.0
        %2912 = vmatpush1.msra.mxu0 0.0
        %2913 = vmatprep.subr.mxu0 0.0
        %2914 = vmatpush1.msra.mxu0 0.0
        %2915 = vmatprep.subr.mxu0 0.0
        %2916 = vmatpush1.msra.mxu0 0.0
        %2917 = vmatprep.subr.mxu0 0.0
        %2918 = vmatpush1.msra.mxu0 0.0
        %2919 = vmatprep.subr.mxu0 0.0
        %2920 = vmatpush1.msra.mxu0 0.0
        %2921 = vmatprep.subr.mxu0 0.0
        %2922 = vmatpush1.msra.mxu0 0.0
        %2923 = vmatprep.subr.mxu0 0.0
        %2924 = vmatpush1.msra.mxu0 0.0
        %2925 = vmatprep.subr.mxu0 0.0
        %2926 = vmatpush1.msra.mxu0 0.0
        %2927 = vmatprep.subr.mxu0 0.0
        %2928 = vmatpush1.msra.mxu0 0.0
        %2929 = vmatprep.subr.mxu0 0.0
        %2930 = vmatpush1.msra.mxu0 0.0
        %2931 = vmatprep.subr.mxu0 0.0
        %2932 = vmatpush1.msra.mxu0 0.0
        %2933 = vmatprep.subr.mxu0 0.0
        %2934 = vmatpush1.msra.mxu0 0.0
        %2935 = vmatprep.subr.mxu0 0.0
        %2936 = vmatpush1.msra.mxu0 0.0
        %2937 = vmatprep.subr.mxu0 0.0
        %2938 = vmatpush1.msra.mxu0 0.0
        %2939 = vmatprep.subr.mxu0 0.0
        %2940 = vmatpush1.msra.mxu0 0.0
        %2941 = vmatprep.subr.mxu0 0.0
        %2942 = vmatpush1.msra.mxu0 0.0
        %2943 = vmatprep.subr.mxu0 0.0
        %2944 = vmatpush1.msra.mxu0 0.0
        %2945 = vmatprep.subr.mxu0 0.0
        %2946 = vmatpush1.msra.mxu0 0.0
        %2947 = vmatprep.subr.mxu0 0.0
        %2948 = vmatpush1.msra.mxu0 0.0
        %2949 = vmatprep.subr.mxu0 0.0
        %2950 = vmatpush1.msra.mxu0 0.0
        %2951 = vmatprep.subr.mxu0 0.0
        %2952 = vmatpush1.msra.mxu0 0.0
        %2953 = vmatprep.subr.mxu0 0.0
        %2954 = vmatpush1.msra.mxu0 0.0
        %2955 = vmatprep.subr.mxu0 0.0
        %2956 = vmatpush1.msra.mxu0 0.0
        %2957 = vmatprep.subr.mxu0 0.0
        %2958 = vmatpush1.msra.mxu0 0.0
        %2959 = vmatprep.mubr.f32.mxu0 0.0
        %2960 = vmatmul.mubr.f32.gmra.mrb[0].mxu0 %v2893
        %v2961 = vpop.f32.mrb[0].mxu0
        %v2962 = vadd.f32 0.0, %v2961
        %v2963 = vpop.f32.mrb[0].mxu0
        %2964 = vdwg.mxu0
        %v2965 = vadd.f32 %v2884, %v2962
        %s2966 = scalar_lea.vmem [#allocation2], 12
        %v2967 = vld [vmem:[%s2966] ss:$3 sm:$0x3f]
        %s2968 = scalar_lea.vmem [#allocation14], 256
        %v2969 = vld [vmem:[%s2968] sm:$0xff]
        %v2970 = vld [vmem:[%s2968 + $0x8] sm:$0xff]
        %v2971 = vld [vmem:[%s2968 + $0x10] sm:$0xff]
        %v2972 = vld [vmem:[%s2968 + $0x18] sm:$0xff]
        %v2974 = vsel %vm697, %v2967, 0
        %2976 = vmatprep.subr.mxu0 0.0
        %2977 = vmatpush1.msra.mxu0 %v2969
        %2978 = vmatprep.subr.mxu0 0.0
        %2979 = vmatpush1.msra.mxu0 %v2970
        %2980 = vmatprep.subr.mxu0 0.0
        %2981 = vmatpush1.msra.mxu0 %v2971
        %2982 = vmatprep.subr.mxu0 0.0
        %2983 = vmatpush1.msra.mxu0 %v2972
        %2984 = vmatprep.subr.mxu0 0.0
        %2985 = vmatpush1.msra.mxu0 0.0
        %2986 = vmatprep.subr.mxu0 0.0
        %2987 = vmatpush1.msra.mxu0 0.0
        %2988 = vmatprep.subr.mxu0 0.0
        %2989 = vmatpush1.msra.mxu0 0.0
        %2990 = vmatprep.subr.mxu0 0.0
        %2991 = vmatpush1.msra.mxu0 0.0
        %2992 = vmatprep.subr.mxu0 0.0
        %2993 = vmatpush1.msra.mxu0 0.0
        %2994 = vmatprep.subr.mxu0 0.0
        %2995 = vmatpush1.msra.mxu0 0.0
        %2996 = vmatprep.subr.mxu0 0.0
        %2997 = vmatpush1.msra.mxu0 0.0
        %2998 = vmatprep.subr.mxu0 0.0
        %2999 = vmatpush1.msra.mxu0 0.0
        %3000 = vmatprep.subr.mxu0 0.0
        %3001 = vmatpush1.msra.mxu0 0.0
        %3002 = vmatprep.subr.mxu0 0.0
        %3003 = vmatpush1.msra.mxu0 0.0
        %3004 = vmatprep.subr.mxu0 0.0
        %3005 = vmatpush1.msra.mxu0 0.0
        %3006 = vmatprep.subr.mxu0 0.0
        %3007 = vmatpush1.msra.mxu0 0.0
        %3008 = vmatprep.subr.mxu0 0.0
        %3009 = vmatpush1.msra.mxu0 0.0
        %3010 = vmatprep.subr.mxu0 0.0
        %3011 = vmatpush1.msra.mxu0 0.0
        %3012 = vmatprep.subr.mxu0 0.0
        %3013 = vmatpush1.msra.mxu0 0.0
        %3014 = vmatprep.subr.mxu0 0.0
        %3015 = vmatpush1.msra.mxu0 0.0
        %3016 = vmatprep.subr.mxu0 0.0
        %3017 = vmatpush1.msra.mxu0 0.0
        %3018 = vmatprep.subr.mxu0 0.0
        %3019 = vmatpush1.msra.mxu0 0.0
        %3020 = vmatprep.subr.mxu0 0.0
        %3021 = vmatpush1.msra.mxu0 0.0
        %3022 = vmatprep.subr.mxu0 0.0
        %3023 = vmatpush1.msra.mxu0 0.0
        %3024 = vmatprep.subr.mxu0 0.0
        %3025 = vmatpush1.msra.mxu0 0.0
        %3026 = vmatprep.subr.mxu0 0.0
        %3027 = vmatpush1.msra.mxu0 0.0
        %3028 = vmatprep.subr.mxu0 0.0
        %3029 = vmatpush1.msra.mxu0 0.0
        %3030 = vmatprep.subr.mxu0 0.0
        %3031 = vmatpush1.msra.mxu0 0.0
        %3032 = vmatprep.subr.mxu0 0.0
        %3033 = vmatpush1.msra.mxu0 0.0
        %3034 = vmatprep.subr.mxu0 0.0
        %3035 = vmatpush1.msra.mxu0 0.0
        %3036 = vmatprep.subr.mxu0 0.0
        %3037 = vmatpush1.msra.mxu0 0.0
        %3038 = vmatprep.subr.mxu0 0.0
        %3039 = vmatpush1.msra.mxu0 0.0
        %3040 = vmatprep.mubr.f32.mxu0 0.0
        %3041 = vmatmul.mubr.f32.gmra.mrb[0].mxu0 %v2974
        %v3042 = vpop.f32.mrb[0].mxu0
        %v3043 = vadd.f32 0.0, %v3042
        %v3044 = vpop.f32.mrb[0].mxu0
        %3045 = vdwg.mxu0
        %v3046 = vadd.f32 %v2965, %v3043
        %v3047 = vld [vmem:[%s8] sm:$0x1]
        %v3049 = vlaneseq
        %v3050 = vshrl.u32 %v3049, 7
        %v3051 = vsub.s32 0, %v3050
        %v3052 = vrot.slane %v3047, %v3051
        %v3054 = vadd.f32 %v3046, %v3052
        %v3055 = vmax.f32 %v3054, 0.0
        %3056 = vst.msk [vmem:[#allocation2] sm:$0xff] %vm697, 0.0
        %3057 = vst.msk [vmem:[#allocation2 + $0x8] sm:$0xff] %vm697, 0.0
        %3058 = vst.msk [vmem:[#allocation2 + $0x10] sm:$0xff] %vm697, 0.0
        %3059 = vst.msk [vmem:[#allocation2 + $0x18] sm:$0xff] %vm697, 0.0
        %vm3060 = vcmask 259072
        %3061 = vst.msk [vmem:[#allocation2 + $0x8] sm:$0x3f] %vm3060, %v3055
        %v3062 = vld [vmem:[%s2327] ss:$2 sm:$0x7]
        %v3063 = vld [vmem:[%s9] sm:$0xff]
        %v3064 = vld [vmem:[%s9 + $0x8] sm:$0xff]
        %v3065 = vld [vmem:[%s9 + $0x10] sm:$0xff]
        %v3066 = vld [vmem:[%s9 + $0x18] sm:$0xff]
        %v3067 = vld [vmem:[%s2480] ss:$2 sm:$0x7]
        %s3068 = scalar_lea.vmem %s9, 32
        %v3069 = vld [vmem:[%s3068] sm:$0xff]
        %v3070 = vld [vmem:[%s3068 + $0x8] sm:$0xff]
        %v3071 = vld [vmem:[%s3068 + $0x10] sm:$0xff]
        %v3072 = vld [vmem:[%s3068 + $0x18] sm:$0xff]
        %v3074 = vsel %vm697, %v3067, 0
        %3076 = vmatprep.subr.mxu0 0.0
        %3077 = vmatpush1.msra.mxu0 %v3069
        %3078 = vmatprep.subr.mxu0 0.0
        %3079 = vmatpush1.msra.mxu0 %v3070
        %3080 = vmatprep.subr.mxu0 0.0
        %3081 = vmatpush1.msra.mxu0 %v3071
        %3082 = vmatprep.subr.mxu0 0.0
        %3083 = vmatpush1.msra.mxu0 %v3072
        %3084 = vmatprep.subr.mxu0 0.0
        %3085 = vmatpush1.msra.mxu0 0.0
        %3086 = vmatprep.subr.mxu0 0.0
        %3087 = vmatpush1.msra.mxu0 0.0
        %3088 = vmatprep.subr.mxu0 0.0
        %3089 = vmatpush1.msra.mxu0 0.0
        %3090 = vmatprep.subr.mxu0 0.0
        %3091 = vmatpush1.msra.mxu0 0.0
        %3092 = vmatprep.subr.mxu0 0.0
        %3093 = vmatpush1.msra.mxu0 0.0
        %3094 = vmatprep.subr.mxu0 0.0
        %3095 = vmatpush1.msra.mxu0 0.0
        %3096 = vmatprep.subr.mxu0 0.0
        %3097 = vmatpush1.msra.mxu0 0.0
        %3098 = vmatprep.subr.mxu0 0.0
        %3099 = vmatpush1.msra.mxu0 0.0
        %3100 = vmatprep.subr.mxu0 0.0
        %3101 = vmatpush1.msra.mxu0 0.0
        %3102 = vmatprep.subr.mxu0 0.0
        %3103 = vmatpush1.msra.mxu0 0.0
        %3104 = vmatprep.subr.mxu0 0.0
        %3105 = vmatpush1.msra.mxu0 0.0
        %3106 = vmatprep.subr.mxu0 0.0
        %3107 = vmatpush1.msra.mxu0 0.0
        %3108 = vmatprep.subr.mxu0 0.0
        %3109 = vmatpush1.msra.mxu0 0.0
        %3110 = vmatprep.subr.mxu0 0.0
        %3111 = vmatpush1.msra.mxu0 0.0
        %3112 = vmatprep.subr.mxu0 0.0
        %3113 = vmatpush1.msra.mxu0 0.0
        %3114 = vmatprep.subr.mxu0 0.0
        %3115 = vmatpush1.msra.mxu0 0.0
        %3116 = vmatprep.subr.mxu0 0.0
        %3117 = vmatpush1.msra.mxu0 0.0
        %3118 = vmatprep.subr.mxu0 0.0
        %3119 = vmatpush1.msra.mxu0 0.0
        %3120 = vmatprep.subr.mxu0 0.0
        %3121 = vmatpush1.msra.mxu0 0.0
        %3122 = vmatprep.subr.mxu0 0.0
        %3123 = vmatpush1.msra.mxu0 0.0
        %3124 = vmatprep.subr.mxu0 0.0
        %3125 = vmatpush1.msra.mxu0 0.0
        %3126 = vmatprep.subr.mxu0 0.0
        %3127 = vmatpush1.msra.mxu0 0.0
        %3128 = vmatprep.subr.mxu0 0.0
        %3129 = vmatpush1.msra.mxu0 0.0
        %3130 = vmatprep.subr.mxu0 0.0
        %3131 = vmatpush1.msra.mxu0 0.0
        %3132 = vmatprep.subr.mxu0 0.0
        %3133 = vmatpush1.msra.mxu0 0.0
        %3134 = vmatprep.subr.mxu0 0.0
        %3135 = vmatpush1.msra.mxu0 0.0
        %3136 = vmatprep.subr.mxu0 0.0
        %3137 = vmatpush1.msra.mxu0 0.0
        %3138 = vmatprep.subr.mxu0 0.0
        %3139 = vmatpush1.msra.mxu0 0.0
        %3140 = vmatprep.mubr.f32.mxu0 0.0
        %3141 = vmatmul.mubr.f32.gmra.mrb[0].mxu0 %v3074
        %v3142 = vpop.f32.mrb[0].mxu0
        %v3143 = vadd.f32 0.0, %v3142
        %v3144 = vpop.f32.mrb[0].mxu0
        %3145 = vdwg.mxu0
        %v3147 = vsel %vm697, %v3062, 0
        %3149 = vmatprep.subr.mxu0 0.0
        %3150 = vmatpush1.msra.mxu0 %v3063
        %3151 = vmatprep.subr.mxu0 0.0
        %3152 = vmatpush1.msra.mxu0 %v3064
        %3153 = vmatprep.subr.mxu0 0.0
        %3154 = vmatpush1.msra.mxu0 %v3065
        %3155 = vmatprep.subr.mxu0 0.0
        %3156 = vmatpush1.msra.mxu0 %v3066
        %3157 = vmatprep.subr.mxu0 0.0
        %3158 = vmatpush1.msra.mxu0 0.0
        %3159 = vmatprep.subr.mxu0 0.0
        %3160 = vmatpush1.msra.mxu0 0.0
        %3161 = vmatprep.subr.mxu0 0.0
        %3162 = vmatpush1.msra.mxu0 0.0
        %3163 = vmatprep.subr.mxu0 0.0
        %3164 = vmatpush1.msra.mxu0 0.0
        %3165 = vmatprep.subr.mxu0 0.0
        %3166 = vmatpush1.msra.mxu0 0.0
        %3167 = vmatprep.subr.mxu0 0.0
        %3168 = vmatpush1.msra.mxu0 0.0
        %3169 = vmatprep.subr.mxu0 0.0
        %3170 = vmatpush1.msra.mxu0 0.0
        %3171 = vmatprep.subr.mxu0 0.0
        %3172 = vmatpush1.msra.mxu0 0.0
        %3173 = vmatprep.subr.mxu0 0.0
        %3174 = vmatpush1.msra.mxu0 0.0
        %3175 = vmatprep.subr.mxu0 0.0
        %3176 = vmatpush1.msra.mxu0 0.0
        %3177 = vmatprep.subr.mxu0 0.0
        %3178 = vmatpush1.msra.mxu0 0.0
        %3179 = vmatprep.subr.mxu0 0.0
        %3180 = vmatpush1.msra.mxu0 0.0
        %3181 = vmatprep.subr.mxu0 0.0
        %3182 = vmatpush1.msra.mxu0 0.0
        %3183 = vmatprep.subr.mxu0 0.0
        %3184 = vmatpush1.msra.mxu0 0.0
        %3185 = vmatprep.subr.mxu0 0.0
        %3186 = vmatpush1.msra.mxu0 0.0
        %3187 = vmatprep.subr.mxu0 0.0
        %3188 = vmatpush1.msra.mxu0 0.0
        %3189 = vmatprep.subr.mxu0 0.0
        %3190 = vmatpush1.msra.mxu0 0.0
        %3191 = vmatprep.subr.mxu0 0.0
        %3192 = vmatpush1.msra.mxu0 0.0
        %3193 = vmatprep.subr.mxu0 0.0
        %3194 = vmatpush1.msra.mxu0 0.0
        %3195 = vmatprep.subr.mxu0 0.0
        %3196 = vmatpush1.msra.mxu0 0.0
        %3197 = vmatprep.subr.mxu0 0.0
        %3198 = vmatpush1.msra.mxu0 0.0
        %3199 = vmatprep.subr.mxu0 0.0
        %3200 = vmatpush1.msra.mxu0 0.0
        %3201 = vmatprep.subr.mxu0 0.0
        %3202 = vmatpush1.msra.mxu0 0.0
        %3203 = vmatprep.subr.mxu0 0.0
        %3204 = vmatpush1.msra.mxu0 0.0
        %3205 = vmatprep.subr.mxu0 0.0
        %3206 = vmatpush1.msra.mxu0 0.0
        %3207 = vmatprep.subr.mxu0 0.0
        %3208 = vmatpush1.msra.mxu0 0.0
        %3209 = vmatprep.subr.mxu0 0.0
        %3210 = vmatpush1.msra.mxu0 0.0
        %3211 = vmatprep.subr.mxu0 0.0
        %3212 = vmatpush1.msra.mxu0 0.0
        %3213 = vmatprep.mubr.f32.mxu0 0.0
        %3214 = vmatmul.mubr.f32.gmra.mrb[0].mxu0 %v3147
        %v3215 = vpop.f32.mrb[0].mxu0
        %v3216 = vadd.f32 %v3143, %v3215
        %v3217 = vpop.f32.mrb[0].mxu0
        %3218 = vdwg.mxu0
        %v3219 = vld [vmem:[%s2561] ss:$2 sm:$0x7]
        %s3220 = scalar_lea.vmem %s9, 64
        %v3221 = vld [vmem:[%s3220] sm:$0xff]
        %v3222 = vld [vmem:[%s3220 + $0x8] sm:$0xff]
        %v3223 = vld [vmem:[%s3220 + $0x10] sm:$0xff]
        %v3224 = vld [vmem:[%s3220 + $0x18] sm:$0xff]
        %v3226 = vsel %vm697, %v3219, 0
        %3228 = vmatprep.subr.mxu0 0.0
        %3229 = vmatpush1.msra.mxu0 %v3221
        %3230 = vmatprep.subr.mxu0 0.0
        %3231 = vmatpush1.msra.mxu0 %v3222
        %3232 = vmatprep.subr.mxu0 0.0
        %3233 = vmatpush1.msra.mxu0 %v3223
        %3234 = vmatprep.subr.mxu0 0.0
        %3235 = vmatpush1.msra.mxu0 %v3224
        %3236 = vmatprep.subr.mxu0 0.0
        %3237 = vmatpush1.msra.mxu0 0.0
        %3238 = vmatprep.subr.mxu0 0.0
        %3239 = vmatpush1.msra.mxu0 0.0
        %3240 = vmatprep.subr.mxu0 0.0
        %3241 = vmatpush1.msra.mxu0 0.0
        %3242 = vmatprep.subr.mxu0 0.0
        %3243 = vmatpush1.msra.mxu0 0.0
        %3244 = vmatprep.subr.mxu0 0.0
        %3245 = vmatpush1.msra.mxu0 0.0
        %3246 = vmatprep.subr.mxu0 0.0
        %3247 = vmatpush1.msra.mxu0 0.0
        %3248 = vmatprep.subr.mxu0 0.0
        %3249 = vmatpush1.msra.mxu0 0.0
        %3250 = vmatprep.subr.mxu0 0.0
        %3251 = vmatpush1.msra.mxu0 0.0
        %3252 = vmatprep.subr.mxu0 0.0
        %3253 = vmatpush1.msra.mxu0 0.0
        %3254 = vmatprep.subr.mxu0 0.0
        %3255 = vmatpush1.msra.mxu0 0.0
        %3256 = vmatprep.subr.mxu0 0.0
        %3257 = vmatpush1.msra.mxu0 0.0
        %3258 = vmatprep.subr.mxu0 0.0
        %3259 = vmatpush1.msra.mxu0 0.0
        %3260 = vmatprep.subr.mxu0 0.0
        %3261 = vmatpush1.msra.mxu0 0.0
        %3262 = vmatprep.subr.mxu0 0.0
        %3263 = vmatpush1.msra.mxu0 0.0
        %3264 = vmatprep.subr.mxu0 0.0
        %3265 = vmatpush1.msra.mxu0 0.0
        %3266 = vmatprep.subr.mxu0 0.0
        %3267 = vmatpush1.msra.mxu0 0.0
        %3268 = vmatprep.subr.mxu0 0.0
        %3269 = vmatpush1.msra.mxu0 0.0
        %3270 = vmatprep.subr.mxu0 0.0
        %3271 = vmatpush1.msra.mxu0 0.0
        %3272 = vmatprep.subr.mxu0 0.0
        %3273 = vmatpush1.msra.mxu0 0.0
        %3274 = vmatprep.subr.mxu0 0.0
        %3275 = vmatpush1.msra.mxu0 0.0
        %3276 = vmatprep.subr.mxu0 0.0
        %3277 = vmatpush1.msra.mxu0 0.0
        %3278 = vmatprep.subr.mxu0 0.0
        %3279 = vmatpush1.msra.mxu0 0.0
        %3280 = vmatprep.subr.mxu0 0.0
        %3281 = vmatpush1.msra.mxu0 0.0
        %3282 = vmatprep.subr.mxu0 0.0
        %3283 = vmatpush1.msra.mxu0 0.0
        %3284 = vmatprep.subr.mxu0 0.0
        %3285 = vmatpush1.msra.mxu0 0.0
        %3286 = vmatprep.subr.mxu0 0.0
        %3287 = vmatpush1.msra.mxu0 0.0
        %3288 = vmatprep.subr.mxu0 0.0
        %3289 = vmatpush1.msra.mxu0 0.0
        %3290 = vmatprep.subr.mxu0 0.0
        %3291 = vmatpush1.msra.mxu0 0.0
        %3292 = vmatprep.mubr.f32.mxu0 0.0
        %3293 = vmatmul.mubr.f32.gmra.mrb[0].mxu0 %v3226
        %v3294 = vpop.f32.mrb[0].mxu0
        %v3295 = vadd.f32 0.0, %v3294
        %v3296 = vpop.f32.mrb[0].mxu0
        %3297 = vdwg.mxu0
        %v3298 = vadd.f32 %v3216, %v3295
        %v3299 = vld [vmem:[%s2642] ss:$2 sm:$0x7]
        %s3300 = scalar_lea.vmem %s9, 96
        %v3301 = vld [vmem:[%s3300] sm:$0xff]
        %v3302 = vld [vmem:[%s3300 + $0x8] sm:$0xff]
        %v3303 = vld [vmem:[%s3300 + $0x10] sm:$0xff]
        %v3304 = vld [vmem:[%s3300 + $0x18] sm:$0xff]
        %v3306 = vsel %vm697, %v3299, 0
        %3308 = vmatprep.subr.mxu0 0.0
        %3309 = vmatpush1.msra.mxu0 %v3301
        %3310 = vmatprep.subr.mxu0 0.0
        %3311 = vmatpush1.msra.mxu0 %v3302
        %3312 = vmatprep.subr.mxu0 0.0
        %3313 = vmatpush1.msra.mxu0 %v3303
        %3314 = vmatprep.subr.mxu0 0.0
        %3315 = vmatpush1.msra.mxu0 %v3304
        %3316 = vmatprep.subr.mxu0 0.0
        %3317 = vmatpush1.msra.mxu0 0.0
        %3318 = vmatprep.subr.mxu0 0.0
        %3319 = vmatpush1.msra.mxu0 0.0
        %3320 = vmatprep.subr.mxu0 0.0
        %3321 = vmatpush1.msra.mxu0 0.0
        %3322 = vmatprep.subr.mxu0 0.0
        %3323 = vmatpush1.msra.mxu0 0.0
        %3324 = vmatprep.subr.mxu0 0.0
        %3325 = vmatpush1.msra.mxu0 0.0
        %3326 = vmatprep.subr.mxu0 0.0
        %3327 = vmatpush1.msra.mxu0 0.0
        %3328 = vmatprep.subr.mxu0 0.0
        %3329 = vmatpush1.msra.mxu0 0.0
        %3330 = vmatprep.subr.mxu0 0.0
        %3331 = vmatpush1.msra.mxu0 0.0
        %3332 = vmatprep.subr.mxu0 0.0
        %3333 = vmatpush1.msra.mxu0 0.0
        %3334 = vmatprep.subr.mxu0 0.0
        %3335 = vmatpush1.msra.mxu0 0.0
        %3336 = vmatprep.subr.mxu0 0.0
        %3337 = vmatpush1.msra.mxu0 0.0
        %3338 = vmatprep.subr.mxu0 0.0
        %3339 = vmatpush1.msra.mxu0 0.0
        %3340 = vmatprep.subr.mxu0 0.0
        %3341 = vmatpush1.msra.mxu0 0.0
        %3342 = vmatprep.subr.mxu0 0.0
        %3343 = vmatpush1.msra.mxu0 0.0
        %3344 = vmatprep.subr.mxu0 0.0
        %3345 = vmatpush1.msra.mxu0 0.0
        %3346 = vmatprep.subr.mxu0 0.0
        %3347 = vmatpush1.msra.mxu0 0.0
        %3348 = vmatprep.subr.mxu0 0.0
        %3349 = vmatpush1.msra.mxu0 0.0
        %3350 = vmatprep.subr.mxu0 0.0
        %3351 = vmatpush1.msra.mxu0 0.0
        %3352 = vmatprep.subr.mxu0 0.0
        %3353 = vmatpush1.msra.mxu0 0.0
        %3354 = vmatprep.subr.mxu0 0.0
        %3355 = vmatpush1.msra.mxu0 0.0
        %3356 = vmatprep.subr.mxu0 0.0
        %3357 = vmatpush1.msra.mxu0 0.0
        %3358 = vmatprep.subr.mxu0 0.0
        %3359 = vmatpush1.msra.mxu0 0.0
        %3360 = vmatprep.subr.mxu0 0.0
        %3361 = vmatpush1.msra.mxu0 0.0
        %3362 = vmatprep.subr.mxu0 0.0
        %3363 = vmatpush1.msra.mxu0 0.0
        %3364 = vmatprep.subr.mxu0 0.0
        %3365 = vmatpush1.msra.mxu0 0.0
        %3366 = vmatprep.subr.mxu0 0.0
        %3367 = vmatpush1.msra.mxu0 0.0
        %3368 = vmatprep.subr.mxu0 0.0
        %3369 = vmatpush1.msra.mxu0 0.0
        %3370 = vmatprep.subr.mxu0 0.0
        %3371 = vmatpush1.msra.mxu0 0.0
        %3372 = vmatprep.mubr.f32.mxu0 0.0
        %3373 = vmatmul.mubr.f32.gmra.mrb[0].mxu0 %v3306
        %v3374 = vpop.f32.mrb[0].mxu0
        %v3375 = vadd.f32 0.0, %v3374
        %v3376 = vpop.f32.mrb[0].mxu0
        %3377 = vdwg.mxu0
        %v3378 = vadd.f32 %v3298, %v3375
        %v3379 = vld [vmem:[%s2723] ss:$2 sm:$0x7]
        %s3380 = scalar_lea.vmem %s9, 128
        %v3381 = vld [vmem:[%s3380] sm:$0xff]
        %v3382 = vld [vmem:[%s3380 + $0x8] sm:$0xff]
        %v3383 = vld [vmem:[%s3380 + $0x10] sm:$0xff]
        %v3384 = vld [vmem:[%s3380 + $0x18] sm:$0xff]
        %v3386 = vsel %vm697, %v3379, 0
        %3388 = vmatprep.subr.mxu0 0.0
        %3389 = vmatpush1.msra.mxu0 %v3381
        %3390 = vmatprep.subr.mxu0 0.0
        %3391 = vmatpush1.msra.mxu0 %v3382
        %3392 = vmatprep.subr.mxu0 0.0
        %3393 = vmatpush1.msra.mxu0 %v3383
        %3394 = vmatprep.subr.mxu0 0.0
        %3395 = vmatpush1.msra.mxu0 %v3384
        %3396 = vmatprep.subr.mxu0 0.0
        %3397 = vmatpush1.msra.mxu0 0.0
        %3398 = vmatprep.subr.mxu0 0.0
        %3399 = vmatpush1.msra.mxu0 0.0
        %3400 = vmatprep.subr.mxu0 0.0
        %3401 = vmatpush1.msra.mxu0 0.0
        %3402 = vmatprep.subr.mxu0 0.0
        %3403 = vmatpush1.msra.mxu0 0.0
        %3404 = vmatprep.subr.mxu0 0.0
        %3405 = vmatpush1.msra.mxu0 0.0
        %3406 = vmatprep.subr.mxu0 0.0
        %3407 = vmatpush1.msra.mxu0 0.0
        %3408 = vmatprep.subr.mxu0 0.0
        %3409 = vmatpush1.msra.mxu0 0.0
        %3410 = vmatprep.subr.mxu0 0.0
        %3411 = vmatpush1.msra.mxu0 0.0
        %3412 = vmatprep.subr.mxu0 0.0
        %3413 = vmatpush1.msra.mxu0 0.0
        %3414 = vmatprep.subr.mxu0 0.0
        %3415 = vmatpush1.msra.mxu0 0.0
        %3416 = vmatprep.subr.mxu0 0.0
        %3417 = vmatpush1.msra.mxu0 0.0
        %3418 = vmatprep.subr.mxu0 0.0
        %3419 = vmatpush1.msra.mxu0 0.0
        %3420 = vmatprep.subr.mxu0 0.0
        %3421 = vmatpush1.msra.mxu0 0.0
        %3422 = vmatprep.subr.mxu0 0.0
        %3423 = vmatpush1.msra.mxu0 0.0
        %3424 = vmatprep.subr.mxu0 0.0
        %3425 = vmatpush1.msra.mxu0 0.0
        %3426 = vmatprep.subr.mxu0 0.0
        %3427 = vmatpush1.msra.mxu0 0.0
        %3428 = vmatprep.subr.mxu0 0.0
        %3429 = vmatpush1.msra.mxu0 0.0
        %3430 = vmatprep.subr.mxu0 0.0
        %3431 = vmatpush1.msra.mxu0 0.0
        %3432 = vmatprep.subr.mxu0 0.0
        %3433 = vmatpush1.msra.mxu0 0.0
        %3434 = vmatprep.subr.mxu0 0.0
        %3435 = vmatpush1.msra.mxu0 0.0
        %3436 = vmatprep.subr.mxu0 0.0
        %3437 = vmatpush1.msra.mxu0 0.0
        %3438 = vmatprep.subr.mxu0 0.0
        %3439 = vmatpush1.msra.mxu0 0.0
        %3440 = vmatprep.subr.mxu0 0.0
        %3441 = vmatpush1.msra.mxu0 0.0
        %3442 = vmatprep.subr.mxu0 0.0
        %3443 = vmatpush1.msra.mxu0 0.0
        %3444 = vmatprep.subr.mxu0 0.0
        %3445 = vmatpush1.msra.mxu0 0.0
        %3446 = vmatprep.subr.mxu0 0.0
        %3447 = vmatpush1.msra.mxu0 0.0
        %3448 = vmatprep.subr.mxu0 0.0
        %3449 = vmatpush1.msra.mxu0 0.0
        %3450 = vmatprep.subr.mxu0 0.0
        %3451 = vmatpush1.msra.mxu0 0.0
        %3452 = vmatprep.mubr.f32.mxu0 0.0
        %3453 = vmatmul.mubr.f32.gmra.mrb[0].mxu0 %v3386
        %v3454 = vpop.f32.mrb[0].mxu0
        %v3455 = vadd.f32 0.0, %v3454
        %v3456 = vpop.f32.mrb[0].mxu0
        %3457 = vdwg.mxu0
        %v3458 = vadd.f32 %v3378, %v3455
        %v3459 = vld [vmem:[%s2804] ss:$2 sm:$0x7]
        %s3460 = scalar_lea.vmem %s9, 160
        %v3461 = vld [vmem:[%s3460] sm:$0xff]
        %v3462 = vld [vmem:[%s3460 + $0x8] sm:$0xff]
        %v3463 = vld [vmem:[%s3460 + $0x10] sm:$0xff]
        %v3464 = vld [vmem:[%s3460 + $0x18] sm:$0xff]
        %v3466 = vsel %vm697, %v3459, 0
        %3468 = vmatprep.subr.mxu0 0.0
        %3469 = vmatpush1.msra.mxu0 %v3461
        %3470 = vmatprep.subr.mxu0 0.0
        %3471 = vmatpush1.msra.mxu0 %v3462
        %3472 = vmatprep.subr.mxu0 0.0
        %3473 = vmatpush1.msra.mxu0 %v3463
        %3474 = vmatprep.subr.mxu0 0.0
        %3475 = vmatpush1.msra.mxu0 %v3464
        %3476 = vmatprep.subr.mxu0 0.0
        %3477 = vmatpush1.msra.mxu0 0.0
        %3478 = vmatprep.subr.mxu0 0.0
        %3479 = vmatpush1.msra.mxu0 0.0
        %3480 = vmatprep.subr.mxu0 0.0
        %3481 = vmatpush1.msra.mxu0 0.0
        %3482 = vmatprep.subr.mxu0 0.0
        %3483 = vmatpush1.msra.mxu0 0.0
        %3484 = vmatprep.subr.mxu0 0.0
        %3485 = vmatpush1.msra.mxu0 0.0
        %3486 = vmatprep.subr.mxu0 0.0
        %3487 = vmatpush1.msra.mxu0 0.0
        %3488 = vmatprep.subr.mxu0 0.0
        %3489 = vmatpush1.msra.mxu0 0.0
        %3490 = vmatprep.subr.mxu0 0.0
        %3491 = vmatpush1.msra.mxu0 0.0
        %3492 = vmatprep.subr.mxu0 0.0
        %3493 = vmatpush1.msra.mxu0 0.0
        %3494 = vmatprep.subr.mxu0 0.0
        %3495 = vmatpush1.msra.mxu0 0.0
        %3496 = vmatprep.subr.mxu0 0.0
        %3497 = vmatpush1.msra.mxu0 0.0
        %3498 = vmatprep.subr.mxu0 0.0
        %3499 = vmatpush1.msra.mxu0 0.0
        %3500 = vmatprep.subr.mxu0 0.0
        %3501 = vmatpush1.msra.mxu0 0.0
        %3502 = vmatprep.subr.mxu0 0.0
        %3503 = vmatpush1.msra.mxu0 0.0
        %3504 = vmatprep.subr.mxu0 0.0
        %3505 = vmatpush1.msra.mxu0 0.0
        %3506 = vmatprep.subr.mxu0 0.0
        %3507 = vmatpush1.msra.mxu0 0.0
        %3508 = vmatprep.subr.mxu0 0.0
        %3509 = vmatpush1.msra.mxu0 0.0
        %3510 = vmatprep.subr.mxu0 0.0
        %3511 = vmatpush1.msra.mxu0 0.0
        %3512 = vmatprep.subr.mxu0 0.0
        %3513 = vmatpush1.msra.mxu0 0.0
        %3514 = vmatprep.subr.mxu0 0.0
        %3515 = vmatpush1.msra.mxu0 0.0
        %3516 = vmatprep.subr.mxu0 0.0
        %3517 = vmatpush1.msra.mxu0 0.0
        %3518 = vmatprep.subr.mxu0 0.0
        %3519 = vmatpush1.msra.mxu0 0.0
        %3520 = vmatprep.subr.mxu0 0.0
        %3521 = vmatpush1.msra.mxu0 0.0
        %3522 = vmatprep.subr.mxu0 0.0
        %3523 = vmatpush1.msra.mxu0 0.0
        %3524 = vmatprep.subr.mxu0 0.0
        %3525 = vmatpush1.msra.mxu0 0.0
        %3526 = vmatprep.subr.mxu0 0.0
        %3527 = vmatpush1.msra.mxu0 0.0
        %3528 = vmatprep.subr.mxu0 0.0
        %3529 = vmatpush1.msra.mxu0 0.0
        %3530 = vmatprep.subr.mxu0 0.0
        %3531 = vmatpush1.msra.mxu0 0.0
        %3532 = vmatprep.mubr.f32.mxu0 0.0
        %3533 = vmatmul.mubr.f32.gmra.mrb[0].mxu0 %v3466
        %v3534 = vpop.f32.mrb[0].mxu0
        %v3535 = vadd.f32 0.0, %v3534
        %v3536 = vpop.f32.mrb[0].mxu0
        %3537 = vdwg.mxu0
        %v3538 = vadd.f32 %v3458, %v3535
        %v3539 = vld [vmem:[%s2885] ss:$2 sm:$0x7]
        %s3540 = scalar_lea.vmem %s9, 192
        %v3541 = vld [vmem:[%s3540] sm:$0xff]
        %v3542 = vld [vmem:[%s3540 + $0x8] sm:$0xff]
        %v3543 = vld [vmem:[%s3540 + $0x10] sm:$0xff]
        %v3544 = vld [vmem:[%s3540 + $0x18] sm:$0xff]
        %v3546 = vsel %vm697, %v3539, 0
        %3548 = vmatprep.subr.mxu0 0.0
        %3549 = vmatpush1.msra.mxu0 %v3541
        %3550 = vmatprep.subr.mxu0 0.0
        %3551 = vmatpush1.msra.mxu0 %v3542
        %3552 = vmatprep.subr.mxu0 0.0
        %3553 = vmatpush1.msra.mxu0 %v3543
        %3554 = vmatprep.subr.mxu0 0.0
        %3555 = vmatpush1.msra.mxu0 %v3544
        %3556 = vmatprep.subr.mxu0 0.0
        %3557 = vmatpush1.msra.mxu0 0.0
        %3558 = vmatprep.subr.mxu0 0.0
        %3559 = vmatpush1.msra.mxu0 0.0
        %3560 = vmatprep.subr.mxu0 0.0
        %3561 = vmatpush1.msra.mxu0 0.0
        %3562 = vmatprep.subr.mxu0 0.0
        %3563 = vmatpush1.msra.mxu0 0.0
        %3564 = vmatprep.subr.mxu0 0.0
        %3565 = vmatpush1.msra.mxu0 0.0
        %3566 = vmatprep.subr.mxu0 0.0
        %3567 = vmatpush1.msra.mxu0 0.0
        %3568 = vmatprep.subr.mxu0 0.0
        %3569 = vmatpush1.msra.mxu0 0.0
        %3570 = vmatprep.subr.mxu0 0.0
        %3571 = vmatpush1.msra.mxu0 0.0
        %3572 = vmatprep.subr.mxu0 0.0
        %3573 = vmatpush1.msra.mxu0 0.0
        %3574 = vmatprep.subr.mxu0 0.0
        %3575 = vmatpush1.msra.mxu0 0.0
        %3576 = vmatprep.subr.mxu0 0.0
        %3577 = vmatpush1.msra.mxu0 0.0
        %3578 = vmatprep.subr.mxu0 0.0
        %3579 = vmatpush1.msra.mxu0 0.0
        %3580 = vmatprep.subr.mxu0 0.0
        %3581 = vmatpush1.msra.mxu0 0.0
        %3582 = vmatprep.subr.mxu0 0.0
        %3583 = vmatpush1.msra.mxu0 0.0
        %3584 = vmatprep.subr.mxu0 0.0
        %3585 = vmatpush1.msra.mxu0 0.0
        %3586 = vmatprep.subr.mxu0 0.0
        %3587 = vmatpush1.msra.mxu0 0.0
        %3588 = vmatprep.subr.mxu0 0.0
        %3589 = vmatpush1.msra.mxu0 0.0
        %3590 = vmatprep.subr.mxu0 0.0
        %3591 = vmatpush1.msra.mxu0 0.0
        %3592 = vmatprep.subr.mxu0 0.0
        %3593 = vmatpush1.msra.mxu0 0.0
        %3594 = vmatprep.subr.mxu0 0.0
        %3595 = vmatpush1.msra.mxu0 0.0
        %3596 = vmatprep.subr.mxu0 0.0
        %3597 = vmatpush1.msra.mxu0 0.0
        %3598 = vmatprep.subr.mxu0 0.0
        %3599 = vmatpush1.msra.mxu0 0.0
        %3600 = vmatprep.subr.mxu0 0.0
        %3601 = vmatpush1.msra.mxu0 0.0
        %3602 = vmatprep.subr.mxu0 0.0
        %3603 = vmatpush1.msra.mxu0 0.0
        %3604 = vmatprep.subr.mxu0 0.0
        %3605 = vmatpush1.msra.mxu0 0.0
        %3606 = vmatprep.subr.mxu0 0.0
        %3607 = vmatpush1.msra.mxu0 0.0
        %3608 = vmatprep.subr.mxu0 0.0
        %3609 = vmatpush1.msra.mxu0 0.0
        %3610 = vmatprep.subr.mxu0 0.0
        %3611 = vmatpush1.msra.mxu0 0.0
        %3612 = vmatprep.mubr.f32.mxu0 0.0
        %3613 = vmatmul.mubr.f32.gmra.mrb[0].mxu0 %v3546
        %v3614 = vpop.f32.mrb[0].mxu0
        %v3615 = vadd.f32 0.0, %v3614
        %v3616 = vpop.f32.mrb[0].mxu0
        %3617 = vdwg.mxu0
        %v3618 = vadd.f32 %v3538, %v3615
        %v3619 = vld [vmem:[%s10] sm:$0x1]
        %v3621 = vlaneseq
        %v3622 = vshrl.u32 %v3621, 7
        %v3623 = vsub.s32 0, %v3622
        %v3624 = vrot.slane %v3619, %v3623
        %v3626 = vadd.f32 %v3618, %v3624
        %v3627 = vmax.f32 %v3626, 0.0
        %3628 = vst.msk [vmem:[#allocation2] sm:$0xff] %vm697, 0.0
        %3629 = vst.msk [vmem:[#allocation2 + $0x8] sm:$0xff] %vm697, 0.0
        %3630 = vst.msk [vmem:[#allocation2 + $0x10] sm:$0xff] %vm697, 0.0
        %3631 = vst.msk [vmem:[#allocation2 + $0x18] sm:$0xff] %vm697, 0.0
        %vm3632 = vcmask 256000
        %3633 = vst.msk [vmem:[#allocation2 + $0x8] sm:$0x7] %vm3632, %v3627
        %v3634 = vld [vmem:[%s2480] ss:$2 sm:$0x3]
        %v3635 = vld [vmem:[#allocation16] sm:$0xff]
        %v3636 = vld [vmem:[#allocation16 + $0x8] sm:$0xff]
        %v3637 = vld [vmem:[#allocation16 + $0x10] sm:$0xff]
        %v3638 = vld [vmem:[#allocation16 + $0x18] sm:$0xff]
        %v3639 = vld [vmem:[%s2561] ss:$2 sm:$0x3]
        %s3640 = scalar_lea.vmem [#allocation16], 32
        %v3641 = vld [vmem:[%s3640] sm:$0xff]
        %v3642 = vld [vmem:[%s3640 + $0x8] sm:$0xff]
        %v3643 = vld [vmem:[%s3640 + $0x10] sm:$0xff]
        %v3644 = vld [vmem:[%s3640 + $0x18] sm:$0xff]
        %v3646 = vsel %vm697, %v3639, 0
        %3648 = vmatprep.subr.mxu0 0.0
        %3649 = vmatpush1.msra.mxu0 %v3641
        %3650 = vmatprep.subr.mxu0 0.0
        %3651 = vmatpush1.msra.mxu0 %v3642
        %3652 = vmatprep.subr.mxu0 0.0
        %3653 = vmatpush1.msra.mxu0 %v3643
        %3654 = vmatprep.subr.mxu0 0.0
        %3655 = vmatpush1.msra.mxu0 %v3644
        %3656 = vmatprep.subr.mxu0 0.0
        %3657 = vmatpush1.msra.mxu0 0.0
        %3658 = vmatprep.subr.mxu0 0.0
        %3659 = vmatpush1.msra.mxu0 0.0
        %3660 = vmatprep.subr.mxu0 0.0
        %3661 = vmatpush1.msra.mxu0 0.0
        %3662 = vmatprep.subr.mxu0 0.0
        %3663 = vmatpush1.msra.mxu0 0.0
        %3664 = vmatprep.subr.mxu0 0.0
        %3665 = vmatpush1.msra.mxu0 0.0
        %3666 = vmatprep.subr.mxu0 0.0
        %3667 = vmatpush1.msra.mxu0 0.0
        %3668 = vmatprep.subr.mxu0 0.0
        %3669 = vmatpush1.msra.mxu0 0.0
        %3670 = vmatprep.subr.mxu0 0.0
        %3671 = vmatpush1.msra.mxu0 0.0
        %3672 = vmatprep.subr.mxu0 0.0
        %3673 = vmatpush1.msra.mxu0 0.0
        %3674 = vmatprep.subr.mxu0 0.0
        %3675 = vmatpush1.msra.mxu0 0.0
        %3676 = vmatprep.subr.mxu0 0.0
        %3677 = vmatpush1.msra.mxu0 0.0
        %3678 = vmatprep.subr.mxu0 0.0
        %3679 = vmatpush1.msra.mxu0 0.0
        %3680 = vmatprep.subr.mxu0 0.0
        %3681 = vmatpush1.msra.mxu0 0.0
        %3682 = vmatprep.subr.mxu0 0.0
        %3683 = vmatpush1.msra.mxu0 0.0
        %3684 = vmatprep.subr.mxu0 0.0
        %3685 = vmatpush1.msra.mxu0 0.0
        %3686 = vmatprep.subr.mxu0 0.0
        %3687 = vmatpush1.msra.mxu0 0.0
        %3688 = vmatprep.subr.mxu0 0.0
        %3689 = vmatpush1.msra.mxu0 0.0
        %3690 = vmatprep.subr.mxu0 0.0
        %3691 = vmatpush1.msra.mxu0 0.0
        %3692 = vmatprep.subr.mxu0 0.0
        %3693 = vmatpush1.msra.mxu0 0.0
        %3694 = vmatprep.subr.mxu0 0.0
        %3695 = vmatpush1.msra.mxu0 0.0
        %3696 = vmatprep.subr.mxu0 0.0
        %3697 = vmatpush1.msra.mxu0 0.0
        %3698 = vmatprep.subr.mxu0 0.0
        %3699 = vmatpush1.msra.mxu0 0.0
        %3700 = vmatprep.subr.mxu0 0.0
        %3701 = vmatpush1.msra.mxu0 0.0
        %3702 = vmatprep.subr.mxu0 0.0
        %3703 = vmatpush1.msra.mxu0 0.0
        %3704 = vmatprep.subr.mxu0 0.0
        %3705 = vmatpush1.msra.mxu0 0.0
        %3706 = vmatprep.subr.mxu0 0.0
        %3707 = vmatpush1.msra.mxu0 0.0
        %3708 = vmatprep.subr.mxu0 0.0
        %3709 = vmatpush1.msra.mxu0 0.0
        %3710 = vmatprep.subr.mxu0 0.0
        %3711 = vmatpush1.msra.mxu0 0.0
        %3712 = vmatprep.mubr.f32.mxu0 0.0
        %3713 = vmatmul.mubr.f32.gmra.mrb[0].mxu0 %v3646
        %v3714 = vpop.f32.mrb[0].mxu0
        %v3715 = vadd.f32 0.0, %v3714
        %v3716 = vpop.f32.mrb[0].mxu0
        %3717 = vdwg.mxu0
        %v3719 = vsel %vm697, %v3634, 0
        %3721 = vmatprep.subr.mxu0 0.0
        %3722 = vmatpush1.msra.mxu0 %v3635
        %3723 = vmatprep.subr.mxu0 0.0
        %3724 = vmatpush1.msra.mxu0 %v3636
        %3725 = vmatprep.subr.mxu0 0.0
        %3726 = vmatpush1.msra.mxu0 %v3637
        %3727 = vmatprep.subr.mxu0 0.0
        %3728 = vmatpush1.msra.mxu0 %v3638
        %3729 = vmatprep.subr.mxu0 0.0
        %3730 = vmatpush1.msra.mxu0 0.0
        %3731 = vmatprep.subr.mxu0 0.0
        %3732 = vmatpush1.msra.mxu0 0.0
        %3733 = vmatprep.subr.mxu0 0.0
        %3734 = vmatpush1.msra.mxu0 0.0
        %3735 = vmatprep.subr.mxu0 0.0
        %3736 = vmatpush1.msra.mxu0 0.0
        %3737 = vmatprep.subr.mxu0 0.0
        %3738 = vmatpush1.msra.mxu0 0.0
        %3739 = vmatprep.subr.mxu0 0.0
        %3740 = vmatpush1.msra.mxu0 0.0
        %3741 = vmatprep.subr.mxu0 0.0
        %3742 = vmatpush1.msra.mxu0 0.0
        %3743 = vmatprep.subr.mxu0 0.0
        %3744 = vmatpush1.msra.mxu0 0.0
        %3745 = vmatprep.subr.mxu0 0.0
        %3746 = vmatpush1.msra.mxu0 0.0
        %3747 = vmatprep.subr.mxu0 0.0
        %3748 = vmatpush1.msra.mxu0 0.0
        %3749 = vmatprep.subr.mxu0 0.0
        %3750 = vmatpush1.msra.mxu0 0.0
        %3751 = vmatprep.subr.mxu0 0.0
        %3752 = vmatpush1.msra.mxu0 0.0
        %3753 = vmatprep.subr.mxu0 0.0
        %3754 = vmatpush1.msra.mxu0 0.0
        %3755 = vmatprep.subr.mxu0 0.0
        %3756 = vmatpush1.msra.mxu0 0.0
        %3757 = vmatprep.subr.mxu0 0.0
        %3758 = vmatpush1.msra.mxu0 0.0
        %3759 = vmatprep.subr.mxu0 0.0
        %3760 = vmatpush1.msra.mxu0 0.0
        %3761 = vmatprep.subr.mxu0 0.0
        %3762 = vmatpush1.msra.mxu0 0.0
        %3763 = vmatprep.subr.mxu0 0.0
        %3764 = vmatpush1.msra.mxu0 0.0
        %3765 = vmatprep.subr.mxu0 0.0
        %3766 = vmatpush1.msra.mxu0 0.0
        %3767 = vmatprep.subr.mxu0 0.0
        %3768 = vmatpush1.msra.mxu0 0.0
        %3769 = vmatprep.subr.mxu0 0.0
        %3770 = vmatpush1.msra.mxu0 0.0
        %3771 = vmatprep.subr.mxu0 0.0
        %3772 = vmatpush1.msra.mxu0 0.0
        %3773 = vmatprep.subr.mxu0 0.0
        %3774 = vmatpush1.msra.mxu0 0.0
        %3775 = vmatprep.subr.mxu0 0.0
        %3776 = vmatpush1.msra.mxu0 0.0
        %3777 = vmatprep.subr.mxu0 0.0
        %3778 = vmatpush1.msra.mxu0 0.0
        %3779 = vmatprep.subr.mxu0 0.0
        %3780 = vmatpush1.msra.mxu0 0.0
        %3781 = vmatprep.subr.mxu0 0.0
        %3782 = vmatpush1.msra.mxu0 0.0
        %3783 = vmatprep.subr.mxu0 0.0
        %3784 = vmatpush1.msra.mxu0 0.0
        %3785 = vmatprep.mubr.f32.mxu0 0.0
        %3786 = vmatmul.mubr.f32.gmra.mrb[0].mxu0 %v3719
        %v3787 = vpop.f32.mrb[0].mxu0
        %v3788 = vadd.f32 %v3715, %v3787
        %v3789 = vpop.f32.mrb[0].mxu0
        %3790 = vdwg.mxu0
        %v3791 = vld [vmem:[%s2642] ss:$2 sm:$0x3]
        %s3792 = scalar_lea.vmem [#allocation16], 64
        %v3793 = vld [vmem:[%s3792] sm:$0xff]
        %v3794 = vld [vmem:[%s3792 + $0x8] sm:$0xff]
        %v3795 = vld [vmem:[%s3792 + $0x10] sm:$0xff]
        %v3796 = vld [vmem:[%s3792 + $0x18] sm:$0xff]
        %v3798 = vsel %vm697, %v3791, 0
        %3800 = vmatprep.subr.mxu0 0.0
        %3801 = vmatpush1.msra.mxu0 %v3793
        %3802 = vmatprep.subr.mxu0 0.0
        %3803 = vmatpush1.msra.mxu0 %v3794
        %3804 = vmatprep.subr.mxu0 0.0
        %3805 = vmatpush1.msra.mxu0 %v3795
        %3806 = vmatprep.subr.mxu0 0.0
        %3807 = vmatpush1.msra.mxu0 %v3796
        %3808 = vmatprep.subr.mxu0 0.0
        %3809 = vmatpush1.msra.mxu0 0.0
        %3810 = vmatprep.subr.mxu0 0.0
        %3811 = vmatpush1.msra.mxu0 0.0
        %3812 = vmatprep.subr.mxu0 0.0
        %3813 = vmatpush1.msra.mxu0 0.0
        %3814 = vmatprep.subr.mxu0 0.0
        %3815 = vmatpush1.msra.mxu0 0.0
        %3816 = vmatprep.subr.mxu0 0.0
        %3817 = vmatpush1.msra.mxu0 0.0
        %3818 = vmatprep.subr.mxu0 0.0
        %3819 = vmatpush1.msra.mxu0 0.0
        %3820 = vmatprep.subr.mxu0 0.0
        %3821 = vmatpush1.msra.mxu0 0.0
        %3822 = vmatprep.subr.mxu0 0.0
        %3823 = vmatpush1.msra.mxu0 0.0
        %3824 = vmatprep.subr.mxu0 0.0
        %3825 = vmatpush1.msra.mxu0 0.0
        %3826 = vmatprep.subr.mxu0 0.0
        %3827 = vmatpush1.msra.mxu0 0.0
        %3828 = vmatprep.subr.mxu0 0.0
        %3829 = vmatpush1.msra.mxu0 0.0
        %3830 = vmatprep.subr.mxu0 0.0
        %3831 = vmatpush1.msra.mxu0 0.0
        %3832 = vmatprep.subr.mxu0 0.0
        %3833 = vmatpush1.msra.mxu0 0.0
        %3834 = vmatprep.subr.mxu0 0.0
        %3835 = vmatpush1.msra.mxu0 0.0
        %3836 = vmatprep.subr.mxu0 0.0
        %3837 = vmatpush1.msra.mxu0 0.0
        %3838 = vmatprep.subr.mxu0 0.0
        %3839 = vmatpush1.msra.mxu0 0.0
        %3840 = vmatprep.subr.mxu0 0.0
        %3841 = vmatpush1.msra.mxu0 0.0
        %3842 = vmatprep.subr.mxu0 0.0
        %3843 = vmatpush1.msra.mxu0 0.0
        %3844 = vmatprep.subr.mxu0 0.0
        %3845 = vmatpush1.msra.mxu0 0.0
        %3846 = vmatprep.subr.mxu0 0.0
        %3847 = vmatpush1.msra.mxu0 0.0
        %3848 = vmatprep.subr.mxu0 0.0
        %3849 = vmatpush1.msra.mxu0 0.0
        %3850 = vmatprep.subr.mxu0 0.0
        %3851 = vmatpush1.msra.mxu0 0.0
        %3852 = vmatprep.subr.mxu0 0.0
        %3853 = vmatpush1.msra.mxu0 0.0
        %3854 = vmatprep.subr.mxu0 0.0
        %3855 = vmatpush1.msra.mxu0 0.0
        %3856 = vmatprep.subr.mxu0 0.0
        %3857 = vmatpush1.msra.mxu0 0.0
        %3858 = vmatprep.subr.mxu0 0.0
        %3859 = vmatpush1.msra.mxu0 0.0
        %3860 = vmatprep.subr.mxu0 0.0
        %3861 = vmatpush1.msra.mxu0 0.0
        %3862 = vmatprep.subr.mxu0 0.0
        %3863 = vmatpush1.msra.mxu0 0.0
        %3864 = vmatprep.mubr.f32.mxu0 0.0
        %3865 = vmatmul.mubr.f32.gmra.mrb[0].mxu0 %v3798
        %v3866 = vpop.f32.mrb[0].mxu0
        %v3867 = vadd.f32 0.0, %v3866
        %v3868 = vpop.f32.mrb[0].mxu0
        %3869 = vdwg.mxu0
        %v3870 = vadd.f32 %v3788, %v3867
        %v3871 = vld [vmem:[%s2723] ss:$2 sm:$0x3]
        %s3872 = scalar_lea.vmem [#allocation16], 96
        %v3873 = vld [vmem:[%s3872] sm:$0xff]
        %v3874 = vld [vmem:[%s3872 + $0x8] sm:$0xff]
        %v3875 = vld [vmem:[%s3872 + $0x10] sm:$0xff]
        %v3876 = vld [vmem:[%s3872 + $0x18] sm:$0xff]
        %v3878 = vsel %vm697, %v3871, 0
        %3880 = vmatprep.subr.mxu0 0.0
        %3881 = vmatpush1.msra.mxu0 %v3873
        %3882 = vmatprep.subr.mxu0 0.0
        %3883 = vmatpush1.msra.mxu0 %v3874
        %3884 = vmatprep.subr.mxu0 0.0
        %3885 = vmatpush1.msra.mxu0 %v3875
        %3886 = vmatprep.subr.mxu0 0.0
        %3887 = vmatpush1.msra.mxu0 %v3876
        %3888 = vmatprep.subr.mxu0 0.0
        %3889 = vmatpush1.msra.mxu0 0.0
        %3890 = vmatprep.subr.mxu0 0.0
        %3891 = vmatpush1.msra.mxu0 0.0
        %3892 = vmatprep.subr.mxu0 0.0
        %3893 = vmatpush1.msra.mxu0 0.0
        %3894 = vmatprep.subr.mxu0 0.0
        %3895 = vmatpush1.msra.mxu0 0.0
        %3896 = vmatprep.subr.mxu0 0.0
        %3897 = vmatpush1.msra.mxu0 0.0
        %3898 = vmatprep.subr.mxu0 0.0
        %3899 = vmatpush1.msra.mxu0 0.0
        %3900 = vmatprep.subr.mxu0 0.0
        %3901 = vmatpush1.msra.mxu0 0.0
        %3902 = vmatprep.subr.mxu0 0.0
        %3903 = vmatpush1.msra.mxu0 0.0
        %3904 = vmatprep.subr.mxu0 0.0
        %3905 = vmatpush1.msra.mxu0 0.0
        %3906 = vmatprep.subr.mxu0 0.0
        %3907 = vmatpush1.msra.mxu0 0.0
        %3908 = vmatprep.subr.mxu0 0.0
        %3909 = vmatpush1.msra.mxu0 0.0
        %3910 = vmatprep.subr.mxu0 0.0
        %3911 = vmatpush1.msra.mxu0 0.0
        %3912 = vmatprep.subr.mxu0 0.0
        %3913 = vmatpush1.msra.mxu0 0.0
        %3914 = vmatprep.subr.mxu0 0.0
        %3915 = vmatpush1.msra.mxu0 0.0
        %3916 = vmatprep.subr.mxu0 0.0
        %3917 = vmatpush1.msra.mxu0 0.0
        %3918 = vmatprep.subr.mxu0 0.0
        %3919 = vmatpush1.msra.mxu0 0.0
        %3920 = vmatprep.subr.mxu0 0.0
        %3921 = vmatpush1.msra.mxu0 0.0
        %3922 = vmatprep.subr.mxu0 0.0
        %3923 = vmatpush1.msra.mxu0 0.0
        %3924 = vmatprep.subr.mxu0 0.0
        %3925 = vmatpush1.msra.mxu0 0.0
        %3926 = vmatprep.subr.mxu0 0.0
        %3927 = vmatpush1.msra.mxu0 0.0
        %3928 = vmatprep.subr.mxu0 0.0
        %3929 = vmatpush1.msra.mxu0 0.0
        %3930 = vmatprep.subr.mxu0 0.0
        %3931 = vmatpush1.msra.mxu0 0.0
        %3932 = vmatprep.subr.mxu0 0.0
        %3933 = vmatpush1.msra.mxu0 0.0
        %3934 = vmatprep.subr.mxu0 0.0
        %3935 = vmatpush1.msra.mxu0 0.0
        %3936 = vmatprep.subr.mxu0 0.0
        %3937 = vmatpush1.msra.mxu0 0.0
        %3938 = vmatprep.subr.mxu0 0.0
        %3939 = vmatpush1.msra.mxu0 0.0
        %3940 = vmatprep.subr.mxu0 0.0
        %3941 = vmatpush1.msra.mxu0 0.0
        %3942 = vmatprep.subr.mxu0 0.0
        %3943 = vmatpush1.msra.mxu0 0.0
        %3944 = vmatprep.mubr.f32.mxu0 0.0
        %3945 = vmatmul.mubr.f32.gmra.mrb[0].mxu0 %v3878
        %v3946 = vpop.f32.mrb[0].mxu0
        %v3947 = vadd.f32 0.0, %v3946
        %v3948 = vpop.f32.mrb[0].mxu0
        %3949 = vdwg.mxu0
        %v3950 = vadd.f32 %v3870, %v3947
        %v3951 = vld [vmem:[%s2804] ss:$2 sm:$0x3]
        %s3952 = scalar_lea.vmem [#allocation16], 128
        %v3953 = vld [vmem:[%s3952] sm:$0xff]
        %v3954 = vld [vmem:[%s3952 + $0x8] sm:$0xff]
        %v3955 = vld [vmem:[%s3952 + $0x10] sm:$0xff]
        %v3956 = vld [vmem:[%s3952 + $0x18] sm:$0xff]
        %v3958 = vsel %vm697, %v3951, 0
        %3960 = vmatprep.subr.mxu0 0.0
        %3961 = vmatpush1.msra.mxu0 %v3953
        %3962 = vmatprep.subr.mxu0 0.0
        %3963 = vmatpush1.msra.mxu0 %v3954
        %3964 = vmatprep.subr.mxu0 0.0
        %3965 = vmatpush1.msra.mxu0 %v3955
        %3966 = vmatprep.subr.mxu0 0.0
        %3967 = vmatpush1.msra.mxu0 %v3956
        %3968 = vmatprep.subr.mxu0 0.0
        %3969 = vmatpush1.msra.mxu0 0.0
        %3970 = vmatprep.subr.mxu0 0.0
        %3971 = vmatpush1.msra.mxu0 0.0
        %3972 = vmatprep.subr.mxu0 0.0
        %3973 = vmatpush1.msra.mxu0 0.0
        %3974 = vmatprep.subr.mxu0 0.0
        %3975 = vmatpush1.msra.mxu0 0.0
        %3976 = vmatprep.subr.mxu0 0.0
        %3977 = vmatpush1.msra.mxu0 0.0
        %3978 = vmatprep.subr.mxu0 0.0
        %3979 = vmatpush1.msra.mxu0 0.0
        %3980 = vmatprep.subr.mxu0 0.0
        %3981 = vmatpush1.msra.mxu0 0.0
        %3982 = vmatprep.subr.mxu0 0.0
        %3983 = vmatpush1.msra.mxu0 0.0
        %3984 = vmatprep.subr.mxu0 0.0
        %3985 = vmatpush1.msra.mxu0 0.0
        %3986 = vmatprep.subr.mxu0 0.0
        %3987 = vmatpush1.msra.mxu0 0.0
        %3988 = vmatprep.subr.mxu0 0.0
        %3989 = vmatpush1.msra.mxu0 0.0
        %3990 = vmatprep.subr.mxu0 0.0
        %3991 = vmatpush1.msra.mxu0 0.0
        %3992 = vmatprep.subr.mxu0 0.0
        %3993 = vmatpush1.msra.mxu0 0.0
        %3994 = vmatprep.subr.mxu0 0.0
        %3995 = vmatpush1.msra.mxu0 0.0
        %3996 = vmatprep.subr.mxu0 0.0
        %3997 = vmatpush1.msra.mxu0 0.0
        %3998 = vmatprep.subr.mxu0 0.0
        %3999 = vmatpush1.msra.mxu0 0.0
        %4000 = vmatprep.subr.mxu0 0.0
        %4001 = vmatpush1.msra.mxu0 0.0
        %4002 = vmatprep.subr.mxu0 0.0
        %4003 = vmatpush1.msra.mxu0 0.0
        %4004 = vmatprep.subr.mxu0 0.0
        %4005 = vmatpush1.msra.mxu0 0.0
        %4006 = vmatprep.subr.mxu0 0.0
        %4007 = vmatpush1.msra.mxu0 0.0
        %4008 = vmatprep.subr.mxu0 0.0
        %4009 = vmatpush1.msra.mxu0 0.0
        %4010 = vmatprep.subr.mxu0 0.0
        %4011 = vmatpush1.msra.mxu0 0.0
        %4012 = vmatprep.subr.mxu0 0.0
        %4013 = vmatpush1.msra.mxu0 0.0
        %4014 = vmatprep.subr.mxu0 0.0
        %4015 = vmatpush1.msra.mxu0 0.0
        %4016 = vmatprep.subr.mxu0 0.0
        %4017 = vmatpush1.msra.mxu0 0.0
        %4018 = vmatprep.subr.mxu0 0.0
        %4019 = vmatpush1.msra.mxu0 0.0
        %4020 = vmatprep.subr.mxu0 0.0
        %4021 = vmatpush1.msra.mxu0 0.0
        %4022 = vmatprep.subr.mxu0 0.0
        %4023 = vmatpush1.msra.mxu0 0.0
        %4024 = vmatprep.mubr.f32.mxu0 0.0
        %4025 = vmatmul.mubr.f32.gmra.mrb[0].mxu0 %v3958
        %v4026 = vpop.f32.mrb[0].mxu0
        %v4027 = vadd.f32 0.0, %v4026
        %v4028 = vpop.f32.mrb[0].mxu0
        %4029 = vdwg.mxu0
        %v4030 = vadd.f32 %v3950, %v4027
        %v4031 = vld [vmem:[%s12] sm:$0x1]
        %v4033 = vlaneseq
        %v4034 = vshrl.u32 %v4033, 7
        %v4035 = vsub.s32 0, %v4034
        %v4036 = vrot.slane %v4031, %v4035
        %v4038 = vadd.f32 %v4030, %v4036
        %v4039 = vmax.f32 %v4038, 0.0
        %4040 = vst.msk [vmem:[#allocation2] sm:$0xff] %vm697, 0.0
        %4041 = vst.msk [vmem:[#allocation2 + $0x8] sm:$0xff] %vm697, 0.0
        %4042 = vst.msk [vmem:[#allocation2 + $0x10] sm:$0xff] %vm697, 0.0
        %4043 = vst.msk [vmem:[#allocation2 + $0x18] sm:$0xff] %vm697, 0.0
        %vm4044 = vcmask 254976
        %4045 = vst.msk [vmem:[#allocation2 + $0x8] sm:$0x3] %vm4044, %v4039
        %v4046 = vld [vmem:[#allocation2 + $0x8] sm:$0x3]
        %v4047 = vld [vmem:[#allocation17] sm:$0xff]
        %v4048 = vld [vmem:[#allocation17 + $0x8] sm:$0xff]
        %v4049 = vld [vmem:[#allocation17 + $0x10] sm:$0xff]
        %v4050 = vld [vmem:[#allocation17 + $0x18] sm:$0xff]
        %v4051 = vld [vmem:[%s14] sm:$0x1]
        %v4053 = vlaneseq
        %v4054 = vshrl.u32 %v4053, 7
        %v4055 = vsub.s32 0, %v4054
        %v4056 = vrot.slane %v4051, %v4055
        %v4059 = vsel %vm697, %v4046, 0
        %4061 = vmatprep.subr.mxu0 0.0
        %4062 = vmatpush1.msra.mxu0 %v4047
        %4063 = vmatprep.subr.mxu0 0.0
        %4064 = vmatpush1.msra.mxu0 %v4048
        %4065 = vmatprep.subr.mxu0 0.0
        %4066 = vmatpush1.msra.mxu0 %v4049
        %4067 = vmatprep.subr.mxu0 0.0
        %4068 = vmatpush1.msra.mxu0 %v4050
        %4069 = vmatprep.subr.mxu0 0.0
        %4070 = vmatpush1.msra.mxu0 0.0
        %4071 = vmatprep.subr.mxu0 0.0
        %4072 = vmatpush1.msra.mxu0 0.0
        %4073 = vmatprep.subr.mxu0 0.0
        %4074 = vmatpush1.msra.mxu0 0.0
        %4075 = vmatprep.subr.mxu0 0.0
        %4076 = vmatpush1.msra.mxu0 0.0
        %4077 = vmatprep.subr.mxu0 0.0
        %4078 = vmatpush1.msra.mxu0 0.0
        %4079 = vmatprep.subr.mxu0 0.0
        %4080 = vmatpush1.msra.mxu0 0.0
        %4081 = vmatprep.subr.mxu0 0.0
        %4082 = vmatpush1.msra.mxu0 0.0
        %4083 = vmatprep.subr.mxu0 0.0
        %4084 = vmatpush1.msra.mxu0 0.0
        %4085 = vmatprep.subr.mxu0 0.0
        %4086 = vmatpush1.msra.mxu0 0.0
        %4087 = vmatprep.subr.mxu0 0.0
        %4088 = vmatpush1.msra.mxu0 0.0
        %4089 = vmatprep.subr.mxu0 0.0
        %4090 = vmatpush1.msra.mxu0 0.0
        %4091 = vmatprep.subr.mxu0 0.0
        %4092 = vmatpush1.msra.mxu0 0.0
        %4093 = vmatprep.subr.mxu0 0.0
        %4094 = vmatpush1.msra.mxu0 0.0
        %4095 = vmatprep.subr.mxu0 0.0
        %4096 = vmatpush1.msra.mxu0 0.0
        %4097 = vmatprep.subr.mxu0 0.0
        %4098 = vmatpush1.msra.mxu0 0.0
        %4099 = vmatprep.subr.mxu0 0.0
        %4100 = vmatpush1.msra.mxu0 0.0
        %4101 = vmatprep.subr.mxu0 0.0
        %4102 = vmatpush1.msra.mxu0 0.0
        %4103 = vmatprep.subr.mxu0 0.0
        %4104 = vmatpush1.msra.mxu0 0.0
        %4105 = vmatprep.subr.mxu0 0.0
        %4106 = vmatpush1.msra.mxu0 0.0
        %4107 = vmatprep.subr.mxu0 0.0
        %4108 = vmatpush1.msra.mxu0 0.0
        %4109 = vmatprep.subr.mxu0 0.0
        %4110 = vmatpush1.msra.mxu0 0.0
        %4111 = vmatprep.subr.mxu0 0.0
        %4112 = vmatpush1.msra.mxu0 0.0
        %4113 = vmatprep.subr.mxu0 0.0
        %4114 = vmatpush1.msra.mxu0 0.0
        %4115 = vmatprep.subr.mxu0 0.0
        %4116 = vmatpush1.msra.mxu0 0.0
        %4117 = vmatprep.subr.mxu0 0.0
        %4118 = vmatpush1.msra.mxu0 0.0
        %4119 = vmatprep.subr.mxu0 0.0
        %4120 = vmatpush1.msra.mxu0 0.0
        %4121 = vmatprep.subr.mxu0 0.0
        %4122 = vmatpush1.msra.mxu0 0.0
        %4123 = vmatprep.subr.mxu0 0.0
        %4124 = vmatpush1.msra.mxu0 0.0
        %4125 = vmatprep.mubr.f32.mxu0 0.0
        %4126 = vmatmul.mubr.f32.gmra.mrb[0].mxu0 %v4059
        %v4127 = vpop.f32.mrb[0].mxu0
        %v4128 = vadd.f32 %v4056, %v4127
        %v4129 = vpop.f32.mrb[0].mxu0
        %4130 = vdwg.mxu0
        %vm4131 = vcmask 254977
        %4132 = vst.msk [vmem:[%s599 - $0x1] sm:$0x2] %vm4131, %v4128
        %s4133 = sand.u32 %s354, 1
        %s4134 = scalar_lea.sflag [#allocation7], %s4133
        %s4135 = sand.u32 %s354, 1
        %s4136 = scalar_lea.vmem [#allocation19], %s4135
        // Predicated region
        $region109: #{tpu_custom_call.1} parent=75 // pred_check
          %p4137 = pneg %p364
        $region110: #{tpu_custom_call.1} parent=75 // pred_check_branch
          %4139 = sbr.rel (%p4137) target = $region112
        $region111: #{tpu_custom_call.1} parent=75 // pred_region
          %s4141 = ssub.s32 16, 16
          %4142 = vsyncadd %s4134, %s4141
          %s4143 = smul.addr %s42, 16
          %s4144 = scalar_lea.hbm %s15, %s4143
          %s4146 = sshll.u32 %s4136, 4
          %s4147 = int_to_ptr.vmem [resolvable:$true] %s4146
          %4149 = dma.vmem_to_hbm [thread:$0]  %s4147, 16, %s4144, %s4134
        $region112: #{tpu_custom_call.1} parent=75 // pred_fallthru
          _
      $region76: #{tpu_custom_call.1} parent=5 // pred_fallthru
        _
      %p4150 = scmp.le.s32.totalorder 2, %s37
      // Predicated region
      $region113: #{tpu_custom_call.1} parent=5 // pred_check
        %p4151 = pneg %p4150
      $region114: #{tpu_custom_call.1} parent=5 // pred_check_branch
        %4153 = sbr.rel (%p4151) target = $region116
      $region115: #{tpu_custom_call.1} parent=5 // pred_region
        %s4154 = ssub.s32 %s37, 2
        // Predicated region
        $region117: #{tpu_custom_call.1} parent=115 // pred_check
          %p4155 = pneg %p370
        $region118: #{tpu_custom_call.1} parent=115 // pred_check_branch
          %4157 = sbr.rel (%p4155) target = $region120
        $region119: #{tpu_custom_call.1} parent=115 // pred_region
          %s4158 = sand.u32 %s355, 1
          %s4159 = scalar_lea.sflag [#allocation7], %s4158
          %s4160 = sand.u32 %s355, 1
          %s4161 = scalar_lea.vmem [#allocation19], %s4160
          %4162 = dma.done %s4159, 16
        $region120: #{tpu_custom_call.1} parent=115 // pred_fallthru
          _
      $region116: #{tpu_custom_call.1} parent=5 // pred_fallthru
        _
    $region6: #{tpu_custom_call.1} parent=1 // loop_footer
      %s41 = sadd.s32 1, %s37
    $region7: #{tpu_custom_call.1} parent=1 // loop_footer_branch
      %36 = sbr.rel target = $region3
    $region8: #{tpu_custom_call.1} parent=1 // loop_exit
      _
    %4163 = vsyncpa [#allocation6], 1
    %s4164 = scalar_lea.sflag [#allocation6], 1
    %4165 = vsyncpa %s4164, 1
    %4166 = vsyncpa [#allocation9], 1
    %4167 = vsyncpa [#allocation12], 1
    %4168 = vsyncpa [#allocation15], 1
    %4169 = vsyncpa [#allocation18], 1
    %4170 = vsyncpa [#allocation7], 1
    %s4171 = scalar_lea.sflag [#allocation7], 1
    %4172 = vsyncpa %s4171, 1

</llo_original>
